<compile_context>
chip_gen: v7x
topology: tpu7x:2x2x1
jax: 0.10.0
libtpu: 0.0.40
codegen_flags: <defaults>
</compile_context>

<pallas_src>
import jax
import jax.numpy as jnp
import numpy as np
from jax.experimental import pallas as pl
from jax.experimental.pallas import tpu as pltpu

NUM_CORE_SPLITS = 2   # leading "parallel" grid axis (uses both TCs on v7x)


def edge_aggregate_kernel(row_ref, col_ref, x_ref, e_ref,
                          wcat_ref, bcat_ref, wc_ref, bc_ref,
                          e_out_ref, aggr_ref, proj_ref):
    """Grid = (core_split ['parallel'], edge tiles ['arbitrary']).

    Outputs: e_out (per edge tile), aggr (per-core resident partial; the
    core-0 partial also carries Ax).  Scratch: proj = x @ [A|D|E|B] + bias,
    stored bf16, resident per core across all edge tiles.
    """
    c = pl.program_id(0)
    t = pl.program_id(1)
    N = x_ref.shape[0]
    TE, D = e_ref.shape

    @pl.when(t == 0)
    def _init():
        proj = jnp.dot(x_ref[...].astype(jnp.bfloat16), wcat_ref[...],
                       preferred_element_type=jnp.float32) + bcat_ref[...]
        proj_ref[...] = proj.astype(jnp.bfloat16)
        # Fold Ax into the accumulator; only the core-0 partial carries it so
        # the cross-core sum in the node epilogue counts it exactly once.
        aggr_ref[...] = proj[:, 0:D] * (c == 0).astype(jnp.float32)

    Dx = proj_ref[:, D:2 * D]                      # (N, D)  bf16
    ExBx = proj_ref[:, 2 * D:4 * D]                # (N, 2D) bf16, [Ex | Bx]

    Ce = jnp.dot(e_ref[...].astype(jnp.bfloat16), wc_ref[...],
                 preferred_element_type=jnp.float32) + bc_ref[...]   # (TE, D)

    # One-hot selection matrices in (N, TE) orientation, built in bf16 (exact
    # for 0/1) from lane-dense (1, TE) indices; single iota reused for both.
    node_iota = jax.lax.broadcasted_iota(jnp.int32, (N, TE), 0)
    row_oh = (node_iota == row_ref[...]).astype(jnp.bfloat16)   # (N, TE)
    col_oh = (node_iota == col_ref[...]).astype(jnp.bfloat16)   # (N, TE)

    # Gather: contract the node axis (dim 0 of both operands) -- no transpose.
    contract_nodes = (((0,), (0,)), ((), ()))
    Dx_row = jax.lax.dot_general(row_oh, Dx, contract_nodes,
                                 preferred_element_type=jnp.float32)     # (TE, D)
    ExBx_col = jax.lax.dot_general(col_oh, ExBx, contract_nodes,
                                   preferred_element_type=jnp.float32)   # (TE, 2D)

    e_ij = Dx_row + ExBx_col[:, 0:D] + Ce
    msg = (jax.nn.sigmoid(e_ij) * ExBx_col[:, D:2 * D]).astype(jnp.bfloat16)

    # Scatter-add (aggr='add'): plain (N,TE) @ (TE,D) matmul, no transpose.
    aggr_ref[...] += jnp.dot(row_oh, msg, preferred_element_type=jnp.float32)

    # Edge output: act_fn_e + residual (dropout rate 0.0 -> no-op).
    e_out_ref[...] = e_ref[...] + jax.nn.relu(e_ij)


def node_ffn_kernel(x_ref, aggr_ref, w1_ref, b1_ref, w2_ref, b2_ref, out_ref):
    """Node-tiled epilogue: sum core partials, act + residual + FFN."""
    aggr_total = jnp.sum(aggr_ref[...], axis=0)          # (TN, D), includes Ax
    x_final = x_ref[...] + jax.nn.relu(aggr_total)
    h = jax.nn.relu(jnp.dot(x_final.astype(jnp.bfloat16), w1_ref[...],
                            preferred_element_type=jnp.float32) + b1_ref[...])
    ff = jnp.dot(h.astype(jnp.bfloat16), w2_ref[...],
                 preferred_element_type=jnp.float32) + b2_ref[...]
    out_ref[...] = x_final + ff


def gated_gcn_layer(x, edge_idx, e_attr, params, *, edge_tile=256, node_tile=256):
    N, D = x.shape
    E = e_attr.shape[0]
    NC = NUM_CORE_SPLITS
    TE = min(edge_tile, E // NC)
    TN = min(node_tile, N)
    assert E % (NC * TE) == 0 and N % TN == 0, "demo requires tile-divisible shapes"
    n_inner = E // (NC * TE)

    # Fuse node projections: column order [A | D | E | B] so Dx and the
    # col-gathered pair [Ex | Bx] are contiguous slices of the fused result.
    wcat = jnp.concatenate(
        [params["wA"], params["wD"], params["wE"], params["wB"]],
        axis=1).astype(jnp.bfloat16)
    bcat = jnp.concatenate(
        [params["bA"], params["bD"], params["bE"], params["bB"]], axis=1)
    wC = params["wC"].astype(jnp.bfloat16)
    w1 = params["w1"].astype(jnp.bfloat16)
    w2 = params["w2"].astype(jnp.bfloat16)

    # Lane-dense edge indices: (1, E) int32, sliced (1, TE) per edge tile.
    row = edge_idx[0].astype(jnp.int32).reshape(1, E)
    col = edge_idx[1].astype(jnp.int32).reshape(1, E)

    def full(shape):
        return pl.BlockSpec(shape, lambda *_, _n=len(shape): (0,) * _n)

    cparams_edge = pltpu.CompilerParams(
        dimension_semantics=("parallel", "arbitrary"),   # core split / reduction
        vmem_limit_bytes=48 * 1024 * 1024,               # safe on 64 MiB v7x
    )
    cparams_node = pltpu.CompilerParams(
        dimension_semantics=("parallel",),
        vmem_limit_bytes=48 * 1024 * 1024,
    )

    e_out, aggr_parts = pl.pallas_call(
        edge_aggregate_kernel,
        grid=(NC, n_inner),
        in_specs=[
            pl.BlockSpec((1, TE), lambda c, t: (0, c * n_inner + t)),   # row
            pl.BlockSpec((1, TE), lambda c, t: (0, c * n_inner + t)),   # col
            full((N, D)),                                 # x (resident)
            pl.BlockSpec((TE, D), lambda c, t: (c * n_inner + t, 0)),   # e tile
            full((D, 4 * D)), full((1, 4 * D)),           # fused A|D|E|B (bf16 / f32 bias)
            full((D, D)), full((1, D)),                   # C projection
        ],
        out_specs=(
            pl.BlockSpec((TE, D), lambda c, t: (c * n_inner + t, 0)),   # e_out
            pl.BlockSpec((None, N, D), lambda c, t: (c, 0, 0)),         # per-core aggr
        ),
        out_shape=(
            jax.ShapeDtypeStruct((E, D), jnp.float32),
            jax.ShapeDtypeStruct((NC, N, D), jnp.float32),
        ),
        scratch_shapes=[pltpu.VMEM((N, 4 * D), jnp.bfloat16)],
        compiler_params=cparams_edge,
    )(row, col, x, e_attr, wcat, bcat, wC, params["bC"])

    x_out = pl.pallas_call(
        node_ffn_kernel,
        grid=(N // TN,),
        in_specs=[
            pl.BlockSpec((TN, D), lambda i: (i, 0)),          # x tile
            pl.BlockSpec((NC, TN, D), lambda i: (0, i, 0)),   # per-core partials
            full((D, 2 * D)), full((1, 2 * D)),               # FFN linear 1
            full((2 * D, D)), full((1, D)),                   # FFN linear 2
        ],
        out_specs=pl.BlockSpec((TN, D), lambda i: (i, 0)),
        out_shape=jax.ShapeDtypeStruct((N, D), jnp.float32),
        compiler_params=cparams_node,
    )(x, aggr_parts, w1, params["b1"], w2, params["b2"])

    return x_out, e_out


def ref_forward(x, edge_idx, e_attr, params):
    """Pure-JAX reference mirroring the PyTorch forward (same config, f32)."""
    lin = lambda v, w, b: v @ w + b
    Ax = lin(x, params["wA"], params["bA"])
    Bx = lin(x, params["wB"], params["bB"])
    Dx = lin(x, params["wD"], params["bD"])
    Ex = lin(x, params["wE"], params["bE"])
    Ce = lin(e_attr, params["wC"], params["bC"])
    row, col = edge_idx
    e_ij = Dx[row] + Ex[col] + Ce
    aggr = jax.ops.segment_sum(jax.nn.sigmoid(e_ij) * Bx[col], row,
                               num_segments=x.shape[0])
    x_trans = jax.nn.relu(Ax + aggr)
    e_trans = jax.nn.relu(e_ij)
    x_final = x + x_trans
    e_final = e_attr + e_trans
    h = jax.nn.relu(x_final @ params["w1"] + params["b1"])
    x_final = x_final + (h @ params["w2"] + params["b2"])
    return x_final, e_final


if __name__ == "__main__":
    key = jax.random.PRNGKey(0)
    # nodes, edges, feature dim (D=128 keeps all tiles lane-dense / MXU-friendly)
    N, E, D = 256, 512, 128

    keys = jax.random.split(key, 20)
    x = jax.random.normal(keys[0], (N, D), jnp.float32)
    e_attr = jax.random.normal(keys[1], (E, D), jnp.float32)
    edge_idx = jax.random.randint(keys[2], (2, E), 0, N, jnp.int32)

    def w(k, shape, fan_in):
        return (jax.random.normal(k, shape, jnp.float32) / np.sqrt(fan_in)).astype(jnp.float32)

    params = {
        "wA": w(keys[3], (D, D), D), "bA": w(keys[4], (1, D), D),
        "wB": w(keys[5], (D, D), D), "bB": w(keys[6], (1, D), D),
        "wC": w(keys[7], (D, D), D), "bC": w(keys[8], (1, D), D),
        "wD": w(keys[9], (D, D), D), "bD": w(keys[10], (1, D), D),
        "wE": w(keys[11], (D, D), D), "bE": w(keys[12], (1, D), D),
        "w1": w(keys[13], (D, 2 * D), D), "b1": w(keys[14], (1, 2 * D), D),
        "w2": w(keys[15], (2 * D, D), 2 * D), "b2": w(keys[16], (1, D), 2 * D),
    }

    x_out, e_out = gated_gcn_layer(x, edge_idx, e_attr, params)
    jax.block_until_ready((x_out, e_out))

    x_ref, e_ref = ref_forward(x, edge_idx, e_attr, params)
    # bf16 MXU operands (f32 accumulation) -> loosened tolerance vs f32 reference.
    np.testing.assert_allclose(np.asarray(x_out), np.asarray(x_ref),
                               rtol=5e-2, atol=5e-2)
    np.testing.assert_allclose(np.asarray(e_out), np.asarray(e_ref),
                               rtol=5e-2, atol=5e-2)

    print("KERNEL_OK")
</pallas_src>

<mosaic_0001>
module attributes {stable_mosaic.version = 11 : i64} {
  func.func @edge_aggregate_kernel(%arg0: i32, %arg1: i32, %arg2: memref<1x256xi32, #tpu.memory_space<vmem>>, %arg3: memref<1x256xi32, #tpu.memory_space<vmem>>, %arg4: memref<256x128xf32, #tpu.memory_space<vmem>>, %arg5: memref<256x128xf32, #tpu.memory_space<vmem>>, %arg6: memref<128x512xbf16, #tpu.memory_space<vmem>>, %arg7: memref<1x512xf32, #tpu.memory_space<vmem>>, %arg8: memref<128x128xbf16, #tpu.memory_space<vmem>>, %arg9: memref<1x128xf32, #tpu.memory_space<vmem>>, %arg10: memref<256x128xf32, #tpu.memory_space<vmem>>, %arg11: memref<1x256x128xf32, #tpu.memory_space<vmem>>, %arg12: memref<256x512xbf16, #tpu.memory_space<vmem>>) attributes {dimension_semantics = [#tpu.dimension_semantics<parallel>, #tpu.dimension_semantics<arbitrary>], iteration_bounds = array<i64: 2, 1>, scalar_prefetch = 0 : i64, scratch_operands = 1 : i64, tpu.core_type = #tpu.core_type<tc>, window_params = [{transform_indices = @transform_0, window_bounds = array<i64: 1, 256>}, {transform_indices = @transform_1, window_bounds = array<i64: 1, 256>}, {pipeline_mode = #tpu.pipeline_mode<synchronous>, transform_indices = @transform_2, window_bounds = array<i64: 256, 128>}, {transform_indices = @transform_3, window_bounds = array<i64: 256, 128>}, {pipeline_mode = #tpu.pipeline_mode<synchronous>, transform_indices = @transform_4, window_bounds = array<i64: 128, 512>}, {pipeline_mode = #tpu.pipeline_mode<synchronous>, transform_indices = @transform_5, window_bounds = array<i64: 1, 512>}, {pipeline_mode = #tpu.pipeline_mode<synchronous>, transform_indices = @transform_6, window_bounds = array<i64: 128, 128>}, {pipeline_mode = #tpu.pipeline_mode<synchronous>, transform_indices = @transform_7, window_bounds = array<i64: 1, 128>}, {transform_indices = @transform_8, window_bounds = array<i64: 256, 128>}, {transform_indices = @transform_9, window_bounds = array<i64: 1, 256, 128>}]} {
    %c0_i32 = arith.constant 0 : i32
    %0 = arith.cmpi eq, %arg1, %c0_i32 : i32
    %1 = arith.extui %0 : i1 to i32
    %c0_i32_0 = arith.constant 0 : i32
    %2 = arith.cmpi ne, %1, %c0_i32_0 : i32
    scf.if %2 {
      %c0_27 = arith.constant 0 : index
      %c0_28 = arith.constant 0 : index
      %50 = vector.load %arg4[%c0_27, %c0_28] : memref<256x128xf32, #tpu.memory_space<vmem>>, vector<256x128xf32>
      %51 = arith.truncf %50 : vector<256x128xf32> to vector<256x128xbf16>
      %c0_29 = arith.constant 0 : index
      %c0_30 = arith.constant 0 : index
      %52 = vector.load %arg6[%c0_29, %c0_30] : memref<128x512xbf16, #tpu.memory_space<vmem>>, vector<128x512xbf16>
      %cst_31 = arith.constant dense<0.000000e+00> : vector<256x512xf32>
      %53 = tpu.matmul %51, %52, %cst_31 {dimension_numbers = #tpu.dot_dimension_numbers<[1], [0], [0], [1], [0, 0, 1, 1], [], []>} : vector<256x128xbf16>, vector<128x512xbf16>, vector<256x512xf32> -> vector<256x512xf32>
      %c0_32 = arith.constant 0 : index
      %c0_33 = arith.constant 0 : index
      %54 = vector.load %arg7[%c0_32, %c0_33] : memref<1x512xf32, #tpu.memory_space<vmem>>, vector<1x512xf32>
      %55 = vector.broadcast %54 : vector<1x512xf32> to vector<256x512xf32>
      %56 = arith.addf %53, %55 : vector<256x512xf32>
      %57 = arith.truncf %56 : vector<256x512xf32> to vector<256x512xbf16>
      %c0_34 = arith.constant 0 : index
      %c0_35 = arith.constant 0 : index
      %58 = vector.load %arg12[%c0_34, %c0_35] : memref<256x512xbf16, #tpu.memory_space<vmem>>, vector<256x512xbf16>
      tpu.vector_store %arg12[%c0_34, %c0_35], %57 {strides = array<i32>} : memref<256x512xbf16, #tpu.memory_space<vmem>>, vector<256x512xbf16>,
      %59 = vector.extract_strided_slice %56 {offsets = [0, 0], sizes = [256, 128], strides = [1, 1]} : vector<256x512xf32> to vector<256x128xf32>
      %c0_i32_36 = arith.constant 0 : i32
      %60 = arith.cmpi eq, %arg0, %c0_i32_36 : i32
      %61 = arith.extui %60 : i1 to i32
      %62 = arith.sitofp %61 : i32 to f32
      %63 = vector.broadcast %62 : f32 to vector<256x128xf32>
      %64 = arith.mulf %59, %63 : vector<256x128xf32>
      %c0_37 = arith.constant 0 : index
      %c0_38 = arith.constant 0 : index
      %c0_39 = arith.constant 0 : index
      %65 = vector.load %arg11[%c0_37, %c0_38, %c0_39] : memref<1x256x128xf32, #tpu.memory_space<vmem>>, vector<1x256x128xf32>
      %66 = vector.shape_cast %65 : vector<1x256x128xf32> to vector<256x128xf32>
      %67 = vector.shape_cast %64 : vector<256x128xf32> to vector<1x256x128xf32>
      tpu.vector_store %arg11[%c0_37, %c0_38, %c0_39], %67 {strides = array<i32>} : memref<1x256x128xf32, #tpu.memory_space<vmem>>, vector<1x256x128xf32>,
    } else {
    }
    %c0 = arith.constant 0 : index
    %c128 = arith.constant 128 : index
    %3 = vector.load %arg12[%c0, %c128] : memref<256x512xbf16, #tpu.memory_space<vmem>>, vector<256x128xbf16>
    %c0_1 = arith.constant 0 : index
    %c256 = arith.constant 256 : index
    %4 = vector.load %arg12[%c0_1, %c256] : memref<256x512xbf16, #tpu.memory_space<vmem>>, vector<256x256xbf16>
    %c0_2 = arith.constant 0 : index
    %c0_3 = arith.constant 0 : index
    %5 = vector.load %arg5[%c0_2, %c0_3] : memref<256x128xf32, #tpu.memory_space<vmem>>, vector<256x128xf32>
    %6 = arith.truncf %5 : vector<256x128xf32> to vector<256x128xbf16>
    %c0_4 = arith.constant 0 : index
    %c0_5 = arith.constant 0 : index
    %7 = vector.load %arg8[%c0_4, %c0_5] : memref<128x128xbf16, #tpu.memory_space<vmem>>, vector<128x128xbf16>
    %cst = arith.constant dense<0.000000e+00> : vector<256x128xf32>
    %8 = tpu.matmul %6, %7, %cst {dimension_numbers = #tpu.dot_dimension_numbers<[1], [0], [0], [1], [0, 0, 1, 1], [], []>} : vector<256x128xbf16>, vector<128x128xbf16>, vector<256x128xf32> -> vector<256x128xf32>
    %c0_6 = arith.constant 0 : index
    %c0_7 = arith.constant 0 : index
    %9 = vector.load %arg9[%c0_6, %c0_7] : memref<1x128xf32, #tpu.memory_space<vmem>>, vector<1x128xf32>
    %10 = vector.broadcast %9 : vector<1x128xf32> to vector<256x128xf32>
    %11 = arith.addf %8, %10 : vector<256x128xf32>
    %12 = tpu.iota {dimensions = array<i32: 0>} : vector<256x256xi32>
    %c0_8 = arith.constant 0 : index
    %c0_9 = arith.constant 0 : index
    %13 = vector.load %arg2[%c0_8, %c0_9] : memref<1x256xi32, #tpu.memory_space<vmem>>, vector<1x256xi32>
    %14 = vector.broadcast %13 : vector<1x256xi32> to vector<256x256xi32>
    %15 = arith.cmpi eq, %12, %14 : vector<256x256xi32>
    %16 = arith.extui %15 : vector<256x256xi1> to vector<256x256xi32>
    %17 = arith.sitofp %16 : vector<256x256xi32> to vector<256x256xf32>
    %18 = arith.truncf %17 : vector<256x256xf32> to vector<256x256xbf16>
    %c0_10 = arith.constant 0 : index
    %c0_11 = arith.constant 0 : index
    %19 = vector.load %arg3[%c0_10, %c0_11] : memref<1x256xi32, #tpu.memory_space<vmem>>, vector<1x256xi32>
    %20 = vector.broadcast %19 : vector<1x256xi32> to vector<256x256xi32>
    %21 = arith.cmpi eq, %12, %20 : vector<256x256xi32>
    %22 = arith.extui %21 : vector<256x256xi1> to vector<256x256xi32>
    %23 = arith.sitofp %22 : vector<256x256xi32> to vector<256x256xf32>
    %24 = arith.truncf %23 : vector<256x256xf32> to vector<256x256xbf16>
    %cst_12 = arith.constant dense<0.000000e+00> : vector<256x128xf32>
    %25 = tpu.matmul %18, %3, %cst_12 {dimension_numbers = #tpu.dot_dimension_numbers<[0], [0], [1], [1], [0, 1, 1, 1], [], []>} : vector<256x256xbf16>, vector<256x128xbf16>, vector<256x128xf32> -> vector<256x128xf32>
    %cst_13 = arith.constant dense<0.000000e+00> : vector<256x256xf32>
    %26 = tpu.matmul %24, %4, %cst_13 {dimension_numbers = #tpu.dot_dimension_numbers<[0], [0], [1], [1], [0, 1, 1, 1], [], []>} : vector<256x256xbf16>, vector<256x256xbf16>, vector<256x256xf32> -> vector<256x256xf32>
    %27 = vector.extract_strided_slice %26 {offsets = [0, 0], sizes = [256, 128], strides = [1, 1]} : vector<256x256xf32> to vector<256x128xf32>
    %28 = arith.addf %25, %27 : vector<256x128xf32>
    %29 = arith.addf %28, %11 : vector<256x128xf32>
    %30 = arith.negf %29 : vector<256x128xf32>
    %31 = math.exp %30 : vector<256x128xf32>
    %cst_14 = arith.constant 1.000000e+00 : f32
    %32 = vector.broadcast %cst_14 : f32 to vector<256x128xf32>
    %33 = arith.addf %32, %31 : vector<256x128xf32>
    %34 = arith.divf %32, %33 : vector<256x128xf32>
    %35 = vector.extract_strided_slice %26 {offsets = [0, 128], sizes = [256, 128], strides = [1, 1]} : vector<256x256xf32> to vector<256x128xf32>
    %36 = arith.mulf %34, %35 : vector<256x128xf32>
    %37 = arith.truncf %36 : vector<256x128xf32> to vector<256x128xbf16>
    %c0_15 = arith.constant 0 : index
    %c0_16 = arith.constant 0 : index
    %c0_17 = arith.constant 0 : index
    %38 = vector.load %arg11[%c0_15, %c0_16, %c0_17] : memref<1x256x128xf32, #tpu.memory_space<vmem>>, vector<1x256x128xf32>
    %39 = vector.shape_cast %38 : vector<1x256x128xf32> to vector<256x128xf32>
    %cst_18 = arith.constant dense<0.000000e+00> : vector<256x128xf32>
    %40 = tpu.matmul %18, %37, %cst_18 {dimension_numbers = #tpu.dot_dimension_numbers<[1], [0], [0], [1], [0, 0, 1, 1], [], []>} : vector<256x256xbf16>, vector<256x128xbf16>, vector<256x128xf32> -> vector<256x128xf32>
    %41 = arith.addf %39, %40 : vector<256x128xf32>
    %c0_19 = arith.constant 0 : index
    %c0_20 = arith.constant 0 : index
    %c0_21 = arith.constant 0 : index
    %42 = vector.load %arg11[%c0_19, %c0_20, %c0_21] : memref<1x256x128xf32, #tpu.memory_space<vmem>>, vector<1x256x128xf32>
    %43 = vector.shape_cast %42 : vector<1x256x128xf32> to vector<256x128xf32>
    %44 = vector.shape_cast %41 : vector<256x128xf32> to vector<1x256x128xf32>
    tpu.vector_store %arg11[%c0_19, %c0_20, %c0_21], %44 {strides = array<i32>} : memref<1x256x128xf32, #tpu.memory_space<vmem>>, vector<1x256x128xf32>,
    %c0_22 = arith.constant 0 : index
    %c0_23 = arith.constant 0 : index
    %45 = vector.load %arg5[%c0_22, %c0_23] : memref<256x128xf32, #tpu.memory_space<vmem>>, vector<256x128xf32>
    %cst_24 = arith.constant 0.000000e+00 : f32
    %46 = vector.broadcast %cst_24 : f32 to vector<256x128xf32>
    %47 = arith.maximumf %29, %46 : vector<256x128xf32>
    %48 = arith.addf %45, %47 : vector<256x128xf32>
    %c0_25 = arith.constant 0 : index
    %c0_26 = arith.constant 0 : index
    %49 = vector.load %arg10[%c0_25, %c0_26] : memref<256x128xf32, #tpu.memory_space<vmem>>, vector<256x128xf32>
    tpu.vector_store %arg10[%c0_25, %c0_26], %48 {strides = array<i32>} : memref<256x128xf32, #tpu.memory_space<vmem>>, vector<256x128xf32>,
    return
  }
  func.func @transform_0(%arg0: i32, %arg1: i32) -> (i32, i32) {
    %c1_i32 = arith.constant 1 : i32
    %0 = arith.muli %arg0, %c1_i32 : i32
    %1 = arith.addi %0, %arg1 : i32
    %c0_i32 = arith.constant 0 : i32
    %c0_i32_0 = arith.constant 0 : i32
    return %c0_i32, %1 : i32, i32
  }
  func.func @transform_1(%arg0: i32, %arg1: i32) -> (i32, i32) {
    %c1_i32 = arith.constant 1 : i32
    %0 = arith.muli %arg0, %c1_i32 : i32
    %1 = arith.addi %0, %arg1 : i32
    %c0_i32 = arith.constant 0 : i32
    %c0_i32_0 = arith.constant 0 : i32
    return %c0_i32, %1 : i32, i32
  }
  func.func @transform_2(%arg0: i32, %arg1: i32) -> (i32, i32) {
    %c0_i32 = arith.constant 0 : i32
    %c0_i32_0 = arith.constant 0 : i32
    %c0_i32_1 = arith.constant 0 : i32
    return %c0_i32, %c0_i32_0 : i32, i32
  }
  func.func @transform_3(%arg0: i32, %arg1: i32) -> (i32, i32) {
    %c1_i32 = arith.constant 1 : i32
    %0 = arith.muli %arg0, %c1_i32 : i32
    %1 = arith.addi %0, %arg1 : i32
    %c0_i32 = arith.constant 0 : i32
    %c0_i32_0 = arith.constant 0 : i32
    return %1, %c0_i32 : i32, i32
  }
  func.func @transform_4(%arg0: i32, %arg1: i32) -> (i32, i32) {
    %c0_i32 = arith.constant 0 : i32
    %c0_i32_0 = arith.constant 0 : i32
    %c0_i32_1 = arith.constant 0 : i32
    return %c0_i32, %c0_i32_0 : i32, i32
  }
  func.func @transform_5(%arg0: i32, %arg1: i32) -> (i32, i32) {
    %c0_i32 = arith.constant 0 : i32
    %c0_i32_0 = arith.constant 0 : i32
    %c0_i32_1 = arith.constant 0 : i32
    return %c0_i32, %c0_i32_0 : i32, i32
  }
  func.func @transform_6(%arg0: i32, %arg1: i32) -> (i32, i32) {
    %c0_i32 = arith.constant 0 : i32
    %c0_i32_0 = arith.constant 0 : i32
    %c0_i32_1 = arith.constant 0 : i32
    return %c0_i32, %c0_i32_0 : i32, i32
  }
  func.func @transform_7(%arg0: i32, %arg1: i32) -> (i32, i32) {
    %c0_i32 = arith.constant 0 : i32
    %c0_i32_0 = arith.constant 0 : i32
    %c0_i32_1 = arith.constant 0 : i32
    return %c0_i32, %c0_i32_0 : i32, i32
  }
  func.func @transform_8(%arg0: i32, %arg1: i32) -> (i32, i32) {
    %c1_i32 = arith.constant 1 : i32
    %0 = arith.muli %arg0, %c1_i32 : i32
    %1 = arith.addi %0, %arg1 : i32
    %c0_i32 = arith.constant 0 : i32
    %c0_i32_0 = arith.constant 0 : i32
    return %1, %c0_i32 : i32, i32
  }
  func.func @transform_9(%arg0: i32, %arg1: i32) -> (i32, i32, i32) {
    %c0_i32 = arith.constant 0 : i32
    %c0_i32_0 = arith.constant 0 : i32
    %c0_i32_1 = arith.constant 0 : i32
    return %arg0, %c0_i32, %c0_i32_0 : i32, i32, i32
  }
}

</mosaic_0001>

<llo_original>
// kernel: tpu_custom_call.1
$region0: #{tpu_custom_call.1}
  #allocation0 [shape = 'u32[]', space=smem, size = 0x4, offset = 0x4, fixed_abs, tag = 'smem constant byte address 0x4 - core index']
  #allocation1 [shape = 'u32[144,128]{1,0:T(1,128)}', space=vmem, size = 0x12000, scoped, tag = 'internal scratch']
  #allocation2 [shape = 'bf16[256,512]{1,0:T(16,128)(2,1)}', space=vmem, size = 0x40000, scoped, tag = 'scratch operand']
  %s0 = inlined_call_operand.hbm [shape: s32[1,512], index: 0, kind: input, shape index: {}]
  %s1 = inlined_call_operand.hbm [shape: s32[1,512], index: 1, kind: input, shape index: {}]
  %s2 = inlined_call_operand.hbm [shape: f32[256,128], index: 2, kind: input, shape index: {}]
  %s3 = inlined_call_operand.hbm [shape: f32[512,128], index: 3, kind: input, shape index: {}]
  %s4 = inlined_call_operand.hbm [shape: bf16[128,512], index: 4, kind: input, shape index: {}]
  %s5 = inlined_call_operand.vmem [shape: f32[1,512], index: 5, kind: input, shape index: {}]
  %s6 = inlined_call_operand.hbm [shape: bf16[128,128], index: 6, kind: input, shape index: {}]
  %s7 = inlined_call_operand.vmem [shape: f32[1,128], index: 7, kind: input, shape index: {}]
  %s8 = inlined_call_operand.hbm [shape: f32[512,128], index: 8, kind: output, shape index: {0}]
  %s9 = inlined_call_operand.hbm [shape: f32[2,256,128], index: 9, kind: output, shape index: {1}]
  %10 = xla_tuple %s8, %s9
  %s11 = sld [smem:[#allocation0]]
  $region101: #{tpu_custom_call.1} parent=0
    _
  %s13 = ssub.s32 1, %s11
  %s14 = scalar_select 0, %s13, %s11
  $region1: #{tpu_custom_call.1} parent=0
    #allocation3 [shape = 'u8[2048]{0}', space=vmem, size = 0x800, scoped, tag = 'input window, operand 0']
    #allocation4 [shape = 's32[2]{0}', space=sflag, size = 0x8, scoped, tag = 'scoped memory for tpu_custom_call.1']
    #allocation5 [shape = 's32[2]{0}', space=sflag, size = 0x8, scoped, tag = 'scoped memory for tpu_custom_call.1']
    #allocation6 [shape = 'u8[2048]{0}', space=vmem, size = 0x800, scoped, tag = 'input window, operand 1']
    #allocation7 [shape = 's32[2]{0}', space=sflag, size = 0x8, scoped, tag = 'scoped memory for tpu_custom_call.1']
    #allocation8 [shape = 'u8[131072]{0}', space=vmem, size = 0x20000, scoped, tag = 'input window, operand 2, single buffered']
    #allocation9 [shape = 'u8[262144]{0}', space=vmem, size = 0x40000, scoped, tag = 'input window, operand 3']
    #allocation10 [shape = 's32[2]{0}', space=sflag, size = 0x8, scoped, tag = 'scoped memory for tpu_custom_call.1']
    #allocation11 [shape = 'u8[131072]{0}', space=vmem, size = 0x20000, scoped, tag = 'input window, operand 4, single buffered']
    #allocation12 [shape = 'u8[32768]{0}', space=vmem, size = 0x8000, scoped, tag = 'input window, operand 6, single buffered']
    #allocation13 [shape = 's32[1]{0}', space=sflag, size = 0x4, scoped, tag = 'scoped memory for tpu_custom_call.1']
    #allocation14 [shape = 'u8[262144]{0}', space=vmem, size = 0x40000, scoped, tag = 'output window, operand 0']
    #allocation15 [shape = 'u8[262144]{0}', space=vmem, size = 0x40000, scoped, tag = 'output window, operand 1']
    #allocation16 [shape = 's32[2]{0}', space=sflag, size = 0x8, scoped, tag = 'scoped memory for tpu_custom_call.1']
    %15 = vsyncpa [#allocation4], 0
    %s16 = scalar_lea.sflag [#allocation4], 1
    %17 = vsyncpa %s16, 0
    %18 = vsyncpa [#allocation7], 0
    %s19 = scalar_lea.sflag [#allocation7], 1
    %20 = vsyncpa %s19, 0
    %21 = vsyncpa [#allocation10], 0
    %s22 = scalar_lea.sflag [#allocation10], 1
    %23 = vsyncpa %s22, 0
    %24 = vsyncpa [#allocation13], 0
    %25 = vsyncpa [#allocation5], 0
    %s26 = scalar_lea.sflag [#allocation5], 1
    %27 = vsyncpa %s26, 0
    %28 = vsyncpa [#allocation16], 0
    %s29 = scalar_lea.sflag [#allocation16], 1
    %30 = vsyncpa %s29, 0
    loop: start=0, step=1, limit=4
    $region2: #{tpu_custom_call.1} parent=1 // loop_pre_header
      _
    $region3: #{tpu_custom_call.1} parent=1 // loop_header
      %s32 = sphi 0, %s36
      %p33 = scmp.ge.s32.totalorder %s32, 4
      %s39 = sphi 0, %s51
      %s40 = sphi 0, %s47
      %s41 = sphi 0, %s39
      %s42 = sphi 0, %s40
      %s43 = sphi 0, %s41
      %s44 = sphi 0, %s42
      %s56 = sphi 0, %s58
      %s59 = sphi 0, %s56
      %s60 = sphi 0, %s59
      %s76 = sphi 0, %s60
      %s84 = sphi 0, %s86
      %s87 = sphi 0, %s84
      %s88 = sphi 0, %s87
      %s104 = sphi 0, %s88
      %s108 = sphi 0, %s108
      %s110 = sphi 0, %s108
      %s111 = sphi 0, %s110
      %s125 = sphi 0, %s111
      %s133 = sphi 0, %s135
      %s136 = sphi 0, %s133
      %s137 = sphi 0, %s136
      %s153 = sphi 0, %s137
      %s157 = sphi 0, %s157
      %s159 = sphi 0, %s157
      %s160 = sphi 0, %s159
      %s174 = sphi 0, %s160
      %s178 = sphi 0, %s178
      %s180 = sphi 0, %s178
      %s181 = sphi 0, %s180
      %s195 = sphi 0, %s181
      %s199 = sphi 0, %s199
      %s201 = sphi 0, %s199
      %s202 = sphi 0, %s201
      %s216 = sphi 0, %s202
      %s220 = sphi 0, %s220
      %s222 = sphi 0, %s220
      %s223 = sphi 0, %s222
      %s237 = sphi 0, %s223
      %s245 = sphi 0, %s247
      %s248 = sphi 0, %s245
      %s249 = sphi 0, %s248
      %s265 = sphi 0, %s249
      %s271 = sphi 0, %s273
      %s274 = sphi 0, %s271
      %s275 = sphi 0, %s274
      %s291 = sphi 0, %s275
    $region4: #{tpu_custom_call.1} parent=1 // loop_header_branch
      %35 = sbr.rel (%p33) target = $region8
    $region5: #{tpu_custom_call.1} parent=1 // loop_body
      %s37 = ssub.s32 %s32, 1
      %s38 = ssub.s32 %s32, 2
      %s45 = sadd.s32 1, %s40
      %p46 = scmp.ge.s32.totalorder %s45, 1
      %s47 = scalar_select %p46, 0, %s45
      %s48 = sadd.s32 1, %s39
      %s49 = scalar_select %p46, %s48, %s39
      %p50 = scmp.ge.s32.totalorder %s49, 2
      %s51 = scalar_select %p50, 0, %s49
      %s52 = sadd.s32 %s39, %s40
      %s53 = sadd.s32 %s51, %s47
      %s54 = ssub.s32 %s52, %s53
      %p55 = scmp.eq.s32.totalorder %s54, 0
      %s57 = sadd.s32 %s56, 1
      %s58 = scalar_select %p55, %s56, %s57
      %p61 = pneg %p55
      %p62 = scmp.eq.s32.totalorder %s32, 1
      %p63 = por %p61, %p62
      %p64 = scmp.ne.s32.totalorder %s56, %s59
      %p65 = scmp.eq.s32.totalorder %s32, 0
      %p66 = por %p64, %p65
      %p67 = scmp.ne.s32.totalorder %s56, %s59
      %p68 = scmp.eq.s32.totalorder %s37, 1
      %p69 = por %p67, %p68
      %p70 = scmp.ne.s32.totalorder %s59, %s60
      %p71 = scmp.eq.s32.totalorder %s37, 0
      %p72 = por %p70, %p71
      %p73 = scmp.ne.s32.totalorder %s59, %s60
      %p74 = scmp.eq.s32.totalorder %s38, 1
      %p75 = por %p73, %p74
      %p77 = scmp.ne.s32.totalorder %s60, %s76
      %p78 = scmp.eq.s32.totalorder %s38, 0
      %p79 = por %p77, %p78
      %s80 = sadd.s32 %s39, %s40
      %s81 = sadd.s32 %s51, %s47
      %s82 = ssub.s32 %s80, %s81
      %p83 = scmp.eq.s32.totalorder %s82, 0
      %s85 = sadd.s32 %s84, 1
      %s86 = scalar_select %p83, %s84, %s85
      %p89 = pneg %p83
      %p90 = scmp.eq.s32.totalorder %s32, 1
      %p91 = por %p89, %p90
      %p92 = scmp.ne.s32.totalorder %s84, %s87
      %p93 = scmp.eq.s32.totalorder %s32, 0
      %p94 = por %p92, %p93
      %p95 = scmp.ne.s32.totalorder %s84, %s87
      %p96 = scmp.eq.s32.totalorder %s37, 1
      %p97 = por %p95, %p96
      %p98 = scmp.ne.s32.totalorder %s87, %s88
      %p99 = scmp.eq.s32.totalorder %s37, 0
      %p100 = por %p98, %p99
      %p101 = scmp.ne.s32.totalorder %s87, %s88
      %p102 = scmp.eq.s32.totalorder %s38, 1
      %p103 = por %p101, %p102
      %p105 = scmp.ne.s32.totalorder %s88, %s104
      %p106 = scmp.eq.s32.totalorder %s38, 0
      %p107 = por %p105, %p106
      %s109 = sadd.s32 %s108, 1
      %p112 = scmp.eq.s32.totalorder %s32, 1
      %p113 = scmp.ne.s32.totalorder %s108, %s110
      %p114 = scmp.eq.s32.totalorder %s32, 0
      %p115 = por %p113, %p114
      %p116 = scmp.ne.s32.totalorder %s108, %s110
      %p117 = scmp.eq.s32.totalorder %s37, 1
      %p118 = por %p116, %p117
      %p119 = scmp.ne.s32.totalorder %s110, %s111
      %p120 = scmp.eq.s32.totalorder %s37, 0
      %p121 = por %p119, %p120
      %p122 = scmp.ne.s32.totalorder %s110, %s111
      %p123 = scmp.eq.s32.totalorder %s38, 1
      %p124 = por %p122, %p123
      %p126 = scmp.ne.s32.totalorder %s111, %s125
      %p127 = scmp.eq.s32.totalorder %s38, 0
      %p128 = por %p126, %p127
      %s129 = sadd.s32 %s39, %s40
      %s130 = sadd.s32 %s51, %s47
      %s131 = ssub.s32 %s129, %s130
      %p132 = scmp.eq.s32.totalorder %s131, 0
      %s134 = sadd.s32 %s133, 1
      %s135 = scalar_select %p132, %s133, %s134
      %p138 = pneg %p132
      %p139 = scmp.eq.s32.totalorder %s32, 1
      %p140 = por %p138, %p139
      %p141 = scmp.ne.s32.totalorder %s133, %s136
      %p142 = scmp.eq.s32.totalorder %s32, 0
      %p143 = por %p141, %p142
      %p144 = scmp.ne.s32.totalorder %s133, %s136
      %p145 = scmp.eq.s32.totalorder %s37, 1
      %p146 = por %p144, %p145
      %p147 = scmp.ne.s32.totalorder %s136, %s137
      %p148 = scmp.eq.s32.totalorder %s37, 0
      %p149 = por %p147, %p148
      %p150 = scmp.ne.s32.totalorder %s136, %s137
      %p151 = scmp.eq.s32.totalorder %s38, 1
      %p152 = por %p150, %p151
      %p154 = scmp.ne.s32.totalorder %s137, %s153
      %p155 = scmp.eq.s32.totalorder %s38, 0
      %p156 = por %p154, %p155
      %s158 = sadd.s32 %s157, 1
      %p161 = scmp.eq.s32.totalorder %s32, 1
      %p162 = scmp.ne.s32.totalorder %s157, %s159
      %p163 = scmp.eq.s32.totalorder %s32, 0
      %p164 = por %p162, %p163
      %p165 = scmp.ne.s32.totalorder %s157, %s159
      %p166 = scmp.eq.s32.totalorder %s37, 1
      %p167 = por %p165, %p166
      %p168 = scmp.ne.s32.totalorder %s159, %s160
      %p169 = scmp.eq.s32.totalorder %s37, 0
      %p170 = por %p168, %p169
      %p171 = scmp.ne.s32.totalorder %s159, %s160
      %p172 = scmp.eq.s32.totalorder %s38, 1
      %p173 = por %p171, %p172
      %p175 = scmp.ne.s32.totalorder %s160, %s174
      %p176 = scmp.eq.s32.totalorder %s38, 0
      %p177 = por %p175, %p176
      %s179 = sadd.s32 %s178, 1
      %p182 = scmp.eq.s32.totalorder %s32, 1
      %p183 = scmp.ne.s32.totalorder %s178, %s180
      %p184 = scmp.eq.s32.totalorder %s32, 0
      %p185 = por %p183, %p184
      %p186 = scmp.ne.s32.totalorder %s178, %s180
      %p187 = scmp.eq.s32.totalorder %s37, 1
      %p188 = por %p186, %p187
      %p189 = scmp.ne.s32.totalorder %s180, %s181
      %p190 = scmp.eq.s32.totalorder %s37, 0
      %p191 = por %p189, %p190
      %p192 = scmp.ne.s32.totalorder %s180, %s181
      %p193 = scmp.eq.s32.totalorder %s38, 1
      %p194 = por %p192, %p193
      %p196 = scmp.ne.s32.totalorder %s181, %s195
      %p197 = scmp.eq.s32.totalorder %s38, 0
      %p198 = por %p196, %p197
      %s200 = sadd.s32 %s199, 1
      %p203 = scmp.eq.s32.totalorder %s32, 1
      %p204 = scmp.ne.s32.totalorder %s199, %s201
      %p205 = scmp.eq.s32.totalorder %s32, 0
      %p206 = por %p204, %p205
      %p207 = scmp.ne.s32.totalorder %s199, %s201
      %p208 = scmp.eq.s32.totalorder %s37, 1
      %p209 = por %p207, %p208
      %p210 = scmp.ne.s32.totalorder %s201, %s202
      %p211 = scmp.eq.s32.totalorder %s37, 0
      %p212 = por %p210, %p211
      %p213 = scmp.ne.s32.totalorder %s201, %s202
      %p214 = scmp.eq.s32.totalorder %s38, 1
      %p215 = por %p213, %p214
      %p217 = scmp.ne.s32.totalorder %s202, %s216
      %p218 = scmp.eq.s32.totalorder %s38, 0
      %p219 = por %p217, %p218
      %s221 = sadd.s32 %s220, 1
      %p224 = scmp.eq.s32.totalorder %s32, 1
      %p225 = scmp.ne.s32.totalorder %s220, %s222
      %p226 = scmp.eq.s32.totalorder %s32, 0
      %p227 = por %p225, %p226
      %p228 = scmp.ne.s32.totalorder %s220, %s222
      %p229 = scmp.eq.s32.totalorder %s37, 1
      %p230 = por %p228, %p229
      %p231 = scmp.ne.s32.totalorder %s222, %s223
      %p232 = scmp.eq.s32.totalorder %s37, 0
      %p233 = por %p231, %p232
      %p234 = scmp.ne.s32.totalorder %s222, %s223
      %p235 = scmp.eq.s32.totalorder %s38, 1
      %p236 = por %p234, %p235
      %p238 = scmp.ne.s32.totalorder %s223, %s237
      %p239 = scmp.eq.s32.totalorder %s38, 0
      %p240 = por %p238, %p239
      %s241 = sadd.s32 %s39, %s40
      %s242 = sadd.s32 %s51, %s47
      %s243 = ssub.s32 %s241, %s242
      %p244 = scmp.eq.s32.totalorder %s243, 0
      %s246 = sadd.s32 %s245, 1
      %s247 = scalar_select %p244, %s245, %s246
      %p250 = pneg %p244
      %p251 = scmp.eq.s32.totalorder %s32, 1
      %p252 = por %p250, %p251
      %p253 = scmp.ne.s32.totalorder %s245, %s248
      %p254 = scmp.eq.s32.totalorder %s32, 0
      %p255 = por %p253, %p254
      %p256 = scmp.ne.s32.totalorder %s245, %s248
      %p257 = scmp.eq.s32.totalorder %s37, 1
      %p258 = por %p256, %p257
      %p259 = scmp.ne.s32.totalorder %s248, %s249
      %p260 = scmp.eq.s32.totalorder %s37, 0
      %p261 = por %p259, %p260
      %p262 = scmp.ne.s32.totalorder %s248, %s249
      %p263 = scmp.eq.s32.totalorder %s38, 1
      %p264 = por %p262, %p263
      %p266 = scmp.ne.s32.totalorder %s249, %s265
      %p267 = scmp.eq.s32.totalorder %s38, 0
      %p268 = por %p266, %p267
      %s269 = ssub.s32 %s39, %s51
      %p270 = scmp.eq.s32.totalorder %s269, 0
      %s272 = sadd.s32 %s271, 1
      %s273 = scalar_select %p270, %s271, %s272
      %p276 = pneg %p270
      %p277 = scmp.eq.s32.totalorder %s32, 1
      %p278 = por %p276, %p277
      %p279 = scmp.ne.s32.totalorder %s271, %s274
      %p280 = scmp.eq.s32.totalorder %s32, 0
      %p281 = por %p279, %p280
      %p282 = scmp.ne.s32.totalorder %s271, %s274
      %p283 = scmp.eq.s32.totalorder %s37, 1
      %p284 = por %p282, %p283
      %p285 = scmp.ne.s32.totalorder %s274, %s275
      %p286 = scmp.eq.s32.totalorder %s37, 0
      %p287 = por %p285, %p286
      %p288 = scmp.ne.s32.totalorder %s274, %s275
      %p289 = scmp.eq.s32.totalorder %s38, 1
      %p290 = por %p288, %p289
      %p292 = scmp.ne.s32.totalorder %s275, %s291
      %p293 = scmp.eq.s32.totalorder %s38, 0
      %p294 = por %p292, %p293
      %p295 = scmp.le.s32.totalorder 1, %s32
      %p296 = scmp.lt.s32.totalorder %s32, 3
      %p297 = pnand %p295, %p296
      %p298 = pneg %p297
      // Predicated region
      $region9: #{tpu_custom_call.1} parent=5 // pred_check
        _
      $region10: #{tpu_custom_call.1} parent=5 // pred_check_branch
        %300 = sbr.rel (%p297) target = $region12
      $region11: #{tpu_custom_call.1} parent=5 // pred_region
        %s301 = ssub.s32 %s32, 1
        // Predicated region
        $region13: #{tpu_custom_call.1} parent=11 // pred_check
          %p302 = pneg %p121
        $region14: #{tpu_custom_call.1} parent=11 // pred_check_branch
          %304 = sbr.rel (%p302) target = $region16
        $region15: #{tpu_custom_call.1} parent=11 // pred_region
          %s306 = ssub.s32 4096, 4096
          %307 = vsyncadd [#allocation7], %s306
          %s308 = sshll.u32 [#allocation8], 4
          %s309 = int_to_ptr.vmem [resolvable:$true] %s308
          %314 = dma.hbm_to_vmem [thread:$0]  %s2, 4096, %s309, [#allocation7], 128, 128, 8
        $region16: #{tpu_custom_call.1} parent=11 // pred_fallthru
          _
        // Predicated region
        $region17: #{tpu_custom_call.1} parent=11 // pred_check
          %p315 = pneg %p170
        $region18: #{tpu_custom_call.1} parent=11 // pred_check_branch
          %317 = sbr.rel (%p315) target = $region20
        $region19: #{tpu_custom_call.1} parent=11 // pred_region
          %s319 = ssub.s32 4096, 4096
          %320 = vsyncadd [#allocation10], %s319
          %s321 = sshll.u32 [#allocation11], 4
          %s322 = int_to_ptr.vmem [resolvable:$true] %s321
          %327 = dma.hbm_to_vmem [thread:$0]  %s4, 4096, %s322, [#allocation10], 256, 256, 16
        $region20: #{tpu_custom_call.1} parent=11 // pred_fallthru
          _
        // Predicated region
        $region21: #{tpu_custom_call.1} parent=11 // pred_check
          %p328 = pneg %p191
        $region22: #{tpu_custom_call.1} parent=11 // pred_check_branch
          %330 = sbr.rel (%p328) target = $region24
        $region23: #{tpu_custom_call.1} parent=11 // pred_region
          _
        $region24: #{tpu_custom_call.1} parent=11 // pred_fallthru
          _
        // Predicated region
        $region25: #{tpu_custom_call.1} parent=11 // pred_check
          %p331 = pneg %p212
        $region26: #{tpu_custom_call.1} parent=11 // pred_check_branch
          %333 = sbr.rel (%p331) target = $region28
        $region27: #{tpu_custom_call.1} parent=11 // pred_region
          %s335 = ssub.s32 1024, 1024
          %336 = vsyncadd [#allocation13], %s335
          %s337 = sshll.u32 [#allocation12], 4
          %s338 = int_to_ptr.vmem [resolvable:$true] %s337
          %343 = dma.hbm_to_vmem [thread:$0]  %s6, 1024, %s338, [#allocation13], 64, 64, 4
        $region28: #{tpu_custom_call.1} parent=11 // pred_fallthru
          _
        // Predicated region
        $region29: #{tpu_custom_call.1} parent=11 // pred_check
          %p344 = pneg %p233
        $region30: #{tpu_custom_call.1} parent=11 // pred_check_branch
          %346 = sbr.rel (%p344) target = $region32
        $region31: #{tpu_custom_call.1} parent=11 // pred_region
          _
        $region32: #{tpu_custom_call.1} parent=11 // pred_fallthru
          _
      $region12: #{tpu_custom_call.1} parent=5 // pred_fallthru
        _
      %p347 = scmp.lt.s32.totalorder %s32, 2
      // Predicated region
      $region33: #{tpu_custom_call.1} parent=5 // pred_check
        %p348 = pneg %p347
      $region34: #{tpu_custom_call.1} parent=5 // pred_check_branch
        %350 = sbr.rel (%p348) target = $region36
      $region35: #{tpu_custom_call.1} parent=5 // pred_region
        // Predicated region
        $region37: #{tpu_custom_call.1} parent=35 // pred_check
          %p351 = pneg %p66
        $region38: #{tpu_custom_call.1} parent=35 // pred_check_branch
          %353 = sbr.rel (%p351) target = $region40
        $region39: #{tpu_custom_call.1} parent=35 // pred_region
          %s354 = sand.u32 %s56, 1
          %s355 = scalar_lea.sflag [#allocation4], %s354
          %s356 = sand.u32 %s56, 1
          %s357 = smul.addr %s356, 2
          %s358 = scalar_lea.vmem [#allocation3], %s357
          %s359 = sadd.s32 %s39, %s40
          %s360 = smul.u32 2, %s359
          %s362 = ssub.s32 32, 32
          %363 = vsyncadd %s355, %s362
          %s364 = smul.addr %s360, 16
          %s365 = scalar_lea.hbm %s0, %s364
          %s367 = sshll.u32 %s358, 4
          %s368 = int_to_ptr.vmem [resolvable:$true] %s367
          %370 = dma.hbm_to_vmem [thread:$0]  %s365, 32, %s368, %s355
        $region40: #{tpu_custom_call.1} parent=35 // pred_fallthru
          _
        // Predicated region
        $region41: #{tpu_custom_call.1} parent=35 // pred_check
          %p371 = pneg %p94
        $region42: #{tpu_custom_call.1} parent=35 // pred_check_branch
          %373 = sbr.rel (%p371) target = $region44
        $region43: #{tpu_custom_call.1} parent=35 // pred_region
          %s374 = sand.u32 %s32, 1
          %s375 = scalar_lea.sflag [#allocation7], %s374
          %s376 = sand.u32 %s84, 1
          %s377 = smul.addr %s376, 2
          %s378 = scalar_lea.vmem [#allocation6], %s377
          %s379 = sadd.s32 %s39, %s40
          %s380 = smul.u32 2, %s379
          %s382 = ssub.s32 32, 32
          %383 = vsyncadd %s375, %s382
          %s384 = smul.addr %s380, 16
          %s385 = scalar_lea.hbm %s1, %s384
          %s387 = sshll.u32 %s378, 4
          %s388 = int_to_ptr.vmem [resolvable:$true] %s387
          %390 = dma.hbm_to_vmem [thread:$0]  %s385, 32, %s388, %s375
        $region44: #{tpu_custom_call.1} parent=35 // pred_fallthru
          _
        // Predicated region
        $region45: #{tpu_custom_call.1} parent=35 // pred_check
          %p391 = pneg %p143
        $region46: #{tpu_custom_call.1} parent=35 // pred_check_branch
          %393 = sbr.rel (%p391) target = $region48
        $region47: #{tpu_custom_call.1} parent=35 // pred_region
          %s394 = sand.u32 %s32, 1
          %s395 = scalar_lea.sflag [#allocation10], %s394
          %s396 = sand.u32 %s133, 1
          %s397 = smul.addr %s396, 256
          %s398 = scalar_lea.vmem [#allocation9], %s397
          %s399 = sadd.s32 %s39, %s40
          %s400 = smul.u32 32, %s399
          %s402 = ssub.s32 4096, 4096
          %403 = vsyncadd %s395, %s402
          %s404 = smul.addr %s400, 128
          %s405 = scalar_lea.hbm %s3, %s404
          %s406 = sshll.u32 %s398, 4
          %s407 = int_to_ptr.vmem [resolvable:$true] %s406
          %412 = dma.hbm_to_vmem [thread:$0]  %s405, 4096, %s407, %s395, 128, 128, 8
        $region48: #{tpu_custom_call.1} parent=35 // pred_fallthru
          _
      $region36: #{tpu_custom_call.1} parent=5 // pred_fallthru
        _
      %p413 = scmp.le.s32.totalorder 1, %s32
      %p414 = scmp.lt.s32.totalorder %s32, 3
      %p415 = pnand %p413, %p414
      %p416 = pneg %p415
      // Predicated region
      $region49: #{tpu_custom_call.1} parent=5 // pred_check
        _
      $region50: #{tpu_custom_call.1} parent=5 // pred_check_branch
        %418 = sbr.rel (%p415) target = $region52
      $region51: #{tpu_custom_call.1} parent=5 // pred_region
        %s419 = ssub.s32 %s32, 1
        %s420 = sand.u32 %s59, 1
        %s421 = scalar_lea.sflag [#allocation4], %s420
        %s422 = sand.u32 %s59, 1
        %s423 = smul.addr %s422, 2
        %s424 = scalar_lea.vmem [#allocation3], %s423
        // Predicated region
        $region53: #{tpu_custom_call.1} parent=51 // pred_check
          %p425 = pneg %p72
        $region54: #{tpu_custom_call.1} parent=51 // pred_check_branch
          %427 = sbr.rel (%p425) target = $region56
        $region55: #{tpu_custom_call.1} parent=51 // pred_region
          %428 = dma.done %s421, 32
        $region56: #{tpu_custom_call.1} parent=51 // pred_fallthru
          _
        %s429 = sand.u32 %s37, 1
        %s430 = scalar_lea.sflag [#allocation7], %s429
        %s431 = sand.u32 %s87, 1
        %s432 = smul.addr %s431, 2
        %s433 = scalar_lea.vmem [#allocation6], %s432
        // Predicated region
        $region57: #{tpu_custom_call.1} parent=51 // pred_check
          %p434 = pneg %p100
        $region58: #{tpu_custom_call.1} parent=51 // pred_check_branch
          %436 = sbr.rel (%p434) target = $region60
        $region59: #{tpu_custom_call.1} parent=51 // pred_region
          %437 = dma.done %s430, 32
        $region60: #{tpu_custom_call.1} parent=51 // pred_fallthru
          _
        // Predicated region
        $region61: #{tpu_custom_call.1} parent=51 // pred_check
          %p438 = pneg %p121
        $region62: #{tpu_custom_call.1} parent=51 // pred_check_branch
          %440 = sbr.rel (%p438) target = $region64
        $region63: #{tpu_custom_call.1} parent=51 // pred_region
          %441 = dma.done [#allocation7], 4096
        $region64: #{tpu_custom_call.1} parent=51 // pred_fallthru
          _
        %s442 = sand.u32 %s37, 1
        %s443 = scalar_lea.sflag [#allocation10], %s442
        %s444 = sand.u32 %s136, 1
        %s445 = smul.addr %s444, 256
        %s446 = scalar_lea.vmem [#allocation9], %s445
        // Predicated region
        $region65: #{tpu_custom_call.1} parent=51 // pred_check
          %p447 = pneg %p149
        $region66: #{tpu_custom_call.1} parent=51 // pred_check_branch
          %449 = sbr.rel (%p447) target = $region68
        $region67: #{tpu_custom_call.1} parent=51 // pred_region
          %450 = dma.done %s443, 4096
        $region68: #{tpu_custom_call.1} parent=51 // pred_fallthru
          _
        // Predicated region
        $region69: #{tpu_custom_call.1} parent=51 // pred_check
          %p451 = pneg %p170
        $region70: #{tpu_custom_call.1} parent=51 // pred_check_branch
          %453 = sbr.rel (%p451) target = $region72
        $region71: #{tpu_custom_call.1} parent=51 // pred_region
          %454 = dma.done [#allocation10], 4096
        $region72: #{tpu_custom_call.1} parent=51 // pred_fallthru
          _
        // Predicated region
        $region73: #{tpu_custom_call.1} parent=51 // pred_check
          %p455 = pneg %p212
        $region74: #{tpu_custom_call.1} parent=51 // pred_check_branch
          %457 = sbr.rel (%p455) target = $region76
        $region75: #{tpu_custom_call.1} parent=51 // pred_region
          %458 = dma.done [#allocation13], 1024
        $region76: #{tpu_custom_call.1} parent=51 // pred_fallthru
          _
        %s459 = sand.u32 %s59, 1
        %s460 = scalar_lea.sflag [#allocation4], %s459
        %s461 = sand.u32 %s59, 1
        %s462 = smul.addr %s461, 2
        %s463 = scalar_lea.vmem [#allocation3], %s462
        %p464 = pneg %p72
        %p465 = pneg %p69
        %s466 = sand.u32 %s37, 1
        %s467 = scalar_lea.sflag [#allocation7], %s466
        %s468 = sand.u32 %s87, 1
        %s469 = smul.addr %s468, 2
        %s470 = scalar_lea.vmem [#allocation6], %s469
        %p471 = pneg %p100
        %p472 = pneg %p97
        %p473 = pneg %p121
        %p474 = pneg %p118
        %s475 = sand.u32 %s37, 1
        %s476 = scalar_lea.sflag [#allocation10], %s475
        %s477 = sand.u32 %s136, 1
        %s478 = smul.addr %s477, 256
        %s479 = scalar_lea.vmem [#allocation9], %s478
        %p480 = pneg %p149
        %p481 = pneg %p146
        %p482 = pneg %p170
        %p483 = pneg %p167
        %p484 = pneg %p191
        %p485 = pneg %p188
        %p486 = pneg %p212
        %p487 = pneg %p209
        %p488 = pneg %p233
        %p489 = pneg %p230
        %p490 = pneg %p261
        %p491 = pneg %p258
        %s492 = sand.u32 %s248, 1
        %s493 = scalar_lea.sflag [#allocation5], %s492
        %s494 = sand.u32 %s248, 1
        %s495 = smul.addr %s494, 256
        %s496 = scalar_lea.vmem [#allocation14], %s495
        %p497 = pneg %p287
        %p498 = pneg %p284
        %s499 = sand.u32 %s274, 1
        %s500 = scalar_lea.sflag [#allocation16], %s499
        %s501 = sand.u32 %s274, 1
        %s502 = smul.addr %s501, 256
        %s503 = scalar_lea.vmem [#allocation15], %s502
        %s504 = sadd.s32 %s41, %s42
        %s505 = smul.u32 2, %s504
        %s506 = sadd.s32 %s41, %s42
        %s507 = smul.u32 2, %s506
        %s508 = sadd.s32 %s41, %s42
        %s509 = smul.u32 32, %s508
        %s510 = sadd.s32 %s41, %s42
        %s511 = smul.u32 32, %s510
        %p513 = scmp.eq.s32.totalorder %s42, 0
        // Predicated region
        $region77: #{tpu_custom_call.1} parent=51 // pred_check
          %p514 = pneg %p513
        $region78: #{tpu_custom_call.1} parent=51 // pred_check_branch
          %516 = sbr.rel (%p514) target = $region80
        $region79: #{tpu_custom_call.1} parent=51 // pred_region
          %v517 = vld [vmem:[#allocation8] sm:$0xff]
          %v518 = vld [vmem:[#allocation8 + $0x8] sm:$0xff]
          %v519 = vld [vmem:[#allocation8 + $0x10] sm:$0xff]
          %v520 = vld [vmem:[#allocation8 + $0x18] sm:$0xff]
          %v521 = vld [vmem:[#allocation8 + $0x20] sm:$0xff]
          %v522 = vld [vmem:[#allocation8 + $0x28] sm:$0xff]
          %v523 = vld [vmem:[#allocation8 + $0x30] sm:$0xff]
          %v524 = vld [vmem:[#allocation8 + $0x38] sm:$0xff]
          %v525 = vld [vmem:[#allocation8 + $0x40] sm:$0xff]
          %v526 = vld [vmem:[#allocation8 + $0x48] sm:$0xff]
          %v527 = vld [vmem:[#allocation8 + $0x50] sm:$0xff]
          %v528 = vld [vmem:[#allocation8 + $0x58] sm:$0xff]
          %v529 = vld [vmem:[#allocation8 + $0x60] sm:$0xff]
          %v530 = vld [vmem:[#allocation8 + $0x68] sm:$0xff]
          %v531 = vld [vmem:[#allocation8 + $0x70] sm:$0xff]
          %v532 = vld [vmem:[#allocation8 + $0x78] sm:$0xff]
          %v533 = vld [vmem:[#allocation8 + $0x80] sm:$0xff]
          %v534 = vld [vmem:[#allocation8 + $0x88] sm:$0xff]
          %v535 = vld [vmem:[#allocation8 + $0x90] sm:$0xff]
          %v536 = vld [vmem:[#allocation8 + $0x98] sm:$0xff]
          %v537 = vld [vmem:[#allocation8 + $0xa0] sm:$0xff]
          %v538 = vld [vmem:[#allocation8 + $0xa8] sm:$0xff]
          %v539 = vld [vmem:[#allocation8 + $0xb0] sm:$0xff]
          %v540 = vld [vmem:[#allocation8 + $0xb8] sm:$0xff]
          %v541 = vld [vmem:[#allocation8 + $0xc0] sm:$0xff]
          %v542 = vld [vmem:[#allocation8 + $0xc8] sm:$0xff]
          %v543 = vld [vmem:[#allocation8 + $0xd0] sm:$0xff]
          %v544 = vld [vmem:[#allocation8 + $0xd8] sm:$0xff]
          %v545 = vld [vmem:[#allocation8 + $0xe0] sm:$0xff]
          %v546 = vld [vmem:[#allocation8 + $0xe8] sm:$0xff]
          %v547 = vld [vmem:[#allocation8 + $0xf0] sm:$0xff]
          %v548 = vld [vmem:[#allocation8 + $0xf8] sm:$0xff]
          %v549 = vpack.c.bf16 %v518, %v517
          %v550 = vpack.c.bf16 %v520, %v519
          %v551 = vpack.c.bf16 %v522, %v521
          %v552 = vpack.c.bf16 %v524, %v523
          %v553 = vpack.c.bf16 %v526, %v525
          %v554 = vpack.c.bf16 %v528, %v527
          %v555 = vpack.c.bf16 %v530, %v529
          %v556 = vpack.c.bf16 %v532, %v531
          %v557 = vpack.c.bf16 %v534, %v533
          %v558 = vpack.c.bf16 %v536, %v535
          %v559 = vpack.c.bf16 %v538, %v537
          %v560 = vpack.c.bf16 %v540, %v539
          %v561 = vpack.c.bf16 %v542, %v541
          %v562 = vpack.c.bf16 %v544, %v543
          %v563 = vpack.c.bf16 %v546, %v545
          %v564 = vpack.c.bf16 %v548, %v547
          %v565 = vld [vmem:[#allocation11] sm:$0xff]
          %v566 = vld [vmem:[#allocation11 + $0x8] sm:$0xff]
          %v567 = vld [vmem:[#allocation11 + $0x10] sm:$0xff]
          %v568 = vld [vmem:[#allocation11 + $0x18] sm:$0xff]
          %v569 = vld [vmem:[#allocation11 + $0x20] sm:$0xff]
          %v570 = vld [vmem:[#allocation11 + $0x28] sm:$0xff]
          %v571 = vld [vmem:[#allocation11 + $0x30] sm:$0xff]
          %v572 = vld [vmem:[#allocation11 + $0x38] sm:$0xff]
          %v573 = vld [vmem:[#allocation11 + $0x40] sm:$0xff]
          %v574 = vld [vmem:[#allocation11 + $0x48] sm:$0xff]
          %v575 = vld [vmem:[#allocation11 + $0x50] sm:$0xff]
          %v576 = vld [vmem:[#allocation11 + $0x58] sm:$0xff]
          %v577 = vld [vmem:[#allocation11 + $0x60] sm:$0xff]
          %v578 = vld [vmem:[#allocation11 + $0x68] sm:$0xff]
          %v579 = vld [vmem:[#allocation11 + $0x70] sm:$0xff]
          %v580 = vld [vmem:[#allocation11 + $0x78] sm:$0xff]
          %v581 = vld [vmem:[#allocation11 + $0x80] sm:$0xff]
          %v582 = vld [vmem:[#allocation11 + $0x88] sm:$0xff]
          %v583 = vld [vmem:[#allocation11 + $0x90] sm:$0xff]
          %v584 = vld [vmem:[#allocation11 + $0x98] sm:$0xff]
          %v585 = vld [vmem:[#allocation11 + $0xa0] sm:$0xff]
          %v586 = vld [vmem:[#allocation11 + $0xa8] sm:$0xff]
          %v587 = vld [vmem:[#allocation11 + $0xb0] sm:$0xff]
          %v588 = vld [vmem:[#allocation11 + $0xb8] sm:$0xff]
          %v589 = vld [vmem:[#allocation11 + $0xc0] sm:$0xff]
          %v590 = vld [vmem:[#allocation11 + $0xc8] sm:$0xff]
          %v591 = vld [vmem:[#allocation11 + $0xd0] sm:$0xff]
          %v592 = vld [vmem:[#allocation11 + $0xd8] sm:$0xff]
          %v593 = vld [vmem:[#allocation11 + $0xe0] sm:$0xff]
          %v594 = vld [vmem:[#allocation11 + $0xe8] sm:$0xff]
          %v595 = vld [vmem:[#allocation11 + $0xf0] sm:$0xff]
          %v596 = vld [vmem:[#allocation11 + $0xf8] sm:$0xff]
          %v597 = vld [vmem:[%s5] sm:$0xf]
          %v599 = vlaneseq
          %v600 = vshrl.u32 %v599, 7
          %v601 = vsub.s32 0, %v600
          %v602 = vrot.slane %v597, %v601
          %v603 = vlaneseq
          %v604 = vshrl.u32 %v603, 7
          %v605 = vsub.s32 1, %v604
          %v606 = vrot.slane %v597, %v605
          %v607 = vlaneseq
          %v608 = vshrl.u32 %v607, 7
          %v609 = vsub.s32 2, %v608
          %v610 = vrot.slane %v597, %v609
          %v611 = vlaneseq
          %v612 = vshrl.u32 %v611, 7
          %v613 = vsub.s32 3, %v612
          %v614 = vrot.slane %v597, %v613
          %v651 = vunpack.c.l.b16 %v565
          %v652 = vunpack.c.h.b16 %v565
          %v653 = vunpack.c.l.b16 %v566
          %v654 = vunpack.c.h.b16 %v566
          %v655 = vunpack.c.l.b16 %v567
          %v656 = vunpack.c.h.b16 %v567
          %v657 = vunpack.c.l.b16 %v568
          %v658 = vunpack.c.h.b16 %v568
          %v659 = vunpack.c.l.b16 %v569
          %v660 = vunpack.c.h.b16 %v569
          %v661 = vunpack.c.l.b16 %v570
          %v662 = vunpack.c.h.b16 %v570
          %v663 = vunpack.c.l.b16 %v571
          %v664 = vunpack.c.h.b16 %v571
          %v665 = vunpack.c.l.b16 %v572
          %v666 = vunpack.c.h.b16 %v572
          %v667 = vunpack.c.l.b16 %v573
          %v668 = vunpack.c.h.b16 %v573
          %v669 = vunpack.c.l.b16 %v574
          %v670 = vunpack.c.h.b16 %v574
          %v671 = vunpack.c.l.b16 %v575
          %v672 = vunpack.c.h.b16 %v575
          %v673 = vunpack.c.l.b16 %v576
          %v674 = vunpack.c.h.b16 %v576
          %v675 = vunpack.c.l.b16 %v577
          %v676 = vunpack.c.h.b16 %v577
          %v677 = vunpack.c.l.b16 %v578
          %v678 = vunpack.c.h.b16 %v578
          %v679 = vunpack.c.l.b16 %v579
          %v680 = vunpack.c.h.b16 %v579
          %v681 = vunpack.c.l.b16 %v580
          %v682 = vunpack.c.h.b16 %v580
          %v683 = vunpack.c.l.b16 %v581
          %v684 = vunpack.c.h.b16 %v581
          %v685 = vunpack.c.l.b16 %v582
          %v686 = vunpack.c.h.b16 %v582
          %v687 = vunpack.c.l.b16 %v583
          %v688 = vunpack.c.h.b16 %v583
          %v689 = vunpack.c.l.b16 %v584
          %v690 = vunpack.c.h.b16 %v584
          %v691 = vunpack.c.l.b16 %v585
          %v692 = vunpack.c.h.b16 %v585
          %v693 = vunpack.c.l.b16 %v586
          %v694 = vunpack.c.h.b16 %v586
          %v695 = vunpack.c.l.b16 %v587
          %v696 = vunpack.c.h.b16 %v587
          %v697 = vunpack.c.l.b16 %v588
          %v698 = vunpack.c.h.b16 %v588
          %v699 = vunpack.c.l.b16 %v589
          %v700 = vunpack.c.h.b16 %v589
          %v701 = vunpack.c.l.b16 %v590
          %v702 = vunpack.c.h.b16 %v590
          %v703 = vunpack.c.l.b16 %v591
          %v704 = vunpack.c.h.b16 %v591
          %v705 = vunpack.c.l.b16 %v592
          %v706 = vunpack.c.h.b16 %v592
          %v707 = vunpack.c.l.b16 %v593
          %v708 = vunpack.c.h.b16 %v593
          %v709 = vunpack.c.l.b16 %v594
          %v710 = vunpack.c.h.b16 %v594
          %v711 = vunpack.c.l.b16 %v595
          %v712 = vunpack.c.h.b16 %v595
          %v713 = vunpack.c.l.b16 %v596
          %v714 = vunpack.c.h.b16 %v596
          %v715 = vpack.c.b16 %v655, %v651
          %v716 = vpack.c.b16 %v656, %v652
          %v717 = vpack.c.b16 %v657, %v653
          %v718 = vpack.c.b16 %v658, %v654
          %v719 = vpack.c.b16 %v663, %v659
          %v720 = vpack.c.b16 %v664, %v660
          %v721 = vpack.c.b16 %v665, %v661
          %v722 = vpack.c.b16 %v666, %v662
          %v723 = vpack.c.b16 %v671, %v667
          %v724 = vpack.c.b16 %v672, %v668
          %v725 = vpack.c.b16 %v673, %v669
          %v726 = vpack.c.b16 %v674, %v670
          %v727 = vpack.c.b16 %v679, %v675
          %v728 = vpack.c.b16 %v680, %v676
          %v729 = vpack.c.b16 %v681, %v677
          %v730 = vpack.c.b16 %v682, %v678
          %v731 = vpack.c.b16 %v687, %v683
          %v732 = vpack.c.b16 %v688, %v684
          %v733 = vpack.c.b16 %v689, %v685
          %v734 = vpack.c.b16 %v690, %v686
          %v735 = vpack.c.b16 %v695, %v691
          %v736 = vpack.c.b16 %v696, %v692
          %v737 = vpack.c.b16 %v697, %v693
          %v738 = vpack.c.b16 %v698, %v694
          %v739 = vpack.c.b16 %v703, %v699
          %v740 = vpack.c.b16 %v704, %v700
          %v741 = vpack.c.b16 %v705, %v701
          %v742 = vpack.c.b16 %v706, %v702
          %v743 = vpack.c.b16 %v711, %v707
          %v744 = vpack.c.b16 %v712, %v708
          %v745 = vpack.c.b16 %v713, %v709
          %v746 = vpack.c.b16 %v714, %v710
          %779 = vmatprep.subr.bf16.mxu0 %v716
          %780 = vmatpush1.bf16.msra.mxu0 %v715
          %781 = vmatprep.subr.bf16.mxu0 %v720
          %782 = vmatpush1.bf16.msra.mxu0 %v719
          %783 = vmatprep.subr.bf16.mxu0 %v724
          %784 = vmatpush1.bf16.msra.mxu0 %v723
          %785 = vmatprep.subr.bf16.mxu0 %v728
          %786 = vmatpush1.bf16.msra.mxu0 %v727
          %787 = vmatprep.subr.bf16.mxu0 %v732
          %788 = vmatpush1.bf16.msra.mxu0 %v731
          %789 = vmatprep.subr.bf16.mxu0 %v736
          %790 = vmatpush1.bf16.msra.mxu0 %v735
          %791 = vmatprep.subr.bf16.mxu0 %v740
          %792 = vmatpush1.bf16.msra.mxu0 %v739
          %793 = vmatprep.subr.bf16.mxu0 %v744
          %794 = vmatpush1.bf16.msra.mxu0 %v743
          %795 = vmatprep.subr.bf16.mxu0 0
          %796 = vmatpush1.bf16.msra.mxu0 0
          %797 = vmatprep.subr.bf16.mxu0 0
          %798 = vmatpush1.bf16.msra.mxu0 0
          %799 = vmatprep.subr.bf16.mxu0 0
          %800 = vmatpush1.bf16.msra.mxu0 0
          %801 = vmatprep.subr.bf16.mxu0 0
          %802 = vmatpush1.bf16.msra.mxu0 0
          %803 = vmatprep.subr.bf16.mxu0 0
          %804 = vmatpush1.bf16.msra.mxu0 0
          %805 = vmatprep.subr.bf16.mxu0 0
          %806 = vmatpush1.bf16.msra.mxu0 0
          %807 = vmatprep.subr.bf16.mxu0 0
          %808 = vmatpush1.bf16.msra.mxu0 0
          %809 = vmatprep.subr.bf16.mxu0 0
          %810 = vmatpush1.bf16.msra.mxu0 0
          %811 = vmatprep.mubr.bf16.mxu0 0
          %812 = vmatmul.mubr.bf16.gmra.mrb[0].mxu0 %v549
          %v813 = vpop.f32.mrb[0].mxu0
          %v814 = vadd.f32 %v602, %v813
          %v815 = vpop.f32.mrb[0].mxu0
          %v816 = vadd.f32 %v606, %v815
          %v817 = vpop.f32.mrb[0].mxu0
          %v818 = vadd.f32 %v602, %v817
          %v819 = vpop.f32.mrb[0].mxu0
          %v820 = vadd.f32 %v606, %v819
          %821 = vmatprep.mubr.bf16.mxu0 0
          %822 = vmatmul.mubr.bf16.gmra.mrb[0].mxu0 %v550
          %v823 = vpop.f32.mrb[0].mxu0
          %v824 = vadd.f32 %v602, %v823
          %v825 = vpop.f32.mrb[0].mxu0
          %v826 = vadd.f32 %v606, %v825
          %v827 = vpop.f32.mrb[0].mxu0
          %v828 = vadd.f32 %v602, %v827
          %v829 = vpop.f32.mrb[0].mxu0
          %v830 = vadd.f32 %v606, %v829
          %831 = vmatprep.mubr.bf16.mxu0 0
          %832 = vmatmul.mubr.bf16.gmra.mrb[0].mxu0 %v551
          %v833 = vpop.f32.mrb[0].mxu0
          %v834 = vadd.f32 %v602, %v833
          %v835 = vpop.f32.mrb[0].mxu0
          %v836 = vadd.f32 %v606, %v835
          %v837 = vpop.f32.mrb[0].mxu0
          %v838 = vadd.f32 %v602, %v837
          %v839 = vpop.f32.mrb[0].mxu0
          %v840 = vadd.f32 %v606, %v839
          %841 = vmatprep.mubr.bf16.mxu0 0
          %842 = vmatmul.mubr.bf16.gmra.mrb[0].mxu0 %v552
          %v843 = vpop.f32.mrb[0].mxu0
          %v844 = vadd.f32 %v602, %v843
          %v845 = vpop.f32.mrb[0].mxu0
          %v846 = vadd.f32 %v606, %v845
          %v847 = vpop.f32.mrb[0].mxu0
          %v848 = vadd.f32 %v602, %v847
          %v849 = vpop.f32.mrb[0].mxu0
          %v850 = vadd.f32 %v606, %v849
          %851 = vmatprep.mubr.bf16.mxu0 0
          %852 = vmatmul.mubr.bf16.gmra.mrb[0].mxu0 %v553
          %v853 = vpop.f32.mrb[0].mxu0
          %v854 = vadd.f32 %v602, %v853
          %v855 = vpop.f32.mrb[0].mxu0
          %v856 = vadd.f32 %v606, %v855
          %v857 = vpop.f32.mrb[0].mxu0
          %v858 = vadd.f32 %v602, %v857
          %v859 = vpop.f32.mrb[0].mxu0
          %v860 = vadd.f32 %v606, %v859
          %861 = vmatprep.mubr.bf16.mxu0 0
          %862 = vmatmul.mubr.bf16.gmra.mrb[0].mxu0 %v554
          %v863 = vpop.f32.mrb[0].mxu0
          %v864 = vadd.f32 %v602, %v863
          %v865 = vpop.f32.mrb[0].mxu0
          %v866 = vadd.f32 %v606, %v865
          %v867 = vpop.f32.mrb[0].mxu0
          %v868 = vadd.f32 %v602, %v867
          %v869 = vpop.f32.mrb[0].mxu0
          %v870 = vadd.f32 %v606, %v869
          %871 = vmatprep.mubr.bf16.mxu0 0
          %872 = vmatmul.mubr.bf16.gmra.mrb[0].mxu0 %v555
          %v873 = vpop.f32.mrb[0].mxu0
          %v874 = vadd.f32 %v602, %v873
          %v875 = vpop.f32.mrb[0].mxu0
          %v876 = vadd.f32 %v606, %v875
          %v877 = vpop.f32.mrb[0].mxu0
          %v878 = vadd.f32 %v602, %v877
          %v879 = vpop.f32.mrb[0].mxu0
          %v880 = vadd.f32 %v606, %v879
          %881 = vmatprep.mubr.bf16.mxu0 0
          %882 = vmatmul.mubr.bf16.gmra.mrb[0].mxu0 %v556
          %v883 = vpop.f32.mrb[0].mxu0
          %v884 = vadd.f32 %v602, %v883
          %v885 = vpop.f32.mrb[0].mxu0
          %v886 = vadd.f32 %v606, %v885
          %v887 = vpop.f32.mrb[0].mxu0
          %v888 = vadd.f32 %v602, %v887
          %v889 = vpop.f32.mrb[0].mxu0
          %v890 = vadd.f32 %v606, %v889
          %891 = vmatprep.mubr.bf16.mxu0 0
          %892 = vmatmul.mubr.bf16.gmra.mrb[0].mxu0 %v557
          %v893 = vpop.f32.mrb[0].mxu0
          %v894 = vadd.f32 %v602, %v893
          %v895 = vpop.f32.mrb[0].mxu0
          %v896 = vadd.f32 %v606, %v895
          %v897 = vpop.f32.mrb[0].mxu0
          %v898 = vadd.f32 %v602, %v897
          %v899 = vpop.f32.mrb[0].mxu0
          %v900 = vadd.f32 %v606, %v899
          %901 = vmatprep.mubr.bf16.mxu0 0
          %902 = vmatmul.mubr.bf16.gmra.mrb[0].mxu0 %v558
          %v903 = vpop.f32.mrb[0].mxu0
          %v904 = vadd.f32 %v602, %v903
          %v905 = vpop.f32.mrb[0].mxu0
          %v906 = vadd.f32 %v606, %v905
          %v907 = vpop.f32.mrb[0].mxu0
          %v908 = vadd.f32 %v602, %v907
          %v909 = vpop.f32.mrb[0].mxu0
          %v910 = vadd.f32 %v606, %v909
          %911 = vmatprep.mubr.bf16.mxu0 0
          %912 = vmatmul.mubr.bf16.gmra.mrb[0].mxu0 %v559
          %v913 = vpop.f32.mrb[0].mxu0
          %v914 = vadd.f32 %v602, %v913
          %v915 = vpop.f32.mrb[0].mxu0
          %v916 = vadd.f32 %v606, %v915
          %v917 = vpop.f32.mrb[0].mxu0
          %v918 = vadd.f32 %v602, %v917
          %v919 = vpop.f32.mrb[0].mxu0
          %v920 = vadd.f32 %v606, %v919
          %921 = vmatprep.mubr.bf16.mxu0 0
          %922 = vmatmul.mubr.bf16.gmra.mrb[0].mxu0 %v560
          %v923 = vpop.f32.mrb[0].mxu0
          %v924 = vadd.f32 %v602, %v923
          %v925 = vpop.f32.mrb[0].mxu0
          %v926 = vadd.f32 %v606, %v925
          %v927 = vpop.f32.mrb[0].mxu0
          %v928 = vadd.f32 %v602, %v927
          %v929 = vpop.f32.mrb[0].mxu0
          %v930 = vadd.f32 %v606, %v929
          %931 = vmatprep.mubr.bf16.mxu0 0
          %932 = vmatmul.mubr.bf16.gmra.mrb[0].mxu0 %v561
          %v933 = vpop.f32.mrb[0].mxu0
          %v934 = vadd.f32 %v602, %v933
          %v935 = vpop.f32.mrb[0].mxu0
          %v936 = vadd.f32 %v606, %v935
          %v937 = vpop.f32.mrb[0].mxu0
          %v938 = vadd.f32 %v602, %v937
          %v939 = vpop.f32.mrb[0].mxu0
          %v940 = vadd.f32 %v606, %v939
          %941 = vmatprep.mubr.bf16.mxu0 0
          %942 = vmatmul.mubr.bf16.gmra.mrb[0].mxu0 %v562
          %v943 = vpop.f32.mrb[0].mxu0
          %v944 = vadd.f32 %v602, %v943
          %v945 = vpop.f32.mrb[0].mxu0
          %v946 = vadd.f32 %v606, %v945
          %v947 = vpop.f32.mrb[0].mxu0
          %v948 = vadd.f32 %v602, %v947
          %v949 = vpop.f32.mrb[0].mxu0
          %v950 = vadd.f32 %v606, %v949
          %951 = vmatprep.mubr.bf16.mxu0 0
          %952 = vmatmul.mubr.bf16.gmra.mrb[0].mxu0 %v563
          %v953 = vpop.f32.mrb[0].mxu0
          %v954 = vadd.f32 %v602, %v953
          %v955 = vpop.f32.mrb[0].mxu0
          %v956 = vadd.f32 %v606, %v955
          %v957 = vpop.f32.mrb[0].mxu0
          %v958 = vadd.f32 %v602, %v957
          %v959 = vpop.f32.mrb[0].mxu0
          %v960 = vadd.f32 %v606, %v959
          %961 = vmatprep.mubr.bf16.mxu0 0
          %962 = vmatmul.mubr.bf16.gmra.mrb[0].mxu0 %v564
          %v963 = vpop.f32.mrb[0].mxu0
          %v964 = vadd.f32 %v602, %v963
          %v965 = vpop.f32.mrb[0].mxu0
          %v966 = vadd.f32 %v606, %v965
          %v967 = vpop.f32.mrb[0].mxu0
          %v968 = vadd.f32 %v602, %v967
          %v969 = vpop.f32.mrb[0].mxu0
          %v970 = vadd.f32 %v606, %v969
          %971 = vdwg.mxu0
          %972 = vmatprep.subr.bf16.mxu0 %v718
          %973 = vmatpush1.bf16.msra.mxu0 %v717
          %974 = vmatprep.subr.bf16.mxu0 %v722
          %975 = vmatpush1.bf16.msra.mxu0 %v721
          %976 = vmatprep.subr.bf16.mxu0 %v726
          %977 = vmatpush1.bf16.msra.mxu0 %v725
          %978 = vmatprep.subr.bf16.mxu0 %v730
          %979 = vmatpush1.bf16.msra.mxu0 %v729
          %980 = vmatprep.subr.bf16.mxu0 %v734
          %981 = vmatpush1.bf16.msra.mxu0 %v733
          %982 = vmatprep.subr.bf16.mxu0 %v738
          %983 = vmatpush1.bf16.msra.mxu0 %v737
          %984 = vmatprep.subr.bf16.mxu0 %v742
          %985 = vmatpush1.bf16.msra.mxu0 %v741
          %986 = vmatprep.subr.bf16.mxu0 %v746
          %987 = vmatpush1.bf16.msra.mxu0 %v745
          %988 = vmatprep.subr.bf16.mxu0 0
          %989 = vmatpush1.bf16.msra.mxu0 0
          %990 = vmatprep.subr.bf16.mxu0 0
          %991 = vmatpush1.bf16.msra.mxu0 0
          %992 = vmatprep.subr.bf16.mxu0 0
          %993 = vmatpush1.bf16.msra.mxu0 0
          %994 = vmatprep.subr.bf16.mxu0 0
          %995 = vmatpush1.bf16.msra.mxu0 0
          %996 = vmatprep.subr.bf16.mxu0 0
          %997 = vmatpush1.bf16.msra.mxu0 0
          %998 = vmatprep.subr.bf16.mxu0 0
          %999 = vmatpush1.bf16.msra.mxu0 0
          %1000 = vmatprep.subr.bf16.mxu0 0
          %1001 = vmatpush1.bf16.msra.mxu0 0
          %1002 = vmatprep.subr.bf16.mxu0 0
          %1003 = vmatpush1.bf16.msra.mxu0 0
          %1004 = vmatprep.mubr.bf16.mxu0 0
          %1005 = vmatmul.mubr.bf16.gmra.mrb[0].mxu0 %v549
          %v1006 = vpop.f32.mrb[0].mxu0
          %v1007 = vadd.f32 %v610, %v1006
          %v1008 = vpop.f32.mrb[0].mxu0
          %v1009 = vadd.f32 %v614, %v1008
          %v1010 = vpop.f32.mrb[0].mxu0
          %v1011 = vadd.f32 %v610, %v1010
          %v1012 = vpop.f32.mrb[0].mxu0
          %v1013 = vadd.f32 %v614, %v1012
          %1014 = vmatprep.mubr.bf16.mxu0 0
          %1015 = vmatmul.mubr.bf16.gmra.mrb[0].mxu0 %v550
          %v1016 = vpop.f32.mrb[0].mxu0
          %v1017 = vadd.f32 %v610, %v1016
          %v1018 = vpop.f32.mrb[0].mxu0
          %v1019 = vadd.f32 %v614, %v1018
          %v1020 = vpop.f32.mrb[0].mxu0
          %v1021 = vadd.f32 %v610, %v1020
          %v1022 = vpop.f32.mrb[0].mxu0
          %v1023 = vadd.f32 %v614, %v1022
          %1024 = vmatprep.mubr.bf16.mxu0 0
          %1025 = vmatmul.mubr.bf16.gmra.mrb[0].mxu0 %v551
          %v1026 = vpop.f32.mrb[0].mxu0
          %v1027 = vadd.f32 %v610, %v1026
          %v1028 = vpop.f32.mrb[0].mxu0
          %v1029 = vadd.f32 %v614, %v1028
          %v1030 = vpop.f32.mrb[0].mxu0
          %v1031 = vadd.f32 %v610, %v1030
          %v1032 = vpop.f32.mrb[0].mxu0
          %v1033 = vadd.f32 %v614, %v1032
          %1034 = vmatprep.mubr.bf16.mxu0 0
          %1035 = vmatmul.mubr.bf16.gmra.mrb[0].mxu0 %v552
          %v1036 = vpop.f32.mrb[0].mxu0
          %v1037 = vadd.f32 %v610, %v1036
          %v1038 = vpop.f32.mrb[0].mxu0
          %v1039 = vadd.f32 %v614, %v1038
          %v1040 = vpop.f32.mrb[0].mxu0
          %v1041 = vadd.f32 %v610, %v1040
          %v1042 = vpop.f32.mrb[0].mxu0
          %v1043 = vadd.f32 %v614, %v1042
          %1044 = vmatprep.mubr.bf16.mxu0 0
          %1045 = vmatmul.mubr.bf16.gmra.mrb[0].mxu0 %v553
          %v1046 = vpop.f32.mrb[0].mxu0
          %v1047 = vadd.f32 %v610, %v1046
          %v1048 = vpop.f32.mrb[0].mxu0
          %v1049 = vadd.f32 %v614, %v1048
          %v1050 = vpop.f32.mrb[0].mxu0
          %v1051 = vadd.f32 %v610, %v1050
          %v1052 = vpop.f32.mrb[0].mxu0
          %v1053 = vadd.f32 %v614, %v1052
          %1054 = vmatprep.mubr.bf16.mxu0 0
          %1055 = vmatmul.mubr.bf16.gmra.mrb[0].mxu0 %v554
          %v1056 = vpop.f32.mrb[0].mxu0
          %v1057 = vadd.f32 %v610, %v1056
          %v1058 = vpop.f32.mrb[0].mxu0
          %v1059 = vadd.f32 %v614, %v1058
          %v1060 = vpop.f32.mrb[0].mxu0
          %v1061 = vadd.f32 %v610, %v1060
          %v1062 = vpop.f32.mrb[0].mxu0
          %v1063 = vadd.f32 %v614, %v1062
          %1064 = vmatprep.mubr.bf16.mxu0 0
          %1065 = vmatmul.mubr.bf16.gmra.mrb[0].mxu0 %v555
          %v1066 = vpop.f32.mrb[0].mxu0
          %v1067 = vadd.f32 %v610, %v1066
          %v1068 = vpop.f32.mrb[0].mxu0
          %v1069 = vadd.f32 %v614, %v1068
          %v1070 = vpop.f32.mrb[0].mxu0
          %v1071 = vadd.f32 %v610, %v1070
          %v1072 = vpop.f32.mrb[0].mxu0
          %v1073 = vadd.f32 %v614, %v1072
          %1074 = vmatprep.mubr.bf16.mxu0 0
          %1075 = vmatmul.mubr.bf16.gmra.mrb[0].mxu0 %v556
          %v1076 = vpop.f32.mrb[0].mxu0
          %v1077 = vadd.f32 %v610, %v1076
          %v1078 = vpop.f32.mrb[0].mxu0
          %v1079 = vadd.f32 %v614, %v1078
          %v1080 = vpop.f32.mrb[0].mxu0
          %v1081 = vadd.f32 %v610, %v1080
          %v1082 = vpop.f32.mrb[0].mxu0
          %v1083 = vadd.f32 %v614, %v1082
          %1084 = vmatprep.mubr.bf16.mxu0 0
          %1085 = vmatmul.mubr.bf16.gmra.mrb[0].mxu0 %v557
          %v1086 = vpop.f32.mrb[0].mxu0
          %v1087 = vadd.f32 %v610, %v1086
          %v1088 = vpop.f32.mrb[0].mxu0
          %v1089 = vadd.f32 %v614, %v1088
          %v1090 = vpop.f32.mrb[0].mxu0
          %v1091 = vadd.f32 %v610, %v1090
          %v1092 = vpop.f32.mrb[0].mxu0
          %v1093 = vadd.f32 %v614, %v1092
          %1094 = vmatprep.mubr.bf16.mxu0 0
          %1095 = vmatmul.mubr.bf16.gmra.mrb[0].mxu0 %v558
          %v1096 = vpop.f32.mrb[0].mxu0
          %v1097 = vadd.f32 %v610, %v1096
          %v1098 = vpop.f32.mrb[0].mxu0
          %v1099 = vadd.f32 %v614, %v1098
          %v1100 = vpop.f32.mrb[0].mxu0
          %v1101 = vadd.f32 %v610, %v1100
          %v1102 = vpop.f32.mrb[0].mxu0
          %v1103 = vadd.f32 %v614, %v1102
          %1104 = vmatprep.mubr.bf16.mxu0 0
          %1105 = vmatmul.mubr.bf16.gmra.mrb[0].mxu0 %v559
          %v1106 = vpop.f32.mrb[0].mxu0
          %v1107 = vadd.f32 %v610, %v1106
          %v1108 = vpop.f32.mrb[0].mxu0
          %v1109 = vadd.f32 %v614, %v1108
          %v1110 = vpop.f32.mrb[0].mxu0
          %v1111 = vadd.f32 %v610, %v1110
          %v1112 = vpop.f32.mrb[0].mxu0
          %v1113 = vadd.f32 %v614, %v1112
          %1114 = vmatprep.mubr.bf16.mxu0 0
          %1115 = vmatmul.mubr.bf16.gmra.mrb[0].mxu0 %v560
          %v1116 = vpop.f32.mrb[0].mxu0
          %v1117 = vadd.f32 %v610, %v1116
          %v1118 = vpop.f32.mrb[0].mxu0
          %v1119 = vadd.f32 %v614, %v1118
          %v1120 = vpop.f32.mrb[0].mxu0
          %v1121 = vadd.f32 %v610, %v1120
          %v1122 = vpop.f32.mrb[0].mxu0
          %v1123 = vadd.f32 %v614, %v1122
          %1124 = vmatprep.mubr.bf16.mxu0 0
          %1125 = vmatmul.mubr.bf16.gmra.mrb[0].mxu0 %v561
          %v1126 = vpop.f32.mrb[0].mxu0
          %v1127 = vadd.f32 %v610, %v1126
          %v1128 = vpop.f32.mrb[0].mxu0
          %v1129 = vadd.f32 %v614, %v1128
          %v1130 = vpop.f32.mrb[0].mxu0
          %v1131 = vadd.f32 %v610, %v1130
          %v1132 = vpop.f32.mrb[0].mxu0
          %v1133 = vadd.f32 %v614, %v1132
          %1134 = vmatprep.mubr.bf16.mxu0 0
          %1135 = vmatmul.mubr.bf16.gmra.mrb[0].mxu0 %v562
          %v1136 = vpop.f32.mrb[0].mxu0
          %v1137 = vadd.f32 %v610, %v1136
          %v1138 = vpop.f32.mrb[0].mxu0
          %v1139 = vadd.f32 %v614, %v1138
          %v1140 = vpop.f32.mrb[0].mxu0
          %v1141 = vadd.f32 %v610, %v1140
          %v1142 = vpop.f32.mrb[0].mxu0
          %v1143 = vadd.f32 %v614, %v1142
          %1144 = vmatprep.mubr.bf16.mxu0 0
          %1145 = vmatmul.mubr.bf16.gmra.mrb[0].mxu0 %v563
          %v1146 = vpop.f32.mrb[0].mxu0
          %v1147 = vadd.f32 %v610, %v1146
          %v1148 = vpop.f32.mrb[0].mxu0
          %v1149 = vadd.f32 %v614, %v1148
          %v1150 = vpop.f32.mrb[0].mxu0
          %v1151 = vadd.f32 %v610, %v1150
          %v1152 = vpop.f32.mrb[0].mxu0
          %v1153 = vadd.f32 %v614, %v1152
          %1154 = vmatprep.mubr.bf16.mxu0 0
          %1155 = vmatmul.mubr.bf16.gmra.mrb[0].mxu0 %v564
          %v1156 = vpop.f32.mrb[0].mxu0
          %v1157 = vadd.f32 %v610, %v1156
          %v1158 = vpop.f32.mrb[0].mxu0
          %v1159 = vadd.f32 %v614, %v1158
          %v1160 = vpop.f32.mrb[0].mxu0
          %v1161 = vadd.f32 %v610, %v1160
          %v1162 = vpop.f32.mrb[0].mxu0
          %v1163 = vadd.f32 %v614, %v1162
          %1164 = vdwg.mxu0
          %v1165 = vpack.c.bf16 %v818, %v814
          %v1166 = vpack.c.bf16 %v820, %v816
          %v1167 = vpack.c.bf16 %v1011, %v1007
          %v1168 = vpack.c.bf16 %v1013, %v1009
          %v1169 = vpack.c.bf16 %v828, %v824
          %v1170 = vpack.c.bf16 %v830, %v826
          %v1171 = vpack.c.bf16 %v1021, %v1017
          %v1172 = vpack.c.bf16 %v1023, %v1019
          %v1173 = vpack.c.bf16 %v838, %v834
          %v1174 = vpack.c.bf16 %v840, %v836
          %v1175 = vpack.c.bf16 %v1031, %v1027
          %v1176 = vpack.c.bf16 %v1033, %v1029
          %v1177 = vpack.c.bf16 %v848, %v844
          %v1178 = vpack.c.bf16 %v850, %v846
          %v1179 = vpack.c.bf16 %v1041, %v1037
          %v1180 = vpack.c.bf16 %v1043, %v1039
          %v1181 = vpack.c.bf16 %v858, %v854
          %v1182 = vpack.c.bf16 %v860, %v856
          %v1183 = vpack.c.bf16 %v1051, %v1047
          %v1184 = vpack.c.bf16 %v1053, %v1049
          %v1185 = vpack.c.bf16 %v868, %v864
          %v1186 = vpack.c.bf16 %v870, %v866
          %v1187 = vpack.c.bf16 %v1061, %v1057
          %v1188 = vpack.c.bf16 %v1063, %v1059
          %v1189 = vpack.c.bf16 %v878, %v874
          %v1190 = vpack.c.bf16 %v880, %v876
          %v1191 = vpack.c.bf16 %v1071, %v1067
          %v1192 = vpack.c.bf16 %v1073, %v1069
          %v1193 = vpack.c.bf16 %v888, %v884
          %v1194 = vpack.c.bf16 %v890, %v886
          %v1195 = vpack.c.bf16 %v1081, %v1077
          %v1196 = vpack.c.bf16 %v1083, %v1079
          %v1197 = vpack.c.bf16 %v898, %v894
          %v1198 = vpack.c.bf16 %v900, %v896
          %v1199 = vpack.c.bf16 %v1091, %v1087
          %v1200 = vpack.c.bf16 %v1093, %v1089
          %v1201 = vpack.c.bf16 %v908, %v904
          %v1202 = vpack.c.bf16 %v910, %v906
          %v1203 = vpack.c.bf16 %v1101, %v1097
          %v1204 = vpack.c.bf16 %v1103, %v1099
          %v1205 = vpack.c.bf16 %v918, %v914
          %v1206 = vpack.c.bf16 %v920, %v916
          %v1207 = vpack.c.bf16 %v1111, %v1107
          %v1208 = vpack.c.bf16 %v1113, %v1109
          %v1209 = vpack.c.bf16 %v928, %v924
          %v1210 = vpack.c.bf16 %v930, %v926
          %v1211 = vpack.c.bf16 %v1121, %v1117
          %v1212 = vpack.c.bf16 %v1123, %v1119
          %v1213 = vpack.c.bf16 %v938, %v934
          %v1214 = vpack.c.bf16 %v940, %v936
          %v1215 = vpack.c.bf16 %v1131, %v1127
          %v1216 = vpack.c.bf16 %v1133, %v1129
          %v1217 = vpack.c.bf16 %v948, %v944
          %v1218 = vpack.c.bf16 %v950, %v946
          %v1219 = vpack.c.bf16 %v1141, %v1137
          %v1220 = vpack.c.bf16 %v1143, %v1139
          %v1221 = vpack.c.bf16 %v958, %v954
          %v1222 = vpack.c.bf16 %v960, %v956
          %v1223 = vpack.c.bf16 %v1151, %v1147
          %v1224 = vpack.c.bf16 %v1153, %v1149
          %v1225 = vpack.c.bf16 %v968, %v964
          %v1226 = vpack.c.bf16 %v970, %v966
          %v1227 = vpack.c.bf16 %v1161, %v1157
          %v1228 = vpack.c.bf16 %v1163, %v1159
          %1229 = vst [vmem:[#allocation2] sm:$0xff] %v1165
          %1230 = vst [vmem:[#allocation2 + $0x8] sm:$0xff] %v1166
          %1231 = vst [vmem:[#allocation2 + $0x10] sm:$0xff] %v1167
          %1232 = vst [vmem:[#allocation2 + $0x18] sm:$0xff] %v1168
          %1233 = vst [vmem:[#allocation2 + $0x20] sm:$0xff] %v1169
          %1234 = vst [vmem:[#allocation2 + $0x28] sm:$0xff] %v1170
          %1235 = vst [vmem:[#allocation2 + $0x30] sm:$0xff] %v1171
          %1236 = vst [vmem:[#allocation2 + $0x38] sm:$0xff] %v1172
          %1237 = vst [vmem:[#allocation2 + $0x40] sm:$0xff] %v1173
          %1238 = vst [vmem:[#allocation2 + $0x48] sm:$0xff] %v1174
          %1239 = vst [vmem:[#allocation2 + $0x50] sm:$0xff] %v1175
          %1240 = vst [vmem:[#allocation2 + $0x58] sm:$0xff] %v1176
          %1241 = vst [vmem:[#allocation2 + $0x60] sm:$0xff] %v1177
          %1242 = vst [vmem:[#allocation2 + $0x68] sm:$0xff] %v1178
          %1243 = vst [vmem:[#allocation2 + $0x70] sm:$0xff] %v1179
          %1244 = vst [vmem:[#allocation2 + $0x78] sm:$0xff] %v1180
          %1245 = vst [vmem:[#allocation2 + $0x80] sm:$0xff] %v1181
          %1246 = vst [vmem:[#allocation2 + $0x88] sm:$0xff] %v1182
          %1247 = vst [vmem:[#allocation2 + $0x90] sm:$0xff] %v1183
          %1248 = vst [vmem:[#allocation2 + $0x98] sm:$0xff] %v1184
          %1249 = vst [vmem:[#allocation2 + $0xa0] sm:$0xff] %v1185
          %1250 = vst [vmem:[#allocation2 + $0xa8] sm:$0xff] %v1186
          %1251 = vst [vmem:[#allocation2 + $0xb0] sm:$0xff] %v1187
          %1252 = vst [vmem:[#allocation2 + $0xb8] sm:$0xff] %v1188
          %1253 = vst [vmem:[#allocation2 + $0xc0] sm:$0xff] %v1189
          %1254 = vst [vmem:[#allocation2 + $0xc8] sm:$0xff] %v1190
          %1255 = vst [vmem:[#allocation2 + $0xd0] sm:$0xff] %v1191
          %1256 = vst [vmem:[#allocation2 + $0xd8] sm:$0xff] %v1192
          %1257 = vst [vmem:[#allocation2 + $0xe0] sm:$0xff] %v1193
          %1258 = vst [vmem:[#allocation2 + $0xe8] sm:$0xff] %v1194
          %1259 = vst [vmem:[#allocation2 + $0xf0] sm:$0xff] %v1195
          %1260 = vst [vmem:[#allocation2 + $0xf8] sm:$0xff] %v1196
          %1261 = vst [vmem:[#allocation2 + $0x100] sm:$0xff] %v1197
          %1262 = vst [vmem:[#allocation2 + $0x108] sm:$0xff] %v1198
          %1263 = vst [vmem:[#allocation2 + $0x110] sm:$0xff] %v1199
          %1264 = vst [vmem:[#allocation2 + $0x118] sm:$0xff] %v1200
          %1265 = vst [vmem:[#allocation2 + $0x120] sm:$0xff] %v1201
          %1266 = vst [vmem:[#allocation2 + $0x128] sm:$0xff] %v1202
          %1267 = vst [vmem:[#allocation2 + $0x130] sm:$0xff] %v1203
          %1268 = vst [vmem:[#allocation2 + $0x138] sm:$0xff] %v1204
          %1269 = vst [vmem:[#allocation2 + $0x140] sm:$0xff] %v1205
          %1270 = vst [vmem:[#allocation2 + $0x148] sm:$0xff] %v1206
          %1271 = vst [vmem:[#allocation2 + $0x150] sm:$0xff] %v1207
          %1272 = vst [vmem:[#allocation2 + $0x158] sm:$0xff] %v1208
          %1273 = vst [vmem:[#allocation2 + $0x160] sm:$0xff] %v1209
          %1274 = vst [vmem:[#allocation2 + $0x168] sm:$0xff] %v1210
          %1275 = vst [vmem:[#allocation2 + $0x170] sm:$0xff] %v1211
          %1276 = vst [vmem:[#allocation2 + $0x178] sm:$0xff] %v1212
          %1277 = vst [vmem:[#allocation2 + $0x180] sm:$0xff] %v1213
          %1278 = vst [vmem:[#allocation2 + $0x188] sm:$0xff] %v1214
          %1279 = vst [vmem:[#allocation2 + $0x190] sm:$0xff] %v1215
          %1280 = vst [vmem:[#allocation2 + $0x198] sm:$0xff] %v1216
          %1281 = vst [vmem:[#allocation2 + $0x1a0] sm:$0xff] %v1217
          %1282 = vst [vmem:[#allocation2 + $0x1a8] sm:$0xff] %v1218
          %1283 = vst [vmem:[#allocation2 + $0x1b0] sm:$0xff] %v1219
          %1284 = vst [vmem:[#allocation2 + $0x1b8] sm:$0xff] %v1220
          %1285 = vst [vmem:[#allocation2 + $0x1c0] sm:$0xff] %v1221
          %1286 = vst [vmem:[#allocation2 + $0x1c8] sm:$0xff] %v1222
          %1287 = vst [vmem:[#allocation2 + $0x1d0] sm:$0xff] %v1223
          %1288 = vst [vmem:[#allocation2 + $0x1d8] sm:$0xff] %v1224
          %1289 = vst [vmem:[#allocation2 + $0x1e0] sm:$0xff] %v1225
          %1290 = vst [vmem:[#allocation2 + $0x1e8] sm:$0xff] %v1226
          %1291 = vst [vmem:[#allocation2 + $0x1f0] sm:$0xff] %v1227
          %1292 = vst [vmem:[#allocation2 + $0x1f8] sm:$0xff] %v1228
          %p1293 = scmp.eq.s32.totalorder %s41, 0
          %s1294 = scalar_select %p1293, 1, 0
          %s1295 = scvt.s32.f32 %s1294
          %v1296 = vstv %s1295
          %v1297 = vmul.f32 %v814, %v1296
          %v1298 = vmul.f32 %v818, %v1296
          %v1299 = vmul.f32 %v824, %v1296
          %v1300 = vmul.f32 %v828, %v1296
          %v1301 = vmul.f32 %v834, %v1296
          %v1302 = vmul.f32 %v838, %v1296
          %v1303 = vmul.f32 %v844, %v1296
          %v1304 = vmul.f32 %v848, %v1296
          %v1305 = vmul.f32 %v854, %v1296
          %v1306 = vmul.f32 %v858, %v1296
          %v1307 = vmul.f32 %v864, %v1296
          %v1308 = vmul.f32 %v868, %v1296
          %v1309 = vmul.f32 %v874, %v1296
          %v1310 = vmul.f32 %v878, %v1296
          %v1311 = vmul.f32 %v884, %v1296
          %v1312 = vmul.f32 %v888, %v1296
          %v1313 = vmul.f32 %v894, %v1296
          %v1314 = vmul.f32 %v898, %v1296
          %v1315 = vmul.f32 %v904, %v1296
          %v1316 = vmul.f32 %v908, %v1296
          %v1317 = vmul.f32 %v914, %v1296
          %v1318 = vmul.f32 %v918, %v1296
          %v1319 = vmul.f32 %v924, %v1296
          %v1320 = vmul.f32 %v928, %v1296
          %v1321 = vmul.f32 %v934, %v1296
          %v1322 = vmul.f32 %v938, %v1296
          %v1323 = vmul.f32 %v944, %v1296
          %v1324 = vmul.f32 %v948, %v1296
          %v1325 = vmul.f32 %v954, %v1296
          %v1326 = vmul.f32 %v958, %v1296
          %v1327 = vmul.f32 %v964, %v1296
          %v1328 = vmul.f32 %v968, %v1296
          %1329 = vst [vmem:[%s503] sm:$0xff] %v1297
          %1330 = vst [vmem:[%s503 + $0x8] sm:$0xff] %v1298
          %1331 = vst [vmem:[%s503 + $0x10] sm:$0xff] %v1299
          %1332 = vst [vmem:[%s503 + $0x18] sm:$0xff] %v1300
          %1333 = vst [vmem:[%s503 + $0x20] sm:$0xff] %v1301
          %1334 = vst [vmem:[%s503 + $0x28] sm:$0xff] %v1302
          %1335 = vst [vmem:[%s503 + $0x30] sm:$0xff] %v1303
          %1336 = vst [vmem:[%s503 + $0x38] sm:$0xff] %v1304
          %1337 = vst [vmem:[%s503 + $0x40] sm:$0xff] %v1305
          %1338 = vst [vmem:[%s503 + $0x48] sm:$0xff] %v1306
          %1339 = vst [vmem:[%s503 + $0x50] sm:$0xff] %v1307
          %1340 = vst [vmem:[%s503 + $0x58] sm:$0xff] %v1308
          %1341 = vst [vmem:[%s503 + $0x60] sm:$0xff] %v1309
          %1342 = vst [vmem:[%s503 + $0x68] sm:$0xff] %v1310
          %1343 = vst [vmem:[%s503 + $0x70] sm:$0xff] %v1311
          %1344 = vst [vmem:[%s503 + $0x78] sm:$0xff] %v1312
          %1345 = vst [vmem:[%s503 + $0x80] sm:$0xff] %v1313
          %1346 = vst [vmem:[%s503 + $0x88] sm:$0xff] %v1314
          %1347 = vst [vmem:[%s503 + $0x90] sm:$0xff] %v1315
          %1348 = vst [vmem:[%s503 + $0x98] sm:$0xff] %v1316
          %1349 = vst [vmem:[%s503 + $0xa0] sm:$0xff] %v1317
          %1350 = vst [vmem:[%s503 + $0xa8] sm:$0xff] %v1318
          %1351 = vst [vmem:[%s503 + $0xb0] sm:$0xff] %v1319
          %1352 = vst [vmem:[%s503 + $0xb8] sm:$0xff] %v1320
          %1353 = vst [vmem:[%s503 + $0xc0] sm:$0xff] %v1321
          %1354 = vst [vmem:[%s503 + $0xc8] sm:$0xff] %v1322
          %1355 = vst [vmem:[%s503 + $0xd0] sm:$0xff] %v1323
          %1356 = vst [vmem:[%s503 + $0xd8] sm:$0xff] %v1324
          %1357 = vst [vmem:[%s503 + $0xe0] sm:$0xff] %v1325
          %1358 = vst [vmem:[%s503 + $0xe8] sm:$0xff] %v1326
          %1359 = vst [vmem:[%s503 + $0xf0] sm:$0xff] %v1327
          %1360 = vst [vmem:[%s503 + $0xf8] sm:$0xff] %v1328
        $region80: #{tpu_custom_call.1} parent=51 // pred_fallthru
          _
        %v1361 = vld [vmem:[#allocation2 + $0x8] sm:$0xff]
        %v1362 = vld [vmem:[#allocation2 + $0x28] sm:$0xff]
        %v1363 = vld [vmem:[#allocation2 + $0x48] sm:$0xff]
        %v1364 = vld [vmem:[#allocation2 + $0x68] sm:$0xff]
        %v1365 = vld [vmem:[#allocation2 + $0x88] sm:$0xff]
        %v1366 = vld [vmem:[#allocation2 + $0xa8] sm:$0xff]
        %v1367 = vld [vmem:[#allocation2 + $0xc8] sm:$0xff]
        %v1368 = vld [vmem:[#allocation2 + $0xe8] sm:$0xff]
        %v1369 = vld [vmem:[#allocation2 + $0x108] sm:$0xff]
        %v1370 = vld [vmem:[#allocation2 + $0x128] sm:$0xff]
        %v1371 = vld [vmem:[#allocation2 + $0x148] sm:$0xff]
        %v1372 = vld [vmem:[#allocation2 + $0x168] sm:$0xff]
        %v1373 = vld [vmem:[#allocation2 + $0x188] sm:$0xff]
        %v1374 = vld [vmem:[#allocation2 + $0x1a8] sm:$0xff]
        %v1375 = vld [vmem:[#allocation2 + $0x1c8] sm:$0xff]
        %v1376 = vld [vmem:[#allocation2 + $0x1e8] sm:$0xff]
        %v1377 = vld [vmem:[#allocation2 + $0x10] sm:$0xff]
        %v1378 = vld [vmem:[#allocation2 + $0x18] sm:$0xff]
        %v1379 = vld [vmem:[#allocation2 + $0x30] sm:$0xff]
        %v1380 = vld [vmem:[#allocation2 + $0x38] sm:$0xff]
        %v1381 = vld [vmem:[#allocation2 + $0x50] sm:$0xff]
        %v1382 = vld [vmem:[#allocation2 + $0x58] sm:$0xff]
        %v1383 = vld [vmem:[#allocation2 + $0x70] sm:$0xff]
        %v1384 = vld [vmem:[#allocation2 + $0x78] sm:$0xff]
        %v1385 = vld [vmem:[#allocation2 + $0x90] sm:$0xff]
        %v1386 = vld [vmem:[#allocation2 + $0x98] sm:$0xff]
        %v1387 = vld [vmem:[#allocation2 + $0xb0] sm:$0xff]
        %v1388 = vld [vmem:[#allocation2 + $0xb8] sm:$0xff]
        %v1389 = vld [vmem:[#allocation2 + $0xd0] sm:$0xff]
        %v1390 = vld [vmem:[#allocation2 + $0xd8] sm:$0xff]
        %v1391 = vld [vmem:[#allocation2 + $0xf0] sm:$0xff]
        %v1392 = vld [vmem:[#allocation2 + $0xf8] sm:$0xff]
        %v1393 = vld [vmem:[#allocation2 + $0x110] sm:$0xff]
        %v1394 = vld [vmem:[#allocation2 + $0x118] sm:$0xff]
        %v1395 = vld [vmem:[#allocation2 + $0x130] sm:$0xff]
        %v1396 = vld [vmem:[#allocation2 + $0x138] sm:$0xff]
        %v1397 = vld [vmem:[#allocation2 + $0x150] sm:$0xff]
        %v1398 = vld [vmem:[#allocation2 + $0x158] sm:$0xff]
        %v1399 = vld [vmem:[#allocation2 + $0x170] sm:$0xff]
        %v1400 = vld [vmem:[#allocation2 + $0x178] sm:$0xff]
        %v1401 = vld [vmem:[#allocation2 + $0x190] sm:$0xff]
        %v1402 = vld [vmem:[#allocation2 + $0x198] sm:$0xff]
        %v1403 = vld [vmem:[#allocation2 + $0x1b0] sm:$0xff]
        %v1404 = vld [vmem:[#allocation2 + $0x1b8] sm:$0xff]
        %v1405 = vld [vmem:[#allocation2 + $0x1d0] sm:$0xff]
        %v1406 = vld [vmem:[#allocation2 + $0x1d8] sm:$0xff]
        %v1407 = vld [vmem:[#allocation2 + $0x1f0] sm:$0xff]
        %v1408 = vld [vmem:[#allocation2 + $0x1f8] sm:$0xff]
        %v1409 = vld [vmem:[%s446] sm:$0xff]
        %v1410 = vld [vmem:[%s446 + $0x8] sm:$0xff]
        %v1411 = vld [vmem:[%s446 + $0x10] sm:$0xff]
        %v1412 = vld [vmem:[%s446 + $0x18] sm:$0xff]
        %v1413 = vld [vmem:[%s446 + $0x20] sm:$0xff]
        %v1414 = vld [vmem:[%s446 + $0x28] sm:$0xff]
        %v1415 = vld [vmem:[%s446 + $0x30] sm:$0xff]
        %v1416 = vld [vmem:[%s446 + $0x38] sm:$0xff]
        %v1417 = vld [vmem:[%s446 + $0x40] sm:$0xff]
        %v1418 = vld [vmem:[%s446 + $0x48] sm:$0xff]
        %v1419 = vld [vmem:[%s446 + $0x50] sm:$0xff]
        %v1420 = vld [vmem:[%s446 + $0x58] sm:$0xff]
        %v1421 = vld [vmem:[%s446 + $0x60] sm:$0xff]
        %v1422 = vld [vmem:[%s446 + $0x68] sm:$0xff]
        %v1423 = vld [vmem:[%s446 + $0x70] sm:$0xff]
        %v1424 = vld [vmem:[%s446 + $0x78] sm:$0xff]
        %v1425 = vld [vmem:[%s446 + $0x80] sm:$0xff]
        %v1426 = vld [vmem:[%s446 + $0x88] sm:$0xff]
        %v1427 = vld [vmem:[%s446 + $0x90] sm:$0xff]
        %v1428 = vld [vmem:[%s446 + $0x98] sm:$0xff]
        %v1429 = vld [vmem:[%s446 + $0xa0] sm:$0xff]
        %v1430 = vld [vmem:[%s446 + $0xa8] sm:$0xff]
        %v1431 = vld [vmem:[%s446 + $0xb0] sm:$0xff]
        %v1432 = vld [vmem:[%s446 + $0xb8] sm:$0xff]
        %v1433 = vld [vmem:[%s446 + $0xc0] sm:$0xff]
        %v1434 = vld [vmem:[%s446 + $0xc8] sm:$0xff]
        %v1435 = vld [vmem:[%s446 + $0xd0] sm:$0xff]
        %v1436 = vld [vmem:[%s446 + $0xd8] sm:$0xff]
        %v1437 = vld [vmem:[%s446 + $0xe0] sm:$0xff]
        %v1438 = vld [vmem:[%s446 + $0xe8] sm:$0xff]
        %v1439 = vld [vmem:[%s446 + $0xf0] sm:$0xff]
        %v1440 = vld [vmem:[%s446 + $0xf8] sm:$0xff]
        %v1441 = vpack.c.bf16 %v1410, %v1409
        %v1442 = vpack.c.bf16 %v1412, %v1411
        %v1443 = vpack.c.bf16 %v1414, %v1413
        %v1444 = vpack.c.bf16 %v1416, %v1415
        %v1445 = vpack.c.bf16 %v1418, %v1417
        %v1446 = vpack.c.bf16 %v1420, %v1419
        %v1447 = vpack.c.bf16 %v1422, %v1421
        %v1448 = vpack.c.bf16 %v1424, %v1423
        %v1449 = vpack.c.bf16 %v1426, %v1425
        %v1450 = vpack.c.bf16 %v1428, %v1427
        %v1451 = vpack.c.bf16 %v1430, %v1429
        %v1452 = vpack.c.bf16 %v1432, %v1431
        %v1453 = vpack.c.bf16 %v1434, %v1433
        %v1454 = vpack.c.bf16 %v1436, %v1435
        %v1455 = vpack.c.bf16 %v1438, %v1437
        %v1456 = vpack.c.bf16 %v1440, %v1439
        %v1457 = vld [vmem:[#allocation12] sm:$0xf]
        %v1458 = vld [vmem:[#allocation12 + $0x4] sm:$0xf]
        %v1459 = vld [vmem:[#allocation12 + $0x8] sm:$0xf]
        %v1460 = vld [vmem:[#allocation12 + $0xc] sm:$0xf]
        %v1461 = vld [vmem:[#allocation12 + $0x10] sm:$0xf]
        %v1462 = vld [vmem:[#allocation12 + $0x14] sm:$0xf]
        %v1463 = vld [vmem:[#allocation12 + $0x18] sm:$0xf]
        %v1464 = vld [vmem:[#allocation12 + $0x1c] sm:$0xf]
        %v1465 = vld [vmem:[#allocation12 + $0x20] sm:$0xf]
        %v1466 = vld [vmem:[#allocation12 + $0x24] sm:$0xf]
        %v1467 = vld [vmem:[#allocation12 + $0x28] sm:$0xf]
        %v1468 = vld [vmem:[#allocation12 + $0x2c] sm:$0xf]
        %v1469 = vld [vmem:[#allocation12 + $0x30] sm:$0xf]
        %v1470 = vld [vmem:[#allocation12 + $0x34] sm:$0xf]
        %v1471 = vld [vmem:[#allocation12 + $0x38] sm:$0xf]
        %v1472 = vld [vmem:[#allocation12 + $0x3c] sm:$0xf]
        %v1473 = vld [vmem:[%s7] sm:$0x1]
        %v1475 = vlaneseq
        %v1476 = vshrl.u32 %v1475, 7
        %v1477 = vsub.s32 0, %v1476
        %v1478 = vrot.slane %v1473, %v1477
        %v1496 = vunpack.c.l.b16 %v1457
        %v1497 = vunpack.c.l.b16 %v1458
        %v1498 = vunpack.c.l.b16 %v1459
        %v1499 = vunpack.c.l.b16 %v1460
        %v1500 = vunpack.c.l.b16 %v1461
        %v1501 = vunpack.c.l.b16 %v1462
        %v1502 = vunpack.c.l.b16 %v1463
        %v1503 = vunpack.c.l.b16 %v1464
        %v1504 = vunpack.c.l.b16 %v1465
        %v1505 = vunpack.c.l.b16 %v1466
        %v1506 = vunpack.c.l.b16 %v1467
        %v1507 = vunpack.c.l.b16 %v1468
        %v1508 = vunpack.c.l.b16 %v1469
        %v1509 = vunpack.c.l.b16 %v1470
        %v1510 = vunpack.c.l.b16 %v1471
        %v1511 = vunpack.c.l.b16 %v1472
        %v1512 = vpack.c.b16 %v1497, %v1496
        %v1513 = vpack.c.b16 %v1499, %v1498
        %v1514 = vpack.c.b16 %v1501, %v1500
        %v1515 = vpack.c.b16 %v1503, %v1502
        %v1516 = vpack.c.b16 %v1505, %v1504
        %v1517 = vpack.c.b16 %v1507, %v1506
        %v1518 = vpack.c.b16 %v1509, %v1508
        %v1519 = vpack.c.b16 %v1511, %v1510
        %1528 = vmatprep.subr.bf16.mxu0 0
        %1529 = vmatpush1.bf16.msra.mxu0 %v1512
        %1530 = vmatprep.subr.bf16.mxu0 0
        %1531 = vmatpush1.bf16.msra.mxu0 %v1513
        %1532 = vmatprep.subr.bf16.mxu0 0
        %1533 = vmatpush1.bf16.msra.mxu0 %v1514
        %1534 = vmatprep.subr.bf16.mxu0 0
        %1535 = vmatpush1.bf16.msra.mxu0 %v1515
        %1536 = vmatprep.subr.bf16.mxu0 0
        %1537 = vmatpush1.bf16.msra.mxu0 %v1516
        %1538 = vmatprep.subr.bf16.mxu0 0
        %1539 = vmatpush1.bf16.msra.mxu0 %v1517
        %1540 = vmatprep.subr.bf16.mxu0 0
        %1541 = vmatpush1.bf16.msra.mxu0 %v1518
        %1542 = vmatprep.subr.bf16.mxu0 0
        %1543 = vmatpush1.bf16.msra.mxu0 %v1519
        %1544 = vmatprep.subr.bf16.mxu0 0
        %1545 = vmatpush1.bf16.msra.mxu0 0
        %1546 = vmatprep.subr.bf16.mxu0 0
        %1547 = vmatpush1.bf16.msra.mxu0 0
        %1548 = vmatprep.subr.bf16.mxu0 0
        %1549 = vmatpush1.bf16.msra.mxu0 0
        %1550 = vmatprep.subr.bf16.mxu0 0
        %1551 = vmatpush1.bf16.msra.mxu0 0
        %1552 = vmatprep.subr.bf16.mxu0 0
        %1553 = vmatpush1.bf16.msra.mxu0 0
        %1554 = vmatprep.subr.bf16.mxu0 0
        %1555 = vmatpush1.bf16.msra.mxu0 0
        %1556 = vmatprep.subr.bf16.mxu0 0
        %1557 = vmatpush1.bf16.msra.mxu0 0
        %1558 = vmatprep.subr.bf16.mxu0 0
        %1559 = vmatpush1.bf16.msra.mxu0 0
        %1560 = vmatprep.mubr.bf16.mxu0 0
        %1561 = vmatmul.mubr.bf16.gmra.mrb[0].mxu0 %v1441
        %v1562 = vpop.f32.mrb[0].mxu0
        %v1563 = vadd.f32 %v1478, %v1562
        %v1564 = vpop.f32.mrb[0].mxu0
        %v1565 = vpop.f32.mrb[0].mxu0
        %v1566 = vadd.f32 %v1478, %v1565
        %v1567 = vpop.f32.mrb[0].mxu0
        %1568 = vmatprep.mubr.bf16.mxu0 0
        %1569 = vmatmul.mubr.bf16.gmra.mrb[0].mxu0 %v1442
        %v1570 = vpop.f32.mrb[0].mxu0
        %v1571 = vadd.f32 %v1478, %v1570
        %v1572 = vpop.f32.mrb[0].mxu0
        %v1573 = vpop.f32.mrb[0].mxu0
        %v1574 = vadd.f32 %v1478, %v1573
        %v1575 = vpop.f32.mrb[0].mxu0
        %1576 = vmatprep.mubr.bf16.mxu0 0
        %1577 = vmatmul.mubr.bf16.gmra.mrb[0].mxu0 %v1443
        %v1578 = vpop.f32.mrb[0].mxu0
        %v1579 = vadd.f32 %v1478, %v1578
        %v1580 = vpop.f32.mrb[0].mxu0
        %v1581 = vpop.f32.mrb[0].mxu0
        %v1582 = vadd.f32 %v1478, %v1581
        %v1583 = vpop.f32.mrb[0].mxu0
        %1584 = vmatprep.mubr.bf16.mxu0 0
        %1585 = vmatmul.mubr.bf16.gmra.mrb[0].mxu0 %v1444
        %v1586 = vpop.f32.mrb[0].mxu0
        %v1587 = vadd.f32 %v1478, %v1586
        %v1588 = vpop.f32.mrb[0].mxu0
        %v1589 = vpop.f32.mrb[0].mxu0
        %v1590 = vadd.f32 %v1478, %v1589
        %v1591 = vpop.f32.mrb[0].mxu0
        %1592 = vmatprep.mubr.bf16.mxu0 0
        %1593 = vmatmul.mubr.bf16.gmra.mrb[0].mxu0 %v1445
        %v1594 = vpop.f32.mrb[0].mxu0
        %v1595 = vadd.f32 %v1478, %v1594
        %v1596 = vpop.f32.mrb[0].mxu0
        %v1597 = vpop.f32.mrb[0].mxu0
        %v1598 = vadd.f32 %v1478, %v1597
        %v1599 = vpop.f32.mrb[0].mxu0
        %1600 = vmatprep.mubr.bf16.mxu0 0
        %1601 = vmatmul.mubr.bf16.gmra.mrb[0].mxu0 %v1446
        %v1602 = vpop.f32.mrb[0].mxu0
        %v1603 = vadd.f32 %v1478, %v1602
        %v1604 = vpop.f32.mrb[0].mxu0
        %v1605 = vpop.f32.mrb[0].mxu0
        %v1606 = vadd.f32 %v1478, %v1605
        %v1607 = vpop.f32.mrb[0].mxu0
        %1608 = vmatprep.mubr.bf16.mxu0 0
        %1609 = vmatmul.mubr.bf16.gmra.mrb[0].mxu0 %v1447
        %v1610 = vpop.f32.mrb[0].mxu0
        %v1611 = vadd.f32 %v1478, %v1610
        %v1612 = vpop.f32.mrb[0].mxu0
        %v1613 = vpop.f32.mrb[0].mxu0
        %v1614 = vadd.f32 %v1478, %v1613
        %v1615 = vpop.f32.mrb[0].mxu0
        %1616 = vmatprep.mubr.bf16.mxu0 0
        %1617 = vmatmul.mubr.bf16.gmra.mrb[0].mxu0 %v1448
        %v1618 = vpop.f32.mrb[0].mxu0
        %v1619 = vadd.f32 %v1478, %v1618
        %v1620 = vpop.f32.mrb[0].mxu0
        %v1621 = vpop.f32.mrb[0].mxu0
        %v1622 = vadd.f32 %v1478, %v1621
        %v1623 = vpop.f32.mrb[0].mxu0
        %1624 = vmatprep.mubr.bf16.mxu0 0
        %1625 = vmatmul.mubr.bf16.gmra.mrb[0].mxu0 %v1449
        %v1626 = vpop.f32.mrb[0].mxu0
        %v1627 = vadd.f32 %v1478, %v1626
        %v1628 = vpop.f32.mrb[0].mxu0
        %v1629 = vpop.f32.mrb[0].mxu0
        %v1630 = vadd.f32 %v1478, %v1629
        %v1631 = vpop.f32.mrb[0].mxu0
        %1632 = vmatprep.mubr.bf16.mxu0 0
        %1633 = vmatmul.mubr.bf16.gmra.mrb[0].mxu0 %v1450
        %v1634 = vpop.f32.mrb[0].mxu0
        %v1635 = vadd.f32 %v1478, %v1634
        %v1636 = vpop.f32.mrb[0].mxu0
        %v1637 = vpop.f32.mrb[0].mxu0
        %v1638 = vadd.f32 %v1478, %v1637
        %v1639 = vpop.f32.mrb[0].mxu0
        %1640 = vmatprep.mubr.bf16.mxu0 0
        %1641 = vmatmul.mubr.bf16.gmra.mrb[0].mxu0 %v1451
        %v1642 = vpop.f32.mrb[0].mxu0
        %v1643 = vadd.f32 %v1478, %v1642
        %v1644 = vpop.f32.mrb[0].mxu0
        %v1645 = vpop.f32.mrb[0].mxu0
        %v1646 = vadd.f32 %v1478, %v1645
        %v1647 = vpop.f32.mrb[0].mxu0
        %1648 = vmatprep.mubr.bf16.mxu0 0
        %1649 = vmatmul.mubr.bf16.gmra.mrb[0].mxu0 %v1452
        %v1650 = vpop.f32.mrb[0].mxu0
        %v1651 = vadd.f32 %v1478, %v1650
        %v1652 = vpop.f32.mrb[0].mxu0
        %v1653 = vpop.f32.mrb[0].mxu0
        %v1654 = vadd.f32 %v1478, %v1653
        %v1655 = vpop.f32.mrb[0].mxu0
        %1656 = vmatprep.mubr.bf16.mxu0 0
        %1657 = vmatmul.mubr.bf16.gmra.mrb[0].mxu0 %v1453
        %v1658 = vpop.f32.mrb[0].mxu0
        %v1659 = vadd.f32 %v1478, %v1658
        %v1660 = vpop.f32.mrb[0].mxu0
        %v1661 = vpop.f32.mrb[0].mxu0
        %v1662 = vadd.f32 %v1478, %v1661
        %v1663 = vpop.f32.mrb[0].mxu0
        %1664 = vmatprep.mubr.bf16.mxu0 0
        %1665 = vmatmul.mubr.bf16.gmra.mrb[0].mxu0 %v1454
        %v1666 = vpop.f32.mrb[0].mxu0
        %v1667 = vadd.f32 %v1478, %v1666
        %v1668 = vpop.f32.mrb[0].mxu0
        %v1669 = vpop.f32.mrb[0].mxu0
        %v1670 = vadd.f32 %v1478, %v1669
        %v1671 = vpop.f32.mrb[0].mxu0
        %1672 = vmatprep.mubr.bf16.mxu0 0
        %1673 = vmatmul.mubr.bf16.gmra.mrb[0].mxu0 %v1455
        %v1674 = vpop.f32.mrb[0].mxu0
        %v1675 = vadd.f32 %v1478, %v1674
        %v1676 = vpop.f32.mrb[0].mxu0
        %v1677 = vpop.f32.mrb[0].mxu0
        %v1678 = vadd.f32 %v1478, %v1677
        %v1679 = vpop.f32.mrb[0].mxu0
        %1680 = vmatprep.mubr.bf16.mxu0 0
        %1681 = vmatmul.mubr.bf16.gmra.mrb[0].mxu0 %v1456
        %v1682 = vpop.f32.mrb[0].mxu0
        %v1683 = vadd.f32 %v1478, %v1682
        %v1684 = vpop.f32.mrb[0].mxu0
        %v1685 = vpop.f32.mrb[0].mxu0
        %v1686 = vadd.f32 %v1478, %v1685
        %v1687 = vpop.f32.mrb[0].mxu0
        %1688 = vdwg.mxu0
        %v1689 = vlaneseq
        %v1690 = vshrl.u32 %v1689, 7
        %v1691 = vadd.s32 %v1690, 8
        %v1692 = vadd.s32 %v1690, 16
        %v1693 = vadd.s32 %v1690, 24
        %v1694 = vadd.s32 %v1690, 32
        %v1695 = vadd.s32 %v1690, 40
        %v1696 = vadd.s32 %v1690, 48
        %v1697 = vadd.s32 %v1690, 56
        %v1698 = vadd.s32 %v1690, 64
        %v1699 = vadd.s32 %v1690, 72
        %v1700 = vadd.s32 %v1690, 80
        %v1701 = vadd.s32 %v1690, 88
        %v1702 = vadd.s32 %v1690, 96
        %v1703 = vadd.s32 %v1690, 104
        %v1704 = vadd.s32 %v1690, 112
        %v1705 = vadd.s32 %v1690, 120
        %v1706 = vadd.s32 %v1690, 128
        %v1707 = vadd.s32 %v1690, 136
        %v1708 = vadd.s32 %v1690, 144
        %v1709 = vadd.s32 %v1690, 152
        %v1710 = vadd.s32 %v1690, 160
        %v1711 = vadd.s32 %v1690, 168
        %v1712 = vadd.s32 %v1690, 176
        %v1713 = vadd.s32 %v1690, 184
        %v1714 = vadd.s32 %v1690, 192
        %v1715 = vadd.s32 %v1690, 200
        %v1716 = vadd.s32 %v1690, 208
        %v1717 = vadd.s32 %v1690, 216
        %v1718 = vadd.s32 %v1690, 224
        %v1719 = vadd.s32 %v1690, 232
        %v1720 = vadd.s32 %v1690, 240
        %v1721 = vadd.s32 %v1690, 248
        %v1722 = vld [vmem:[%s424] sm:$0x3]
        %v1723 = vlaneseq
        %v1724 = vshrl.u32 %v1723, 7
        %v1725 = vsub.s32 0, %v1724
        %v1726 = vrot.slane %v1722, %v1725
        %v1727 = vlaneseq
        %v1728 = vshrl.u32 %v1727, 7
        %v1729 = vsub.s32 1, %v1728
        %v1730 = vrot.slane %v1722, %v1729
        %vm1731 = vcmp.eq.s32.totalorder %v1690, %v1726
        %vm1732 = vcmp.eq.s32.totalorder %v1690, %v1730
        %vm1733 = vcmp.eq.s32.totalorder %v1691, %v1726
        %vm1734 = vcmp.eq.s32.totalorder %v1691, %v1730
        %vm1735 = vcmp.eq.s32.totalorder %v1692, %v1726
        %vm1736 = vcmp.eq.s32.totalorder %v1692, %v1730
        %vm1737 = vcmp.eq.s32.totalorder %v1693, %v1726
        %vm1738 = vcmp.eq.s32.totalorder %v1693, %v1730
        %vm1739 = vcmp.eq.s32.totalorder %v1694, %v1726
        %vm1740 = vcmp.eq.s32.totalorder %v1694, %v1730
        %vm1741 = vcmp.eq.s32.totalorder %v1695, %v1726
        %vm1742 = vcmp.eq.s32.totalorder %v1695, %v1730
        %vm1743 = vcmp.eq.s32.totalorder %v1696, %v1726
        %vm1744 = vcmp.eq.s32.totalorder %v1696, %v1730
        %vm1745 = vcmp.eq.s32.totalorder %v1697, %v1726
        %vm1746 = vcmp.eq.s32.totalorder %v1697, %v1730
        %vm1747 = vcmp.eq.s32.totalorder %v1698, %v1726
        %vm1748 = vcmp.eq.s32.totalorder %v1698, %v1730
        %vm1749 = vcmp.eq.s32.totalorder %v1699, %v1726
        %vm1750 = vcmp.eq.s32.totalorder %v1699, %v1730
        %vm1751 = vcmp.eq.s32.totalorder %v1700, %v1726
        %vm1752 = vcmp.eq.s32.totalorder %v1700, %v1730
        %vm1753 = vcmp.eq.s32.totalorder %v1701, %v1726
        %vm1754 = vcmp.eq.s32.totalorder %v1701, %v1730
        %vm1755 = vcmp.eq.s32.totalorder %v1702, %v1726
        %vm1756 = vcmp.eq.s32.totalorder %v1702, %v1730
        %vm1757 = vcmp.eq.s32.totalorder %v1703, %v1726
        %vm1758 = vcmp.eq.s32.totalorder %v1703, %v1730
        %vm1759 = vcmp.eq.s32.totalorder %v1704, %v1726
        %vm1760 = vcmp.eq.s32.totalorder %v1704, %v1730
        %vm1761 = vcmp.eq.s32.totalorder %v1705, %v1726
        %vm1762 = vcmp.eq.s32.totalorder %v1705, %v1730
        %vm1763 = vcmp.eq.s32.totalorder %v1706, %v1726
        %vm1764 = vcmp.eq.s32.totalorder %v1706, %v1730
        %vm1765 = vcmp.eq.s32.totalorder %v1707, %v1726
        %vm1766 = vcmp.eq.s32.totalorder %v1707, %v1730
        %vm1767 = vcmp.eq.s32.totalorder %v1708, %v1726
        %vm1768 = vcmp.eq.s32.totalorder %v1708, %v1730
        %vm1769 = vcmp.eq.s32.totalorder %v1709, %v1726
        %vm1770 = vcmp.eq.s32.totalorder %v1709, %v1730
        %vm1771 = vcmp.eq.s32.totalorder %v1710, %v1726
        %vm1772 = vcmp.eq.s32.totalorder %v1710, %v1730
        %vm1773 = vcmp.eq.s32.totalorder %v1711, %v1726
        %vm1774 = vcmp.eq.s32.totalorder %v1711, %v1730
        %vm1775 = vcmp.eq.s32.totalorder %v1712, %v1726
        %vm1776 = vcmp.eq.s32.totalorder %v1712, %v1730
        %vm1777 = vcmp.eq.s32.totalorder %v1713, %v1726
        %vm1778 = vcmp.eq.s32.totalorder %v1713, %v1730
        %vm1779 = vcmp.eq.s32.totalorder %v1714, %v1726
        %vm1780 = vcmp.eq.s32.totalorder %v1714, %v1730
        %vm1781 = vcmp.eq.s32.totalorder %v1715, %v1726
        %vm1782 = vcmp.eq.s32.totalorder %v1715, %v1730
        %vm1783 = vcmp.eq.s32.totalorder %v1716, %v1726
        %vm1784 = vcmp.eq.s32.totalorder %v1716, %v1730
        %vm1785 = vcmp.eq.s32.totalorder %v1717, %v1726
        %vm1786 = vcmp.eq.s32.totalorder %v1717, %v1730
        %vm1787 = vcmp.eq.s32.totalorder %v1718, %v1726
        %vm1788 = vcmp.eq.s32.totalorder %v1718, %v1730
        %vm1789 = vcmp.eq.s32.totalorder %v1719, %v1726
        %vm1790 = vcmp.eq.s32.totalorder %v1719, %v1730
        %vm1791 = vcmp.eq.s32.totalorder %v1720, %v1726
        %vm1792 = vcmp.eq.s32.totalorder %v1720, %v1730
        %vm1793 = vcmp.eq.s32.totalorder %v1721, %v1726
        %vm1794 = vcmp.eq.s32.totalorder %v1721, %v1730
        %v1795 = vsel %vm1731, 1, 0
        %v1796 = vsel %vm1732, 1, 0
        %v1797 = vsel %vm1733, 1, 0
        %v1798 = vsel %vm1734, 1, 0
        %v1799 = vsel %vm1735, 1, 0
        %v1800 = vsel %vm1736, 1, 0
        %v1801 = vsel %vm1737, 1, 0
        %v1802 = vsel %vm1738, 1, 0
        %v1803 = vsel %vm1739, 1, 0
        %v1804 = vsel %vm1740, 1, 0
        %v1805 = vsel %vm1741, 1, 0
        %v1806 = vsel %vm1742, 1, 0
        %v1807 = vsel %vm1743, 1, 0
        %v1808 = vsel %vm1744, 1, 0
        %v1809 = vsel %vm1745, 1, 0
        %v1810 = vsel %vm1746, 1, 0
        %v1811 = vsel %vm1747, 1, 0
        %v1812 = vsel %vm1748, 1, 0
        %v1813 = vsel %vm1749, 1, 0
        %v1814 = vsel %vm1750, 1, 0
        %v1815 = vsel %vm1751, 1, 0
        %v1816 = vsel %vm1752, 1, 0
        %v1817 = vsel %vm1753, 1, 0
        %v1818 = vsel %vm1754, 1, 0
        %v1819 = vsel %vm1755, 1, 0
        %v1820 = vsel %vm1756, 1, 0
        %v1821 = vsel %vm1757, 1, 0
        %v1822 = vsel %vm1758, 1, 0
        %v1823 = vsel %vm1759, 1, 0
        %v1824 = vsel %vm1760, 1, 0
        %v1825 = vsel %vm1761, 1, 0
        %v1826 = vsel %vm1762, 1, 0
        %v1827 = vsel %vm1763, 1, 0
        %v1828 = vsel %vm1764, 1, 0
        %v1829 = vsel %vm1765, 1, 0
        %v1830 = vsel %vm1766, 1, 0
        %v1831 = vsel %vm1767, 1, 0
        %v1832 = vsel %vm1768, 1, 0
        %v1833 = vsel %vm1769, 1, 0
        %v1834 = vsel %vm1770, 1, 0
        %v1835 = vsel %vm1771, 1, 0
        %v1836 = vsel %vm1772, 1, 0
        %v1837 = vsel %vm1773, 1, 0
        %v1838 = vsel %vm1774, 1, 0
        %v1839 = vsel %vm1775, 1, 0
        %v1840 = vsel %vm1776, 1, 0
        %v1841 = vsel %vm1777, 1, 0
        %v1842 = vsel %vm1778, 1, 0
        %v1843 = vsel %vm1779, 1, 0
        %v1844 = vsel %vm1780, 1, 0
        %v1845 = vsel %vm1781, 1, 0
        %v1846 = vsel %vm1782, 1, 0
        %v1847 = vsel %vm1783, 1, 0
        %v1848 = vsel %vm1784, 1, 0
        %v1849 = vsel %vm1785, 1, 0
        %v1850 = vsel %vm1786, 1, 0
        %v1851 = vsel %vm1787, 1, 0
        %v1852 = vsel %vm1788, 1, 0
        %v1853 = vsel %vm1789, 1, 0
        %v1854 = vsel %vm1790, 1, 0
        %v1855 = vsel %vm1791, 1, 0
        %v1856 = vsel %vm1792, 1, 0
        %v1857 = vsel %vm1793, 1, 0
        %v1858 = vsel %vm1794, 1, 0
        %v1859 = vcvt.s32.f32 %v1795
        %v1860 = vcvt.s32.f32 %v1796
        %v1861 = vcvt.s32.f32 %v1797
        %v1862 = vcvt.s32.f32 %v1798
        %v1863 = vcvt.s32.f32 %v1799
        %v1864 = vcvt.s32.f32 %v1800
        %v1865 = vcvt.s32.f32 %v1801
        %v1866 = vcvt.s32.f32 %v1802
        %v1867 = vcvt.s32.f32 %v1803
        %v1868 = vcvt.s32.f32 %v1804
        %v1869 = vcvt.s32.f32 %v1805
        %v1870 = vcvt.s32.f32 %v1806
        %v1871 = vcvt.s32.f32 %v1807
        %v1872 = vcvt.s32.f32 %v1808
        %v1873 = vcvt.s32.f32 %v1809
        %v1874 = vcvt.s32.f32 %v1810
        %v1875 = vcvt.s32.f32 %v1811
        %v1876 = vcvt.s32.f32 %v1812
        %v1877 = vcvt.s32.f32 %v1813
        %v1878 = vcvt.s32.f32 %v1814
        %v1879 = vcvt.s32.f32 %v1815
        %v1880 = vcvt.s32.f32 %v1816
        %v1881 = vcvt.s32.f32 %v1817
        %v1882 = vcvt.s32.f32 %v1818
        %v1883 = vcvt.s32.f32 %v1819
        %v1884 = vcvt.s32.f32 %v1820
        %v1885 = vcvt.s32.f32 %v1821
        %v1886 = vcvt.s32.f32 %v1822
        %v1887 = vcvt.s32.f32 %v1823
        %v1888 = vcvt.s32.f32 %v1824
        %v1889 = vcvt.s32.f32 %v1825
        %v1890 = vcvt.s32.f32 %v1826
        %v1891 = vcvt.s32.f32 %v1827
        %v1892 = vcvt.s32.f32 %v1828
        %v1893 = vcvt.s32.f32 %v1829
        %v1894 = vcvt.s32.f32 %v1830
        %v1895 = vcvt.s32.f32 %v1831
        %v1896 = vcvt.s32.f32 %v1832
        %v1897 = vcvt.s32.f32 %v1833
        %v1898 = vcvt.s32.f32 %v1834
        %v1899 = vcvt.s32.f32 %v1835
        %v1900 = vcvt.s32.f32 %v1836
        %v1901 = vcvt.s32.f32 %v1837
        %v1902 = vcvt.s32.f32 %v1838
        %v1903 = vcvt.s32.f32 %v1839
        %v1904 = vcvt.s32.f32 %v1840
        %v1905 = vcvt.s32.f32 %v1841
        %v1906 = vcvt.s32.f32 %v1842
        %v1907 = vcvt.s32.f32 %v1843
        %v1908 = vcvt.s32.f32 %v1844
        %v1909 = vcvt.s32.f32 %v1845
        %v1910 = vcvt.s32.f32 %v1846
        %v1911 = vcvt.s32.f32 %v1847
        %v1912 = vcvt.s32.f32 %v1848
        %v1913 = vcvt.s32.f32 %v1849
        %v1914 = vcvt.s32.f32 %v1850
        %v1915 = vcvt.s32.f32 %v1851
        %v1916 = vcvt.s32.f32 %v1852
        %v1917 = vcvt.s32.f32 %v1853
        %v1918 = vcvt.s32.f32 %v1854
        %v1919 = vcvt.s32.f32 %v1855
        %v1920 = vcvt.s32.f32 %v1856
        %v1921 = vcvt.s32.f32 %v1857
        %v1922 = vcvt.s32.f32 %v1858
        %v1923 = vpack.c.bf16 %v1861, %v1859
        %v1924 = vpack.c.bf16 %v1862, %v1860
        %v1925 = vpack.c.bf16 %v1865, %v1863
        %v1926 = vpack.c.bf16 %v1866, %v1864
        %v1927 = vpack.c.bf16 %v1869, %v1867
        %v1928 = vpack.c.bf16 %v1870, %v1868
        %v1929 = vpack.c.bf16 %v1873, %v1871
        %v1930 = vpack.c.bf16 %v1874, %v1872
        %v1931 = vpack.c.bf16 %v1877, %v1875
        %v1932 = vpack.c.bf16 %v1878, %v1876
        %v1933 = vpack.c.bf16 %v1881, %v1879
        %v1934 = vpack.c.bf16 %v1882, %v1880
        %v1935 = vpack.c.bf16 %v1885, %v1883
        %v1936 = vpack.c.bf16 %v1886, %v1884
        %v1937 = vpack.c.bf16 %v1889, %v1887
        %v1938 = vpack.c.bf16 %v1890, %v1888
        %v1939 = vpack.c.bf16 %v1893, %v1891
        %v1940 = vpack.c.bf16 %v1894, %v1892
        %v1941 = vpack.c.bf16 %v1897, %v1895
        %v1942 = vpack.c.bf16 %v1898, %v1896
        %v1943 = vpack.c.bf16 %v1901, %v1899
        %v1944 = vpack.c.bf16 %v1902, %v1900
        %v1945 = vpack.c.bf16 %v1905, %v1903
        %v1946 = vpack.c.bf16 %v1906, %v1904
        %v1947 = vpack.c.bf16 %v1909, %v1907
        %v1948 = vpack.c.bf16 %v1910, %v1908
        %v1949 = vpack.c.bf16 %v1913, %v1911
        %v1950 = vpack.c.bf16 %v1914, %v1912
        %v1951 = vpack.c.bf16 %v1917, %v1915
        %v1952 = vpack.c.bf16 %v1918, %v1916
        %v1953 = vpack.c.bf16 %v1921, %v1919
        %v1954 = vpack.c.bf16 %v1922, %v1920
        %v1955 = vld [vmem:[%s433] sm:$0x3]
        %v1956 = vlaneseq
        %v1957 = vshrl.u32 %v1956, 7
        %v1958 = vsub.s32 0, %v1957
        %v1959 = vrot.slane %v1955, %v1958
        %v1960 = vlaneseq
        %v1961 = vshrl.u32 %v1960, 7
        %v1962 = vsub.s32 1, %v1961
        %v1963 = vrot.slane %v1955, %v1962
        %vm1964 = vcmp.eq.s32.totalorder %v1690, %v1959
        %vm1965 = vcmp.eq.s32.totalorder %v1690, %v1963
        %vm1966 = vcmp.eq.s32.totalorder %v1691, %v1959
        %vm1967 = vcmp.eq.s32.totalorder %v1691, %v1963
        %vm1968 = vcmp.eq.s32.totalorder %v1692, %v1959
        %vm1969 = vcmp.eq.s32.totalorder %v1692, %v1963
        %vm1970 = vcmp.eq.s32.totalorder %v1693, %v1959
        %vm1971 = vcmp.eq.s32.totalorder %v1693, %v1963
        %vm1972 = vcmp.eq.s32.totalorder %v1694, %v1959
        %vm1973 = vcmp.eq.s32.totalorder %v1694, %v1963
        %vm1974 = vcmp.eq.s32.totalorder %v1695, %v1959
        %vm1975 = vcmp.eq.s32.totalorder %v1695, %v1963
        %vm1976 = vcmp.eq.s32.totalorder %v1696, %v1959
        %vm1977 = vcmp.eq.s32.totalorder %v1696, %v1963
        %vm1978 = vcmp.eq.s32.totalorder %v1697, %v1959
        %vm1979 = vcmp.eq.s32.totalorder %v1697, %v1963
        %vm1980 = vcmp.eq.s32.totalorder %v1698, %v1959
        %vm1981 = vcmp.eq.s32.totalorder %v1698, %v1963
        %vm1982 = vcmp.eq.s32.totalorder %v1699, %v1959
        %vm1983 = vcmp.eq.s32.totalorder %v1699, %v1963
        %vm1984 = vcmp.eq.s32.totalorder %v1700, %v1959
        %vm1985 = vcmp.eq.s32.totalorder %v1700, %v1963
        %vm1986 = vcmp.eq.s32.totalorder %v1701, %v1959
        %vm1987 = vcmp.eq.s32.totalorder %v1701, %v1963
        %vm1988 = vcmp.eq.s32.totalorder %v1702, %v1959
        %vm1989 = vcmp.eq.s32.totalorder %v1702, %v1963
        %vm1990 = vcmp.eq.s32.totalorder %v1703, %v1959
        %vm1991 = vcmp.eq.s32.totalorder %v1703, %v1963
        %vm1992 = vcmp.eq.s32.totalorder %v1704, %v1959
        %vm1993 = vcmp.eq.s32.totalorder %v1704, %v1963
        %vm1994 = vcmp.eq.s32.totalorder %v1705, %v1959
        %vm1995 = vcmp.eq.s32.totalorder %v1705, %v1963
        %vm1996 = vcmp.eq.s32.totalorder %v1706, %v1959
        %vm1997 = vcmp.eq.s32.totalorder %v1706, %v1963
        %vm1998 = vcmp.eq.s32.totalorder %v1707, %v1959
        %vm1999 = vcmp.eq.s32.totalorder %v1707, %v1963
        %vm2000 = vcmp.eq.s32.totalorder %v1708, %v1959
        %vm2001 = vcmp.eq.s32.totalorder %v1708, %v1963
        %vm2002 = vcmp.eq.s32.totalorder %v1709, %v1959
        %vm2003 = vcmp.eq.s32.totalorder %v1709, %v1963
        %vm2004 = vcmp.eq.s32.totalorder %v1710, %v1959
        %vm2005 = vcmp.eq.s32.totalorder %v1710, %v1963
        %vm2006 = vcmp.eq.s32.totalorder %v1711, %v1959
        %vm2007 = vcmp.eq.s32.totalorder %v1711, %v1963
        %vm2008 = vcmp.eq.s32.totalorder %v1712, %v1959
        %vm2009 = vcmp.eq.s32.totalorder %v1712, %v1963
        %vm2010 = vcmp.eq.s32.totalorder %v1713, %v1959
        %vm2011 = vcmp.eq.s32.totalorder %v1713, %v1963
        %vm2012 = vcmp.eq.s32.totalorder %v1714, %v1959
        %vm2013 = vcmp.eq.s32.totalorder %v1714, %v1963
        %vm2014 = vcmp.eq.s32.totalorder %v1715, %v1959
        %vm2015 = vcmp.eq.s32.totalorder %v1715, %v1963
        %vm2016 = vcmp.eq.s32.totalorder %v1716, %v1959
        %vm2017 = vcmp.eq.s32.totalorder %v1716, %v1963
        %vm2018 = vcmp.eq.s32.totalorder %v1717, %v1959
        %vm2019 = vcmp.eq.s32.totalorder %v1717, %v1963
        %vm2020 = vcmp.eq.s32.totalorder %v1718, %v1959
        %vm2021 = vcmp.eq.s32.totalorder %v1718, %v1963
        %vm2022 = vcmp.eq.s32.totalorder %v1719, %v1959
        %vm2023 = vcmp.eq.s32.totalorder %v1719, %v1963
        %vm2024 = vcmp.eq.s32.totalorder %v1720, %v1959
        %vm2025 = vcmp.eq.s32.totalorder %v1720, %v1963
        %vm2026 = vcmp.eq.s32.totalorder %v1721, %v1959
        %vm2027 = vcmp.eq.s32.totalorder %v1721, %v1963
        %v2028 = vsel %vm1964, 1, 0
        %v2029 = vsel %vm1965, 1, 0
        %v2030 = vsel %vm1966, 1, 0
        %v2031 = vsel %vm1967, 1, 0
        %v2032 = vsel %vm1968, 1, 0
        %v2033 = vsel %vm1969, 1, 0
        %v2034 = vsel %vm1970, 1, 0
        %v2035 = vsel %vm1971, 1, 0
        %v2036 = vsel %vm1972, 1, 0
        %v2037 = vsel %vm1973, 1, 0
        %v2038 = vsel %vm1974, 1, 0
        %v2039 = vsel %vm1975, 1, 0
        %v2040 = vsel %vm1976, 1, 0
        %v2041 = vsel %vm1977, 1, 0
        %v2042 = vsel %vm1978, 1, 0
        %v2043 = vsel %vm1979, 1, 0
        %v2044 = vsel %vm1980, 1, 0
        %v2045 = vsel %vm1981, 1, 0
        %v2046 = vsel %vm1982, 1, 0
        %v2047 = vsel %vm1983, 1, 0
        %v2048 = vsel %vm1984, 1, 0
        %v2049 = vsel %vm1985, 1, 0
        %v2050 = vsel %vm1986, 1, 0
        %v2051 = vsel %vm1987, 1, 0
        %v2052 = vsel %vm1988, 1, 0
        %v2053 = vsel %vm1989, 1, 0
        %v2054 = vsel %vm1990, 1, 0
        %v2055 = vsel %vm1991, 1, 0
        %v2056 = vsel %vm1992, 1, 0
        %v2057 = vsel %vm1993, 1, 0
        %v2058 = vsel %vm1994, 1, 0
        %v2059 = vsel %vm1995, 1, 0
        %v2060 = vsel %vm1996, 1, 0
        %v2061 = vsel %vm1997, 1, 0
        %v2062 = vsel %vm1998, 1, 0
        %v2063 = vsel %vm1999, 1, 0
        %v2064 = vsel %vm2000, 1, 0
        %v2065 = vsel %vm2001, 1, 0
        %v2066 = vsel %vm2002, 1, 0
        %v2067 = vsel %vm2003, 1, 0
        %v2068 = vsel %vm2004, 1, 0
        %v2069 = vsel %vm2005, 1, 0
        %v2070 = vsel %vm2006, 1, 0
        %v2071 = vsel %vm2007, 1, 0
        %v2072 = vsel %vm2008, 1, 0
        %v2073 = vsel %vm2009, 1, 0
        %v2074 = vsel %vm2010, 1, 0
        %v2075 = vsel %vm2011, 1, 0
        %v2076 = vsel %vm2012, 1, 0
        %v2077 = vsel %vm2013, 1, 0
        %v2078 = vsel %vm2014, 1, 0
        %v2079 = vsel %vm2015, 1, 0
        %v2080 = vsel %vm2016, 1, 0
        %v2081 = vsel %vm2017, 1, 0
        %v2082 = vsel %vm2018, 1, 0
        %v2083 = vsel %vm2019, 1, 0
        %v2084 = vsel %vm2020, 1, 0
        %v2085 = vsel %vm2021, 1, 0
        %v2086 = vsel %vm2022, 1, 0
        %v2087 = vsel %vm2023, 1, 0
        %v2088 = vsel %vm2024, 1, 0
        %v2089 = vsel %vm2025, 1, 0
        %v2090 = vsel %vm2026, 1, 0
        %v2091 = vsel %vm2027, 1, 0
        %v2092 = vcvt.s32.f32 %v2028
        %v2093 = vcvt.s32.f32 %v2029
        %v2094 = vcvt.s32.f32 %v2030
        %v2095 = vcvt.s32.f32 %v2031
        %v2096 = vcvt.s32.f32 %v2032
        %v2097 = vcvt.s32.f32 %v2033
        %v2098 = vcvt.s32.f32 %v2034
        %v2099 = vcvt.s32.f32 %v2035
        %v2100 = vcvt.s32.f32 %v2036
        %v2101 = vcvt.s32.f32 %v2037
        %v2102 = vcvt.s32.f32 %v2038
        %v2103 = vcvt.s32.f32 %v2039
        %v2104 = vcvt.s32.f32 %v2040
        %v2105 = vcvt.s32.f32 %v2041
        %v2106 = vcvt.s32.f32 %v2042
        %v2107 = vcvt.s32.f32 %v2043
        %v2108 = vcvt.s32.f32 %v2044
        %v2109 = vcvt.s32.f32 %v2045
        %v2110 = vcvt.s32.f32 %v2046
        %v2111 = vcvt.s32.f32 %v2047
        %v2112 = vcvt.s32.f32 %v2048
        %v2113 = vcvt.s32.f32 %v2049
        %v2114 = vcvt.s32.f32 %v2050
        %v2115 = vcvt.s32.f32 %v2051
        %v2116 = vcvt.s32.f32 %v2052
        %v2117 = vcvt.s32.f32 %v2053
        %v2118 = vcvt.s32.f32 %v2054
        %v2119 = vcvt.s32.f32 %v2055
        %v2120 = vcvt.s32.f32 %v2056
        %v2121 = vcvt.s32.f32 %v2057
        %v2122 = vcvt.s32.f32 %v2058
        %v2123 = vcvt.s32.f32 %v2059
        %v2124 = vcvt.s32.f32 %v2060
        %v2125 = vcvt.s32.f32 %v2061
        %v2126 = vcvt.s32.f32 %v2062
        %v2127 = vcvt.s32.f32 %v2063
        %v2128 = vcvt.s32.f32 %v2064
        %v2129 = vcvt.s32.f32 %v2065
        %v2130 = vcvt.s32.f32 %v2066
        %v2131 = vcvt.s32.f32 %v2067
        %v2132 = vcvt.s32.f32 %v2068
        %v2133 = vcvt.s32.f32 %v2069
        %v2134 = vcvt.s32.f32 %v2070
        %v2135 = vcvt.s32.f32 %v2071
        %v2136 = vcvt.s32.f32 %v2072
        %v2137 = vcvt.s32.f32 %v2073
        %v2138 = vcvt.s32.f32 %v2074
        %v2139 = vcvt.s32.f32 %v2075
        %v2140 = vcvt.s32.f32 %v2076
        %v2141 = vcvt.s32.f32 %v2077
        %v2142 = vcvt.s32.f32 %v2078
        %v2143 = vcvt.s32.f32 %v2079
        %v2144 = vcvt.s32.f32 %v2080
        %v2145 = vcvt.s32.f32 %v2081
        %v2146 = vcvt.s32.f32 %v2082
        %v2147 = vcvt.s32.f32 %v2083
        %v2148 = vcvt.s32.f32 %v2084
        %v2149 = vcvt.s32.f32 %v2085
        %v2150 = vcvt.s32.f32 %v2086
        %v2151 = vcvt.s32.f32 %v2087
        %v2152 = vcvt.s32.f32 %v2088
        %v2153 = vcvt.s32.f32 %v2089
        %v2154 = vcvt.s32.f32 %v2090
        %v2155 = vcvt.s32.f32 %v2091
        %v2156 = vpack.c.bf16 %v2094, %v2092
        %v2157 = vpack.c.bf16 %v2095, %v2093
        %v2158 = vpack.c.bf16 %v2098, %v2096
        %v2159 = vpack.c.bf16 %v2099, %v2097
        %v2160 = vpack.c.bf16 %v2102, %v2100
        %v2161 = vpack.c.bf16 %v2103, %v2101
        %v2162 = vpack.c.bf16 %v2106, %v2104
        %v2163 = vpack.c.bf16 %v2107, %v2105
        %v2164 = vpack.c.bf16 %v2110, %v2108
        %v2165 = vpack.c.bf16 %v2111, %v2109
        %v2166 = vpack.c.bf16 %v2114, %v2112
        %v2167 = vpack.c.bf16 %v2115, %v2113
        %v2168 = vpack.c.bf16 %v2118, %v2116
        %v2169 = vpack.c.bf16 %v2119, %v2117
        %v2170 = vpack.c.bf16 %v2122, %v2120
        %v2171 = vpack.c.bf16 %v2123, %v2121
        %v2172 = vpack.c.bf16 %v2126, %v2124
        %v2173 = vpack.c.bf16 %v2127, %v2125
        %v2174 = vpack.c.bf16 %v2130, %v2128
        %v2175 = vpack.c.bf16 %v2131, %v2129
        %v2176 = vpack.c.bf16 %v2134, %v2132
        %v2177 = vpack.c.bf16 %v2135, %v2133
        %v2178 = vpack.c.bf16 %v2138, %v2136
        %v2179 = vpack.c.bf16 %v2139, %v2137
        %v2180 = vpack.c.bf16 %v2142, %v2140
        %v2181 = vpack.c.bf16 %v2143, %v2141
        %v2182 = vpack.c.bf16 %v2146, %v2144
        %v2183 = vpack.c.bf16 %v2147, %v2145
        %v2184 = vpack.c.bf16 %v2150, %v2148
        %v2185 = vpack.c.bf16 %v2151, %v2149
        %v2186 = vpack.c.bf16 %v2154, %v2152
        %v2187 = vpack.c.bf16 %v2155, %v2153
        %2188 = vxpose.xlu0.c.b16.start [1/8] %v2156, 128
        %2189 = vxpose.xlu0.c.b16.cont [2/8] %v2158, 128
        %2190 = vxpose.xlu0.c.b16.cont [3/8] %v2160, 128
        %2191 = vxpose.xlu0.c.b16.cont [4/8] %v2162, 128
        %2192 = vxpose.xlu0.c.b16.cont [5/8] %v2164, 128
        %2193 = vxpose.xlu0.c.b16.cont [6/8] %v2166, 128
        %2194 = vxpose.xlu0.c.b16.cont [7/8] %v2168, 128
        %2195 = vxpose.xlu0.c.b16.end [8/8] %v2170, 128
        %v2196 = vpop.trf.xlu0
        %v2197 = vpop.trf.xlu0
        %v2198 = vpop.trf.xlu0
        %v2199 = vpop.trf.xlu0
        %v2200 = vpop.trf.xlu0
        %v2201 = vpop.trf.xlu0
        %v2202 = vpop.trf.xlu0
        %v2203 = vpop.trf.xlu0
        %2204 = vxpose.xlu0.c.b16.start [1/8] %v2157, 128
        %2205 = vxpose.xlu0.c.b16.cont [2/8] %v2159, 128
        %2206 = vxpose.xlu0.c.b16.cont [3/8] %v2161, 128
        %2207 = vxpose.xlu0.c.b16.cont [4/8] %v2163, 128
        %2208 = vxpose.xlu0.c.b16.cont [5/8] %v2165, 128
        %2209 = vxpose.xlu0.c.b16.cont [6/8] %v2167, 128
        %2210 = vxpose.xlu0.c.b16.cont [7/8] %v2169, 128
        %2211 = vxpose.xlu0.c.b16.end [8/8] %v2171, 128
        %v2212 = vpop.trf.xlu0
        %v2213 = vpop.trf.xlu0
        %v2214 = vpop.trf.xlu0
        %v2215 = vpop.trf.xlu0
        %v2216 = vpop.trf.xlu0
        %v2217 = vpop.trf.xlu0
        %v2218 = vpop.trf.xlu0
        %v2219 = vpop.trf.xlu0
        %2220 = vxpose.xlu0.c.b16.start [1/8] %v2172, 128
        %2221 = vxpose.xlu0.c.b16.cont [2/8] %v2174, 128
        %2222 = vxpose.xlu0.c.b16.cont [3/8] %v2176, 128
        %2223 = vxpose.xlu0.c.b16.cont [4/8] %v2178, 128
        %2224 = vxpose.xlu0.c.b16.cont [5/8] %v2180, 128
        %2225 = vxpose.xlu0.c.b16.cont [6/8] %v2182, 128
        %2226 = vxpose.xlu0.c.b16.cont [7/8] %v2184, 128
        %2227 = vxpose.xlu0.c.b16.end [8/8] %v2186, 128
        %v2228 = vpop.trf.xlu0
        %v2229 = vpop.trf.xlu0
        %v2230 = vpop.trf.xlu0
        %v2231 = vpop.trf.xlu0
        %v2232 = vpop.trf.xlu0
        %v2233 = vpop.trf.xlu0
        %v2234 = vpop.trf.xlu0
        %v2235 = vpop.trf.xlu0
        %2236 = vxpose.xlu0.c.b16.start [1/8] %v2173, 128
        %2237 = vxpose.xlu0.c.b16.cont [2/8] %v2175, 128
        %2238 = vxpose.xlu0.c.b16.cont [3/8] %v2177, 128
        %2239 = vxpose.xlu0.c.b16.cont [4/8] %v2179, 128
        %2240 = vxpose.xlu0.c.b16.cont [5/8] %v2181, 128
        %2241 = vxpose.xlu0.c.b16.cont [6/8] %v2183, 128
        %2242 = vxpose.xlu0.c.b16.cont [7/8] %v2185, 128
        %2243 = vxpose.xlu0.c.b16.end [8/8] %v2187, 128
        %v2244 = vpop.trf.xlu0
        %v2245 = vpop.trf.xlu0
        %v2246 = vpop.trf.xlu0
        %v2247 = vpop.trf.xlu0
        %v2248 = vpop.trf.xlu0
        %v2249 = vpop.trf.xlu0
        %v2250 = vpop.trf.xlu0
        %v2251 = vpop.trf.xlu0
        %2252 = vmatprep.subr.bf16.mxu0 %v1378
        %2253 = vmatpush1.bf16.msra.mxu0 %v1377
        %2254 = vmatprep.subr.bf16.mxu0 %v1380
        %2255 = vmatpush1.bf16.msra.mxu0 %v1379
        %2256 = vmatprep.subr.bf16.mxu0 %v1382
        %2257 = vmatpush1.bf16.msra.mxu0 %v1381
        %2258 = vmatprep.subr.bf16.mxu0 %v1384
        %2259 = vmatpush1.bf16.msra.mxu0 %v1383
        %2260 = vmatprep.subr.bf16.mxu0 %v1386
        %2261 = vmatpush1.bf16.msra.mxu0 %v1385
        %2262 = vmatprep.subr.bf16.mxu0 %v1388
        %2263 = vmatpush1.bf16.msra.mxu0 %v1387
        %2264 = vmatprep.subr.bf16.mxu0 %v1390
        %2265 = vmatpush1.bf16.msra.mxu0 %v1389
        %2266 = vmatprep.subr.bf16.mxu0 %v1392
        %2267 = vmatpush1.bf16.msra.mxu0 %v1391
        %2268 = vmatprep.subr.bf16.mxu0 %v1394
        %2269 = vmatpush1.bf16.msra.mxu0 %v1393
        %2270 = vmatprep.subr.bf16.mxu0 %v1396
        %2271 = vmatpush1.bf16.msra.mxu0 %v1395
        %2272 = vmatprep.subr.bf16.mxu0 %v1398
        %2273 = vmatpush1.bf16.msra.mxu0 %v1397
        %2274 = vmatprep.subr.bf16.mxu0 %v1400
        %2275 = vmatpush1.bf16.msra.mxu0 %v1399
        %2276 = vmatprep.subr.bf16.mxu0 %v1402
        %2277 = vmatpush1.bf16.msra.mxu0 %v1401
        %2278 = vmatprep.subr.bf16.mxu0 %v1404
        %2279 = vmatpush1.bf16.msra.mxu0 %v1403
        %2280 = vmatprep.subr.bf16.mxu0 %v1406
        %2281 = vmatpush1.bf16.msra.mxu0 %v1405
        %2282 = vmatprep.subr.bf16.mxu0 %v1408
        %2283 = vmatpush1.bf16.msra.mxu0 %v1407
        %2284 = vmatprep.mubr.bf16.mxu0 %v2228
        %2285 = vmatmul.mubr.bf16.gmra.mrb[0].mxu0 %v2196
        %v2286 = vpop.f32.mrb[0].mxu0
        %v2287 = vadd.f32 0.0, %v2286
        %v2288 = vpop.f32.mrb[0].mxu0
        %v2289 = vadd.f32 0.0, %v2288
        %v2290 = vpop.f32.mrb[0].mxu0
        %v2291 = vadd.f32 0.0, %v2290
        %v2292 = vpop.f32.mrb[0].mxu0
        %v2293 = vadd.f32 0.0, %v2292
        %2294 = vmatprep.mubr.bf16.mxu0 %v2229
        %2295 = vmatmul.mubr.bf16.gmra.mrb[0].mxu0 %v2197
        %v2296 = vpop.f32.mrb[0].mxu0
        %v2297 = vadd.f32 0.0, %v2296
        %v2298 = vpop.f32.mrb[0].mxu0
        %v2299 = vadd.f32 0.0, %v2298
        %v2300 = vpop.f32.mrb[0].mxu0
        %v2301 = vadd.f32 0.0, %v2300
        %v2302 = vpop.f32.mrb[0].mxu0
        %v2303 = vadd.f32 0.0, %v2302
        %2304 = vmatprep.mubr.bf16.mxu0 %v2230
        %2305 = vmatmul.mubr.bf16.gmra.mrb[0].mxu0 %v2198
        %v2306 = vpop.f32.mrb[0].mxu0
        %v2307 = vadd.f32 0.0, %v2306
        %v2308 = vpop.f32.mrb[0].mxu0
        %v2309 = vadd.f32 0.0, %v2308
        %v2310 = vpop.f32.mrb[0].mxu0
        %v2311 = vadd.f32 0.0, %v2310
        %v2312 = vpop.f32.mrb[0].mxu0
        %v2313 = vadd.f32 0.0, %v2312
        %2314 = vmatprep.mubr.bf16.mxu0 %v2231
        %2315 = vmatmul.mubr.bf16.gmra.mrb[0].mxu0 %v2199
        %v2316 = vpop.f32.mrb[0].mxu0
        %v2317 = vadd.f32 0.0, %v2316
        %v2318 = vpop.f32.mrb[0].mxu0
        %v2319 = vadd.f32 0.0, %v2318
        %v2320 = vpop.f32.mrb[0].mxu0
        %v2321 = vadd.f32 0.0, %v2320
        %v2322 = vpop.f32.mrb[0].mxu0
        %v2323 = vadd.f32 0.0, %v2322
        %2324 = vmatprep.mubr.bf16.mxu0 %v2232
        %2325 = vmatmul.mubr.bf16.gmra.mrb[0].mxu0 %v2200
        %v2326 = vpop.f32.mrb[0].mxu0
        %v2327 = vadd.f32 0.0, %v2326
        %v2328 = vpop.f32.mrb[0].mxu0
        %v2329 = vadd.f32 0.0, %v2328
        %v2330 = vpop.f32.mrb[0].mxu0
        %v2331 = vadd.f32 0.0, %v2330
        %v2332 = vpop.f32.mrb[0].mxu0
        %v2333 = vadd.f32 0.0, %v2332
        %2334 = vmatprep.mubr.bf16.mxu0 %v2233
        %2335 = vmatmul.mubr.bf16.gmra.mrb[0].mxu0 %v2201
        %v2336 = vpop.f32.mrb[0].mxu0
        %v2337 = vadd.f32 0.0, %v2336
        %v2338 = vpop.f32.mrb[0].mxu0
        %v2339 = vadd.f32 0.0, %v2338
        %v2340 = vpop.f32.mrb[0].mxu0
        %v2341 = vadd.f32 0.0, %v2340
        %v2342 = vpop.f32.mrb[0].mxu0
        %v2343 = vadd.f32 0.0, %v2342
        %2344 = vmatprep.mubr.bf16.mxu0 %v2234
        %2345 = vmatmul.mubr.bf16.gmra.mrb[0].mxu0 %v2202
        %v2346 = vpop.f32.mrb[0].mxu0
        %v2347 = vadd.f32 0.0, %v2346
        %v2348 = vpop.f32.mrb[0].mxu0
        %v2349 = vadd.f32 0.0, %v2348
        %v2350 = vpop.f32.mrb[0].mxu0
        %v2351 = vadd.f32 0.0, %v2350
        %v2352 = vpop.f32.mrb[0].mxu0
        %v2353 = vadd.f32 0.0, %v2352
        %2354 = vmatprep.mubr.bf16.mxu0 %v2235
        %2355 = vmatmul.mubr.bf16.gmra.mrb[0].mxu0 %v2203
        %v2356 = vpop.f32.mrb[0].mxu0
        %v2357 = vadd.f32 0.0, %v2356
        %v2358 = vpop.f32.mrb[0].mxu0
        %v2359 = vadd.f32 0.0, %v2358
        %v2360 = vpop.f32.mrb[0].mxu0
        %v2361 = vadd.f32 0.0, %v2360
        %v2362 = vpop.f32.mrb[0].mxu0
        %v2363 = vadd.f32 0.0, %v2362
        %2364 = vmatprep.mubr.bf16.mxu0 %v2244
        %2365 = vmatmul.mubr.bf16.gmra.mrb[0].mxu0 %v2212
        %v2366 = vpop.f32.mrb[0].mxu0
        %v2367 = vadd.f32 0.0, %v2366
        %v2368 = vpop.f32.mrb[0].mxu0
        %v2369 = vadd.f32 0.0, %v2368
        %v2370 = vpop.f32.mrb[0].mxu0
        %v2371 = vadd.f32 0.0, %v2370
        %v2372 = vpop.f32.mrb[0].mxu0
        %v2373 = vadd.f32 0.0, %v2372
        %2374 = vmatprep.mubr.bf16.mxu0 %v2245
        %2375 = vmatmul.mubr.bf16.gmra.mrb[0].mxu0 %v2213
        %v2376 = vpop.f32.mrb[0].mxu0
        %v2377 = vadd.f32 0.0, %v2376
        %v2378 = vpop.f32.mrb[0].mxu0
        %v2379 = vadd.f32 0.0, %v2378
        %v2380 = vpop.f32.mrb[0].mxu0
        %v2381 = vadd.f32 0.0, %v2380
        %v2382 = vpop.f32.mrb[0].mxu0
        %v2383 = vadd.f32 0.0, %v2382
        %2384 = vmatprep.mubr.bf16.mxu0 %v2246
        %2385 = vmatmul.mubr.bf16.gmra.mrb[0].mxu0 %v2214
        %v2386 = vpop.f32.mrb[0].mxu0
        %v2387 = vadd.f32 0.0, %v2386
        %v2388 = vpop.f32.mrb[0].mxu0
        %v2389 = vadd.f32 0.0, %v2388
        %v2390 = vpop.f32.mrb[0].mxu0
        %v2391 = vadd.f32 0.0, %v2390
        %v2392 = vpop.f32.mrb[0].mxu0
        %v2393 = vadd.f32 0.0, %v2392
        %2394 = vmatprep.mubr.bf16.mxu0 %v2247
        %2395 = vmatmul.mubr.bf16.gmra.mrb[0].mxu0 %v2215
        %v2396 = vpop.f32.mrb[0].mxu0
        %v2397 = vadd.f32 0.0, %v2396
        %v2398 = vpop.f32.mrb[0].mxu0
        %v2399 = vadd.f32 0.0, %v2398
        %v2400 = vpop.f32.mrb[0].mxu0
        %v2401 = vadd.f32 0.0, %v2400
        %v2402 = vpop.f32.mrb[0].mxu0
        %v2403 = vadd.f32 0.0, %v2402
        %2404 = vmatprep.mubr.bf16.mxu0 %v2248
        %2405 = vmatmul.mubr.bf16.gmra.mrb[0].mxu0 %v2216
        %v2406 = vpop.f32.mrb[0].mxu0
        %v2407 = vadd.f32 0.0, %v2406
        %v2408 = vpop.f32.mrb[0].mxu0
        %v2409 = vadd.f32 0.0, %v2408
        %v2410 = vpop.f32.mrb[0].mxu0
        %v2411 = vadd.f32 0.0, %v2410
        %v2412 = vpop.f32.mrb[0].mxu0
        %v2413 = vadd.f32 0.0, %v2412
        %2414 = vmatprep.mubr.bf16.mxu0 %v2249
        %2415 = vmatmul.mubr.bf16.gmra.mrb[0].mxu0 %v2217
        %v2416 = vpop.f32.mrb[0].mxu0
        %v2417 = vadd.f32 0.0, %v2416
        %v2418 = vpop.f32.mrb[0].mxu0
        %v2419 = vadd.f32 0.0, %v2418
        %v2420 = vpop.f32.mrb[0].mxu0
        %v2421 = vadd.f32 0.0, %v2420
        %v2422 = vpop.f32.mrb[0].mxu0
        %v2423 = vadd.f32 0.0, %v2422
        %2424 = vmatprep.mubr.bf16.mxu0 %v2250
        %2425 = vmatmul.mubr.bf16.gmra.mrb[0].mxu0 %v2218
        %v2426 = vpop.f32.mrb[0].mxu0
        %v2427 = vadd.f32 0.0, %v2426
        %v2428 = vpop.f32.mrb[0].mxu0
        %v2429 = vadd.f32 0.0, %v2428
        %v2430 = vpop.f32.mrb[0].mxu0
        %v2431 = vadd.f32 0.0, %v2430
        %v2432 = vpop.f32.mrb[0].mxu0
        %v2433 = vadd.f32 0.0, %v2432
        %2434 = vmatprep.mubr.bf16.mxu0 %v2251
        %2435 = vmatmul.mubr.bf16.gmra.mrb[0].mxu0 %v2219
        %v2436 = vpop.f32.mrb[0].mxu0
        %v2437 = vadd.f32 0.0, %v2436
        %v2438 = vpop.f32.mrb[0].mxu0
        %v2439 = vadd.f32 0.0, %v2438
        %v2440 = vpop.f32.mrb[0].mxu0
        %v2441 = vadd.f32 0.0, %v2440
        %v2442 = vpop.f32.mrb[0].mxu0
        %v2443 = vadd.f32 0.0, %v2442
        %2444 = vdwg.mxu0
        %2445 = vxpose.xlu0.c.b16.start [1/8] %v1923, 128
        %2446 = vxpose.xlu0.c.b16.cont [2/8] %v1925, 128
        %2447 = vxpose.xlu0.c.b16.cont [3/8] %v1927, 128
        %2448 = vxpose.xlu0.c.b16.cont [4/8] %v1929, 128
        %2449 = vxpose.xlu0.c.b16.cont [5/8] %v1931, 128
        %2450 = vxpose.xlu0.c.b16.cont [6/8] %v1933, 128
        %2451 = vxpose.xlu0.c.b16.cont [7/8] %v1935, 128
        %2452 = vxpose.xlu0.c.b16.end [8/8] %v1937, 128
        %v2453 = vpop.trf.xlu0
        %v2454 = vpop.trf.xlu0
        %v2455 = vpop.trf.xlu0
        %v2456 = vpop.trf.xlu0
        %v2457 = vpop.trf.xlu0
        %v2458 = vpop.trf.xlu0
        %v2459 = vpop.trf.xlu0
        %v2460 = vpop.trf.xlu0
        %2461 = vxpose.xlu0.c.b16.start [1/8] %v1924, 128
        %2462 = vxpose.xlu0.c.b16.cont [2/8] %v1926, 128
        %2463 = vxpose.xlu0.c.b16.cont [3/8] %v1928, 128
        %2464 = vxpose.xlu0.c.b16.cont [4/8] %v1930, 128
        %2465 = vxpose.xlu0.c.b16.cont [5/8] %v1932, 128
        %2466 = vxpose.xlu0.c.b16.cont [6/8] %v1934, 128
        %2467 = vxpose.xlu0.c.b16.cont [7/8] %v1936, 128
        %2468 = vxpose.xlu0.c.b16.end [8/8] %v1938, 128
        %v2469 = vpop.trf.xlu0
        %v2470 = vpop.trf.xlu0
        %v2471 = vpop.trf.xlu0
        %v2472 = vpop.trf.xlu0
        %v2473 = vpop.trf.xlu0
        %v2474 = vpop.trf.xlu0
        %v2475 = vpop.trf.xlu0
        %v2476 = vpop.trf.xlu0
        %2477 = vxpose.xlu0.c.b16.start [1/8] %v1939, 128
        %2478 = vxpose.xlu0.c.b16.cont [2/8] %v1941, 128
        %2479 = vxpose.xlu0.c.b16.cont [3/8] %v1943, 128
        %2480 = vxpose.xlu0.c.b16.cont [4/8] %v1945, 128
        %2481 = vxpose.xlu0.c.b16.cont [5/8] %v1947, 128
        %2482 = vxpose.xlu0.c.b16.cont [6/8] %v1949, 128
        %2483 = vxpose.xlu0.c.b16.cont [7/8] %v1951, 128
        %2484 = vxpose.xlu0.c.b16.end [8/8] %v1953, 128
        %v2485 = vpop.trf.xlu0
        %v2486 = vpop.trf.xlu0
        %v2487 = vpop.trf.xlu0
        %v2488 = vpop.trf.xlu0
        %v2489 = vpop.trf.xlu0
        %v2490 = vpop.trf.xlu0
        %v2491 = vpop.trf.xlu0
        %v2492 = vpop.trf.xlu0
        %2493 = vxpose.xlu0.c.b16.start [1/8] %v1940, 128
        %2494 = vxpose.xlu0.c.b16.cont [2/8] %v1942, 128
        %2495 = vxpose.xlu0.c.b16.cont [3/8] %v1944, 128
        %2496 = vxpose.xlu0.c.b16.cont [4/8] %v1946, 128
        %2497 = vxpose.xlu0.c.b16.cont [5/8] %v1948, 128
        %2498 = vxpose.xlu0.c.b16.cont [6/8] %v1950, 128
        %2499 = vxpose.xlu0.c.b16.cont [7/8] %v1952, 128
        %2500 = vxpose.xlu0.c.b16.end [8/8] %v1954, 128
        %v2501 = vpop.trf.xlu0
        %v2502 = vpop.trf.xlu0
        %v2503 = vpop.trf.xlu0
        %v2504 = vpop.trf.xlu0
        %v2505 = vpop.trf.xlu0
        %v2506 = vpop.trf.xlu0
        %v2507 = vpop.trf.xlu0
        %v2508 = vpop.trf.xlu0
        %2509 = vmatprep.subr.bf16.mxu0 0
        %2510 = vmatpush1.bf16.msra.mxu0 %v1361
        %2511 = vmatprep.subr.bf16.mxu0 0
        %2512 = vmatpush1.bf16.msra.mxu0 %v1362
        %2513 = vmatprep.subr.bf16.mxu0 0
        %2514 = vmatpush1.bf16.msra.mxu0 %v1363
        %2515 = vmatprep.subr.bf16.mxu0 0
        %2516 = vmatpush1.bf16.msra.mxu0 %v1364
        %2517 = vmatprep.subr.bf16.mxu0 0
        %2518 = vmatpush1.bf16.msra.mxu0 %v1365
        %2519 = vmatprep.subr.bf16.mxu0 0
        %2520 = vmatpush1.bf16.msra.mxu0 %v1366
        %2521 = vmatprep.subr.bf16.mxu0 0
        %2522 = vmatpush1.bf16.msra.mxu0 %v1367
        %2523 = vmatprep.subr.bf16.mxu0 0
        %2524 = vmatpush1.bf16.msra.mxu0 %v1368
        %2525 = vmatprep.subr.bf16.mxu0 0
        %2526 = vmatpush1.bf16.msra.mxu0 %v1369
        %2527 = vmatprep.subr.bf16.mxu0 0
        %2528 = vmatpush1.bf16.msra.mxu0 %v1370
        %2529 = vmatprep.subr.bf16.mxu0 0
        %2530 = vmatpush1.bf16.msra.mxu0 %v1371
        %2531 = vmatprep.subr.bf16.mxu0 0
        %2532 = vmatpush1.bf16.msra.mxu0 %v1372
        %2533 = vmatprep.subr.bf16.mxu0 0
        %2534 = vmatpush1.bf16.msra.mxu0 %v1373
        %2535 = vmatprep.subr.bf16.mxu0 0
        %2536 = vmatpush1.bf16.msra.mxu0 %v1374
        %2537 = vmatprep.subr.bf16.mxu0 0
        %2538 = vmatpush1.bf16.msra.mxu0 %v1375
        %2539 = vmatprep.subr.bf16.mxu0 0
        %2540 = vmatpush1.bf16.msra.mxu0 %v1376
        %2541 = vmatprep.mubr.bf16.mxu0 %v2485
        %2542 = vmatmul.mubr.bf16.gmra.mrb[0].mxu0 %v2453
        %v2543 = vpop.f32.mrb[0].mxu0
        %v2544 = vadd.f32 %v2287, %v2543
        %v2545 = vpop.f32.mrb[0].mxu0
        %v2546 = vpop.f32.mrb[0].mxu0
        %v2547 = vadd.f32 %v2291, %v2546
        %v2548 = vpop.f32.mrb[0].mxu0
        %2549 = vmatprep.mubr.bf16.mxu0 %v2486
        %2550 = vmatmul.mubr.bf16.gmra.mrb[0].mxu0 %v2454
        %v2551 = vpop.f32.mrb[0].mxu0
        %v2552 = vadd.f32 %v2297, %v2551
        %v2553 = vpop.f32.mrb[0].mxu0
        %v2554 = vpop.f32.mrb[0].mxu0
        %v2555 = vadd.f32 %v2301, %v2554
        %v2556 = vpop.f32.mrb[0].mxu0
        %2557 = vmatprep.mubr.bf16.mxu0 %v2487
        %2558 = vmatmul.mubr.bf16.gmra.mrb[0].mxu0 %v2455
        %v2559 = vpop.f32.mrb[0].mxu0
        %v2560 = vadd.f32 %v2307, %v2559
        %v2561 = vpop.f32.mrb[0].mxu0
        %v2562 = vpop.f32.mrb[0].mxu0
        %v2563 = vadd.f32 %v2311, %v2562
        %v2564 = vpop.f32.mrb[0].mxu0
        %2565 = vmatprep.mubr.bf16.mxu0 %v2488
        %2566 = vmatmul.mubr.bf16.gmra.mrb[0].mxu0 %v2456
        %v2567 = vpop.f32.mrb[0].mxu0
        %v2568 = vadd.f32 %v2317, %v2567
        %v2569 = vpop.f32.mrb[0].mxu0
        %v2570 = vpop.f32.mrb[0].mxu0
        %v2571 = vadd.f32 %v2321, %v2570
        %v2572 = vpop.f32.mrb[0].mxu0
        %2573 = vmatprep.mubr.bf16.mxu0 %v2489
        %2574 = vmatmul.mubr.bf16.gmra.mrb[0].mxu0 %v2457
        %v2575 = vpop.f32.mrb[0].mxu0
        %v2576 = vadd.f32 %v2327, %v2575
        %v2577 = vpop.f32.mrb[0].mxu0
        %v2578 = vpop.f32.mrb[0].mxu0
        %v2579 = vadd.f32 %v2331, %v2578
        %v2580 = vpop.f32.mrb[0].mxu0
        %2581 = vmatprep.mubr.bf16.mxu0 %v2490
        %2582 = vmatmul.mubr.bf16.gmra.mrb[0].mxu0 %v2458
        %v2583 = vpop.f32.mrb[0].mxu0
        %v2584 = vadd.f32 %v2337, %v2583
        %v2585 = vpop.f32.mrb[0].mxu0
        %v2586 = vpop.f32.mrb[0].mxu0
        %v2587 = vadd.f32 %v2341, %v2586
        %v2588 = vpop.f32.mrb[0].mxu0
        %2589 = vmatprep.mubr.bf16.mxu0 %v2491
        %2590 = vmatmul.mubr.bf16.gmra.mrb[0].mxu0 %v2459
        %v2591 = vpop.f32.mrb[0].mxu0
        %v2592 = vadd.f32 %v2347, %v2591
        %v2593 = vpop.f32.mrb[0].mxu0
        %v2594 = vpop.f32.mrb[0].mxu0
        %v2595 = vadd.f32 %v2351, %v2594
        %v2596 = vpop.f32.mrb[0].mxu0
        %2597 = vmatprep.mubr.bf16.mxu0 %v2492
        %2598 = vmatmul.mubr.bf16.gmra.mrb[0].mxu0 %v2460
        %v2599 = vpop.f32.mrb[0].mxu0
        %v2600 = vadd.f32 %v2357, %v2599
        %v2601 = vpop.f32.mrb[0].mxu0
        %v2602 = vpop.f32.mrb[0].mxu0
        %v2603 = vadd.f32 %v2361, %v2602
        %v2604 = vpop.f32.mrb[0].mxu0
        %2605 = vmatprep.mubr.bf16.mxu0 %v2501
        %2606 = vmatmul.mubr.bf16.gmra.mrb[0].mxu0 %v2469
        %v2607 = vpop.f32.mrb[0].mxu0
        %v2608 = vadd.f32 %v2367, %v2607
        %v2609 = vpop.f32.mrb[0].mxu0
        %v2610 = vpop.f32.mrb[0].mxu0
        %v2611 = vadd.f32 %v2371, %v2610
        %v2612 = vpop.f32.mrb[0].mxu0
        %2613 = vmatprep.mubr.bf16.mxu0 %v2502
        %2614 = vmatmul.mubr.bf16.gmra.mrb[0].mxu0 %v2470
        %v2615 = vpop.f32.mrb[0].mxu0
        %v2616 = vadd.f32 %v2377, %v2615
        %v2617 = vpop.f32.mrb[0].mxu0
        %v2618 = vpop.f32.mrb[0].mxu0
        %v2619 = vadd.f32 %v2381, %v2618
        %v2620 = vpop.f32.mrb[0].mxu0
        %2621 = vmatprep.mubr.bf16.mxu0 %v2503
        %2622 = vmatmul.mubr.bf16.gmra.mrb[0].mxu0 %v2471
        %v2623 = vpop.f32.mrb[0].mxu0
        %v2624 = vadd.f32 %v2387, %v2623
        %v2625 = vpop.f32.mrb[0].mxu0
        %v2626 = vpop.f32.mrb[0].mxu0
        %v2627 = vadd.f32 %v2391, %v2626
        %v2628 = vpop.f32.mrb[0].mxu0
        %2629 = vmatprep.mubr.bf16.mxu0 %v2504
        %2630 = vmatmul.mubr.bf16.gmra.mrb[0].mxu0 %v2472
        %v2631 = vpop.f32.mrb[0].mxu0
        %v2632 = vadd.f32 %v2397, %v2631
        %v2633 = vpop.f32.mrb[0].mxu0
        %v2634 = vpop.f32.mrb[0].mxu0
        %v2635 = vadd.f32 %v2401, %v2634
        %v2636 = vpop.f32.mrb[0].mxu0
        %2637 = vmatprep.mubr.bf16.mxu0 %v2505
        %2638 = vmatmul.mubr.bf16.gmra.mrb[0].mxu0 %v2473
        %v2639 = vpop.f32.mrb[0].mxu0
        %v2640 = vadd.f32 %v2407, %v2639
        %v2641 = vpop.f32.mrb[0].mxu0
        %v2642 = vpop.f32.mrb[0].mxu0
        %v2643 = vadd.f32 %v2411, %v2642
        %v2644 = vpop.f32.mrb[0].mxu0
        %2645 = vmatprep.mubr.bf16.mxu0 %v2506
        %2646 = vmatmul.mubr.bf16.gmra.mrb[0].mxu0 %v2474
        %v2647 = vpop.f32.mrb[0].mxu0
        %v2648 = vadd.f32 %v2417, %v2647
        %v2649 = vpop.f32.mrb[0].mxu0
        %v2650 = vpop.f32.mrb[0].mxu0
        %v2651 = vadd.f32 %v2421, %v2650
        %v2652 = vpop.f32.mrb[0].mxu0
        %2653 = vmatprep.mubr.bf16.mxu0 %v2507
        %2654 = vmatmul.mubr.bf16.gmra.mrb[0].mxu0 %v2475
        %v2655 = vpop.f32.mrb[0].mxu0
        %v2656 = vadd.f32 %v2427, %v2655
        %v2657 = vpop.f32.mrb[0].mxu0
        %v2658 = vpop.f32.mrb[0].mxu0
        %v2659 = vadd.f32 %v2431, %v2658
        %v2660 = vpop.f32.mrb[0].mxu0
        %2661 = vmatprep.mubr.bf16.mxu0 %v2508
        %2662 = vmatmul.mubr.bf16.gmra.mrb[0].mxu0 %v2476
        %v2663 = vpop.f32.mrb[0].mxu0
        %v2664 = vadd.f32 %v2437, %v2663
        %v2665 = vpop.f32.mrb[0].mxu0
        %v2666 = vpop.f32.mrb[0].mxu0
        %v2667 = vadd.f32 %v2441, %v2666
        %v2668 = vpop.f32.mrb[0].mxu0
        %2669 = vdwg.mxu0
        %v2670 = vadd.f32 %v2544, %v1563
        %v2671 = vadd.f32 %v2547, %v1566
        %v2672 = vadd.f32 %v2552, %v1571
        %v2673 = vadd.f32 %v2555, %v1574
        %v2674 = vadd.f32 %v2560, %v1579
        %v2675 = vadd.f32 %v2563, %v1582
        %v2676 = vadd.f32 %v2568, %v1587
        %v2677 = vadd.f32 %v2571, %v1590
        %v2678 = vadd.f32 %v2576, %v1595
        %v2679 = vadd.f32 %v2579, %v1598
        %v2680 = vadd.f32 %v2584, %v1603
        %v2681 = vadd.f32 %v2587, %v1606
        %v2682 = vadd.f32 %v2592, %v1611
        %v2683 = vadd.f32 %v2595, %v1614
        %v2684 = vadd.f32 %v2600, %v1619
        %v2685 = vadd.f32 %v2603, %v1622
        %v2686 = vadd.f32 %v2608, %v1627
        %v2687 = vadd.f32 %v2611, %v1630
        %v2688 = vadd.f32 %v2616, %v1635
        %v2689 = vadd.f32 %v2619, %v1638
        %v2690 = vadd.f32 %v2624, %v1643
        %v2691 = vadd.f32 %v2627, %v1646
        %v2692 = vadd.f32 %v2632, %v1651
        %v2693 = vadd.f32 %v2635, %v1654
        %v2694 = vadd.f32 %v2640, %v1659
        %v2695 = vadd.f32 %v2643, %v1662
        %v2696 = vadd.f32 %v2648, %v1667
        %v2697 = vadd.f32 %v2651, %v1670
        %v2698 = vadd.f32 %v2656, %v1675
        %v2699 = vadd.f32 %v2659, %v1678
        %v2700 = vadd.f32 %v2664, %v1683
        %v2701 = vadd.f32 %v2667, %v1686
        %v2702 = vxor.u32 %v2670, 2147483648
        %v2703 = vxor.u32 %v2671, 2147483648
        %v2704 = vxor.u32 %v2672, 2147483648
        %v2705 = vxor.u32 %v2673, 2147483648
        %v2706 = vxor.u32 %v2674, 2147483648
        %v2707 = vxor.u32 %v2675, 2147483648
        %v2708 = vxor.u32 %v2676, 2147483648
        %v2709 = vxor.u32 %v2677, 2147483648
        %v2710 = vxor.u32 %v2678, 2147483648
        %v2711 = vxor.u32 %v2679, 2147483648
        %v2712 = vxor.u32 %v2680, 2147483648
        %v2713 = vxor.u32 %v2681, 2147483648
        %v2714 = vxor.u32 %v2682, 2147483648
        %v2715 = vxor.u32 %v2683, 2147483648
        %v2716 = vxor.u32 %v2684, 2147483648
        %v2717 = vxor.u32 %v2685, 2147483648
        %v2718 = vxor.u32 %v2686, 2147483648
        %v2719 = vxor.u32 %v2687, 2147483648
        %v2720 = vxor.u32 %v2688, 2147483648
        %v2721 = vxor.u32 %v2689, 2147483648
        %v2722 = vxor.u32 %v2690, 2147483648
        %v2723 = vxor.u32 %v2691, 2147483648
        %v2724 = vxor.u32 %v2692, 2147483648
        %v2725 = vxor.u32 %v2693, 2147483648
        %v2726 = vxor.u32 %v2694, 2147483648
        %v2727 = vxor.u32 %v2695, 2147483648
        %v2728 = vxor.u32 %v2696, 2147483648
        %v2729 = vxor.u32 %v2697, 2147483648
        %v2730 = vxor.u32 %v2698, 2147483648
        %v2731 = vxor.u32 %v2699, 2147483648
        %v2732 = vxor.u32 %v2700, 2147483648
        %v2733 = vxor.u32 %v2701, 2147483648
        %v2734 = vmul.f32 %v2702, 1.442695
        %v2735 = vpow.pop %v2734
        %v2736 = vmul.f32 %v2703, 1.442695
        %v2737 = vpow.pop %v2736
        %v2738 = vmul.f32 %v2704, 1.442695
        %v2739 = vpow.pop %v2738
        %v2740 = vmul.f32 %v2705, 1.442695
        %v2741 = vpow.pop %v2740
        %v2742 = vmul.f32 %v2706, 1.442695
        %v2743 = vpow.pop %v2742
        %v2744 = vmul.f32 %v2707, 1.442695
        %v2745 = vpow.pop %v2744
        %v2746 = vmul.f32 %v2708, 1.442695
        %v2747 = vpow.pop %v2746
        %v2748 = vmul.f32 %v2709, 1.442695
        %v2749 = vpow.pop %v2748
        %v2750 = vmul.f32 %v2710, 1.442695
        %v2751 = vpow.pop %v2750
        %v2752 = vmul.f32 %v2711, 1.442695
        %v2753 = vpow.pop %v2752
        %v2754 = vmul.f32 %v2712, 1.442695
        %v2755 = vpow.pop %v2754
        %v2756 = vmul.f32 %v2713, 1.442695
        %v2757 = vpow.pop %v2756
        %v2758 = vmul.f32 %v2714, 1.442695
        %v2759 = vpow.pop %v2758
        %v2760 = vmul.f32 %v2715, 1.442695
        %v2761 = vpow.pop %v2760
        %v2762 = vmul.f32 %v2716, 1.442695
        %v2763 = vpow.pop %v2762
        %v2764 = vmul.f32 %v2717, 1.442695
        %v2765 = vpow.pop %v2764
        %v2766 = vmul.f32 %v2718, 1.442695
        %v2767 = vpow.pop %v2766
        %v2768 = vmul.f32 %v2719, 1.442695
        %v2769 = vpow.pop %v2768
        %v2770 = vmul.f32 %v2720, 1.442695
        %v2771 = vpow.pop %v2770
        %v2772 = vmul.f32 %v2721, 1.442695
        %v2773 = vpow.pop %v2772
        %v2774 = vmul.f32 %v2722, 1.442695
        %v2775 = vpow.pop %v2774
        %v2776 = vmul.f32 %v2723, 1.442695
        %v2777 = vpow.pop %v2776
        %v2778 = vmul.f32 %v2724, 1.442695
        %v2779 = vpow.pop %v2778
        %v2780 = vmul.f32 %v2725, 1.442695
        %v2781 = vpow.pop %v2780
        %v2782 = vmul.f32 %v2726, 1.442695
        %v2783 = vpow.pop %v2782
        %v2784 = vmul.f32 %v2727, 1.442695
        %v2785 = vpow.pop %v2784
        %v2786 = vmul.f32 %v2728, 1.442695
        %v2787 = vpow.pop %v2786
        %v2788 = vmul.f32 %v2729, 1.442695
        %v2789 = vpow.pop %v2788
        %v2790 = vmul.f32 %v2730, 1.442695
        %v2791 = vpow.pop %v2790
        %v2792 = vmul.f32 %v2731, 1.442695
        %v2793 = vpow.pop %v2792
        %v2794 = vmul.f32 %v2732, 1.442695
        %v2795 = vpow.pop %v2794
        %v2796 = vmul.f32 %v2733, 1.442695
        %v2797 = vpow.pop %v2796
        %v2798 = vadd.f32 %v2735, 1.0
        %v2799 = vadd.f32 %v2737, 1.0
        %v2800 = vadd.f32 %v2739, 1.0
        %v2801 = vadd.f32 %v2741, 1.0
        %v2802 = vadd.f32 %v2743, 1.0
        %v2803 = vadd.f32 %v2745, 1.0
        %v2804 = vadd.f32 %v2747, 1.0
        %v2805 = vadd.f32 %v2749, 1.0
        %v2806 = vadd.f32 %v2751, 1.0
        %v2807 = vadd.f32 %v2753, 1.0
        %v2808 = vadd.f32 %v2755, 1.0
        %v2809 = vadd.f32 %v2757, 1.0
        %v2810 = vadd.f32 %v2759, 1.0
        %v2811 = vadd.f32 %v2761, 1.0
        %v2812 = vadd.f32 %v2763, 1.0
        %v2813 = vadd.f32 %v2765, 1.0
        %v2814 = vadd.f32 %v2767, 1.0
        %v2815 = vadd.f32 %v2769, 1.0
        %v2816 = vadd.f32 %v2771, 1.0
        %v2817 = vadd.f32 %v2773, 1.0
        %v2818 = vadd.f32 %v2775, 1.0
        %v2819 = vadd.f32 %v2777, 1.0
        %v2820 = vadd.f32 %v2779, 1.0
        %v2821 = vadd.f32 %v2781, 1.0
        %v2822 = vadd.f32 %v2783, 1.0
        %v2823 = vadd.f32 %v2785, 1.0
        %v2824 = vadd.f32 %v2787, 1.0
        %v2825 = vadd.f32 %v2789, 1.0
        %v2826 = vadd.f32 %v2791, 1.0
        %v2827 = vadd.f32 %v2793, 1.0
        %v2828 = vadd.f32 %v2795, 1.0
        %v2829 = vadd.f32 %v2797, 1.0
        %v2830 = vrcp.pop %v2798
        %v2831 = vmul.f32 1.0, %v2830
        %v2832 = vrcp.pop %v2799
        %v2833 = vmul.f32 1.0, %v2832
        %v2834 = vrcp.pop %v2800
        %v2835 = vmul.f32 1.0, %v2834
        %v2836 = vrcp.pop %v2801
        %v2837 = vmul.f32 1.0, %v2836
        %v2838 = vrcp.pop %v2802
        %v2839 = vmul.f32 1.0, %v2838
        %v2840 = vrcp.pop %v2803
        %v2841 = vmul.f32 1.0, %v2840
        %v2842 = vrcp.pop %v2804
        %v2843 = vmul.f32 1.0, %v2842
        %v2844 = vrcp.pop %v2805
        %v2845 = vmul.f32 1.0, %v2844
        %v2846 = vrcp.pop %v2806
        %v2847 = vmul.f32 1.0, %v2846
        %v2848 = vrcp.pop %v2807
        %v2849 = vmul.f32 1.0, %v2848
        %v2850 = vrcp.pop %v2808
        %v2851 = vmul.f32 1.0, %v2850
        %v2852 = vrcp.pop %v2809
        %v2853 = vmul.f32 1.0, %v2852
        %v2854 = vrcp.pop %v2810
        %v2855 = vmul.f32 1.0, %v2854
        %v2856 = vrcp.pop %v2811
        %v2857 = vmul.f32 1.0, %v2856
        %v2858 = vrcp.pop %v2812
        %v2859 = vmul.f32 1.0, %v2858
        %v2860 = vrcp.pop %v2813
        %v2861 = vmul.f32 1.0, %v2860
        %v2862 = vrcp.pop %v2814
        %v2863 = vmul.f32 1.0, %v2862
        %v2864 = vrcp.pop %v2815
        %v2865 = vmul.f32 1.0, %v2864
        %v2866 = vrcp.pop %v2816
        %v2867 = vmul.f32 1.0, %v2866
        %v2868 = vrcp.pop %v2817
        %v2869 = vmul.f32 1.0, %v2868
        %v2870 = vrcp.pop %v2818
        %v2871 = vmul.f32 1.0, %v2870
        %v2872 = vrcp.pop %v2819
        %v2873 = vmul.f32 1.0, %v2872
        %v2874 = vrcp.pop %v2820
        %v2875 = vmul.f32 1.0, %v2874
        %v2876 = vrcp.pop %v2821
        %v2877 = vmul.f32 1.0, %v2876
        %v2878 = vrcp.pop %v2822
        %v2879 = vmul.f32 1.0, %v2878
        %v2880 = vrcp.pop %v2823
        %v2881 = vmul.f32 1.0, %v2880
        %v2882 = vrcp.pop %v2824
        %v2883 = vmul.f32 1.0, %v2882
        %v2884 = vrcp.pop %v2825
        %v2885 = vmul.f32 1.0, %v2884
        %v2886 = vrcp.pop %v2826
        %v2887 = vmul.f32 1.0, %v2886
        %v2888 = vrcp.pop %v2827
        %v2889 = vmul.f32 1.0, %v2888
        %v2890 = vrcp.pop %v2828
        %v2891 = vmul.f32 1.0, %v2890
        %v2892 = vrcp.pop %v2829
        %v2893 = vmul.f32 1.0, %v2892
        %v2894 = vmul.f32 %v2831, %v2289
        %v2895 = vmul.f32 %v2833, %v2293
        %v2896 = vmul.f32 %v2835, %v2299
        %v2897 = vmul.f32 %v2837, %v2303
        %v2898 = vmul.f32 %v2839, %v2309
        %v2899 = vmul.f32 %v2841, %v2313
        %v2900 = vmul.f32 %v2843, %v2319
        %v2901 = vmul.f32 %v2845, %v2323
        %v2902 = vmul.f32 %v2847, %v2329
        %v2903 = vmul.f32 %v2849, %v2333
        %v2904 = vmul.f32 %v2851, %v2339
        %v2905 = vmul.f32 %v2853, %v2343
        %v2906 = vmul.f32 %v2855, %v2349
        %v2907 = vmul.f32 %v2857, %v2353
        %v2908 = vmul.f32 %v2859, %v2359
        %v2909 = vmul.f32 %v2861, %v2363
        %v2910 = vmul.f32 %v2863, %v2369
        %v2911 = vmul.f32 %v2865, %v2373
        %v2912 = vmul.f32 %v2867, %v2379
        %v2913 = vmul.f32 %v2869, %v2383
        %v2914 = vmul.f32 %v2871, %v2389
        %v2915 = vmul.f32 %v2873, %v2393
        %v2916 = vmul.f32 %v2875, %v2399
        %v2917 = vmul.f32 %v2877, %v2403
        %v2918 = vmul.f32 %v2879, %v2409
        %v2919 = vmul.f32 %v2881, %v2413
        %v2920 = vmul.f32 %v2883, %v2419
        %v2921 = vmul.f32 %v2885, %v2423
        %v2922 = vmul.f32 %v2887, %v2429
        %v2923 = vmul.f32 %v2889, %v2433
        %v2924 = vmul.f32 %v2891, %v2439
        %v2925 = vmul.f32 %v2893, %v2443
        %v2926 = vpack.c.bf16 %v2895, %v2894
        %v2927 = vpack.c.bf16 %v2897, %v2896
        %v2928 = vpack.c.bf16 %v2899, %v2898
        %v2929 = vpack.c.bf16 %v2901, %v2900
        %v2930 = vpack.c.bf16 %v2903, %v2902
        %v2931 = vpack.c.bf16 %v2905, %v2904
        %v2932 = vpack.c.bf16 %v2907, %v2906
        %v2933 = vpack.c.bf16 %v2909, %v2908
        %v2934 = vpack.c.bf16 %v2911, %v2910
        %v2935 = vpack.c.bf16 %v2913, %v2912
        %v2936 = vpack.c.bf16 %v2915, %v2914
        %v2937 = vpack.c.bf16 %v2917, %v2916
        %v2938 = vpack.c.bf16 %v2919, %v2918
        %v2939 = vpack.c.bf16 %v2921, %v2920
        %v2940 = vpack.c.bf16 %v2923, %v2922
        %v2941 = vpack.c.bf16 %v2925, %v2924
        %v2942 = vld [vmem:[%s503] sm:$0xff]
        %v2943 = vld [vmem:[%s503 + $0x8] sm:$0xff]
        %v2944 = vld [vmem:[%s503 + $0x10] sm:$0xff]
        %v2945 = vld [vmem:[%s503 + $0x18] sm:$0xff]
        %v2946 = vld [vmem:[%s503 + $0x20] sm:$0xff]
        %v2947 = vld [vmem:[%s503 + $0x28] sm:$0xff]
        %v2948 = vld [vmem:[%s503 + $0x30] sm:$0xff]
        %v2949 = vld [vmem:[%s503 + $0x38] sm:$0xff]
        %v2950 = vld [vmem:[%s503 + $0x40] sm:$0xff]
        %v2951 = vld [vmem:[%s503 + $0x48] sm:$0xff]
        %v2952 = vld [vmem:[%s503 + $0x50] sm:$0xff]
        %v2953 = vld [vmem:[%s503 + $0x58] sm:$0xff]
        %v2954 = vld [vmem:[%s503 + $0x60] sm:$0xff]
        %v2955 = vld [vmem:[%s503 + $0x68] sm:$0xff]
        %v2956 = vld [vmem:[%s503 + $0x70] sm:$0xff]
        %v2957 = vld [vmem:[%s503 + $0x78] sm:$0xff]
        %v2958 = vld [vmem:[%s503 + $0x80] sm:$0xff]
        %v2959 = vld [vmem:[%s503 + $0x88] sm:$0xff]
        %v2960 = vld [vmem:[%s503 + $0x90] sm:$0xff]
        %v2961 = vld [vmem:[%s503 + $0x98] sm:$0xff]
        %v2962 = vld [vmem:[%s503 + $0xa0] sm:$0xff]
        %v2963 = vld [vmem:[%s503 + $0xa8] sm:$0xff]
        %v2964 = vld [vmem:[%s503 + $0xb0] sm:$0xff]
        %v2965 = vld [vmem:[%s503 + $0xb8] sm:$0xff]
        %v2966 = vld [vmem:[%s503 + $0xc0] sm:$0xff]
        %v2967 = vld [vmem:[%s503 + $0xc8] sm:$0xff]
        %v2968 = vld [vmem:[%s503 + $0xd0] sm:$0xff]
        %v2969 = vld [vmem:[%s503 + $0xd8] sm:$0xff]
        %v2970 = vld [vmem:[%s503 + $0xe0] sm:$0xff]
        %v2971 = vld [vmem:[%s503 + $0xe8] sm:$0xff]
        %v2972 = vld [vmem:[%s503 + $0xf0] sm:$0xff]
        %v2973 = vld [vmem:[%s503 + $0xf8] sm:$0xff]
        %2974 = vmatprep.subr.bf16.mxu0 0
        %2975 = vmatpush1.bf16.msra.mxu0 %v2926
        %2976 = vmatprep.subr.bf16.mxu0 0
        %2977 = vmatpush1.bf16.msra.mxu0 %v2927
        %2978 = vmatprep.subr.bf16.mxu0 0
        %2979 = vmatpush1.bf16.msra.mxu0 %v2928
        %2980 = vmatprep.subr.bf16.mxu0 0
        %2981 = vmatpush1.bf16.msra.mxu0 %v2929
        %2982 = vmatprep.subr.bf16.mxu0 0
        %2983 = vmatpush1.bf16.msra.mxu0 %v2930
        %2984 = vmatprep.subr.bf16.mxu0 0
        %2985 = vmatpush1.bf16.msra.mxu0 %v2931
        %2986 = vmatprep.subr.bf16.mxu0 0
        %2987 = vmatpush1.bf16.msra.mxu0 %v2932
        %2988 = vmatprep.subr.bf16.mxu0 0
        %2989 = vmatpush1.bf16.msra.mxu0 %v2933
        %2990 = vmatprep.subr.bf16.mxu0 0
        %2991 = vmatpush1.bf16.msra.mxu0 %v2934
        %2992 = vmatprep.subr.bf16.mxu0 0
        %2993 = vmatpush1.bf16.msra.mxu0 %v2935
        %2994 = vmatprep.subr.bf16.mxu0 0
        %2995 = vmatpush1.bf16.msra.mxu0 %v2936
        %2996 = vmatprep.subr.bf16.mxu0 0
        %2997 = vmatpush1.bf16.msra.mxu0 %v2937
        %2998 = vmatprep.subr.bf16.mxu0 0
        %2999 = vmatpush1.bf16.msra.mxu0 %v2938
        %3000 = vmatprep.subr.bf16.mxu0 0
        %3001 = vmatpush1.bf16.msra.mxu0 %v2939
        %3002 = vmatprep.subr.bf16.mxu0 0
        %3003 = vmatpush1.bf16.msra.mxu0 %v2940
        %3004 = vmatprep.subr.bf16.mxu0 0
        %3005 = vmatpush1.bf16.msra.mxu0 %v2941
        %3006 = vmatprep.mubr.bf16.mxu0 %v1924
        %3007 = vmatmul.mubr.bf16.gmra.mrb[0].mxu0 %v1923
        %v3008 = vpop.f32.mrb[0].mxu0
        %v3009 = vadd.f32 0.0, %v3008
        %v3010 = vpop.f32.mrb[0].mxu0
        %v3011 = vpop.f32.mrb[0].mxu0
        %v3012 = vadd.f32 0.0, %v3011
        %v3013 = vpop.f32.mrb[0].mxu0
        %3014 = vmatprep.mubr.bf16.mxu0 %v1926
        %3015 = vmatmul.mubr.bf16.gmra.mrb[0].mxu0 %v1925
        %v3016 = vpop.f32.mrb[0].mxu0
        %v3017 = vadd.f32 0.0, %v3016
        %v3018 = vpop.f32.mrb[0].mxu0
        %v3019 = vpop.f32.mrb[0].mxu0
        %v3020 = vadd.f32 0.0, %v3019
        %v3021 = vpop.f32.mrb[0].mxu0
        %3022 = vmatprep.mubr.bf16.mxu0 %v1928
        %3023 = vmatmul.mubr.bf16.gmra.mrb[0].mxu0 %v1927
        %v3024 = vpop.f32.mrb[0].mxu0
        %v3025 = vadd.f32 0.0, %v3024
        %v3026 = vpop.f32.mrb[0].mxu0
        %v3027 = vpop.f32.mrb[0].mxu0
        %v3028 = vadd.f32 0.0, %v3027
        %v3029 = vpop.f32.mrb[0].mxu0
        %3030 = vmatprep.mubr.bf16.mxu0 %v1930
        %3031 = vmatmul.mubr.bf16.gmra.mrb[0].mxu0 %v1929
        %v3032 = vpop.f32.mrb[0].mxu0
        %v3033 = vadd.f32 0.0, %v3032
        %v3034 = vpop.f32.mrb[0].mxu0
        %v3035 = vpop.f32.mrb[0].mxu0
        %v3036 = vadd.f32 0.0, %v3035
        %v3037 = vpop.f32.mrb[0].mxu0
        %3038 = vmatprep.mubr.bf16.mxu0 %v1932
        %3039 = vmatmul.mubr.bf16.gmra.mrb[0].mxu0 %v1931
        %v3040 = vpop.f32.mrb[0].mxu0
        %v3041 = vadd.f32 0.0, %v3040
        %v3042 = vpop.f32.mrb[0].mxu0
        %v3043 = vpop.f32.mrb[0].mxu0
        %v3044 = vadd.f32 0.0, %v3043
        %v3045 = vpop.f32.mrb[0].mxu0
        %3046 = vmatprep.mubr.bf16.mxu0 %v1934
        %3047 = vmatmul.mubr.bf16.gmra.mrb[0].mxu0 %v1933
        %v3048 = vpop.f32.mrb[0].mxu0
        %v3049 = vadd.f32 0.0, %v3048
        %v3050 = vpop.f32.mrb[0].mxu0
        %v3051 = vpop.f32.mrb[0].mxu0
        %v3052 = vadd.f32 0.0, %v3051
        %v3053 = vpop.f32.mrb[0].mxu0
        %3054 = vmatprep.mubr.bf16.mxu0 %v1936
        %3055 = vmatmul.mubr.bf16.gmra.mrb[0].mxu0 %v1935
        %v3056 = vpop.f32.mrb[0].mxu0
        %v3057 = vadd.f32 0.0, %v3056
        %v3058 = vpop.f32.mrb[0].mxu0
        %v3059 = vpop.f32.mrb[0].mxu0
        %v3060 = vadd.f32 0.0, %v3059
        %v3061 = vpop.f32.mrb[0].mxu0
        %3062 = vmatprep.mubr.bf16.mxu0 %v1938
        %3063 = vmatmul.mubr.bf16.gmra.mrb[0].mxu0 %v1937
        %v3064 = vpop.f32.mrb[0].mxu0
        %v3065 = vadd.f32 0.0, %v3064
        %v3066 = vpop.f32.mrb[0].mxu0
        %v3067 = vpop.f32.mrb[0].mxu0
        %v3068 = vadd.f32 0.0, %v3067
        %v3069 = vpop.f32.mrb[0].mxu0
        %3070 = vmatprep.mubr.bf16.mxu0 %v1940
        %3071 = vmatmul.mubr.bf16.gmra.mrb[0].mxu0 %v1939
        %v3072 = vpop.f32.mrb[0].mxu0
        %v3073 = vadd.f32 0.0, %v3072
        %v3074 = vpop.f32.mrb[0].mxu0
        %v3075 = vpop.f32.mrb[0].mxu0
        %v3076 = vadd.f32 0.0, %v3075
        %v3077 = vpop.f32.mrb[0].mxu0
        %3078 = vmatprep.mubr.bf16.mxu0 %v1942
        %3079 = vmatmul.mubr.bf16.gmra.mrb[0].mxu0 %v1941
        %v3080 = vpop.f32.mrb[0].mxu0
        %v3081 = vadd.f32 0.0, %v3080
        %v3082 = vpop.f32.mrb[0].mxu0
        %v3083 = vpop.f32.mrb[0].mxu0
        %v3084 = vadd.f32 0.0, %v3083
        %v3085 = vpop.f32.mrb[0].mxu0
        %3086 = vmatprep.mubr.bf16.mxu0 %v1944
        %3087 = vmatmul.mubr.bf16.gmra.mrb[0].mxu0 %v1943
        %v3088 = vpop.f32.mrb[0].mxu0
        %v3089 = vadd.f32 0.0, %v3088
        %v3090 = vpop.f32.mrb[0].mxu0
        %v3091 = vpop.f32.mrb[0].mxu0
        %v3092 = vadd.f32 0.0, %v3091
        %v3093 = vpop.f32.mrb[0].mxu0
        %3094 = vmatprep.mubr.bf16.mxu0 %v1946
        %3095 = vmatmul.mubr.bf16.gmra.mrb[0].mxu0 %v1945
        %v3096 = vpop.f32.mrb[0].mxu0
        %v3097 = vadd.f32 0.0, %v3096
        %v3098 = vpop.f32.mrb[0].mxu0
        %v3099 = vpop.f32.mrb[0].mxu0
        %v3100 = vadd.f32 0.0, %v3099
        %v3101 = vpop.f32.mrb[0].mxu0
        %3102 = vmatprep.mubr.bf16.mxu0 %v1948
        %3103 = vmatmul.mubr.bf16.gmra.mrb[0].mxu0 %v1947
        %v3104 = vpop.f32.mrb[0].mxu0
        %v3105 = vadd.f32 0.0, %v3104
        %v3106 = vpop.f32.mrb[0].mxu0
        %v3107 = vpop.f32.mrb[0].mxu0
        %v3108 = vadd.f32 0.0, %v3107
        %v3109 = vpop.f32.mrb[0].mxu0
        %3110 = vmatprep.mubr.bf16.mxu0 %v1950
        %3111 = vmatmul.mubr.bf16.gmra.mrb[0].mxu0 %v1949
        %v3112 = vpop.f32.mrb[0].mxu0
        %v3113 = vadd.f32 0.0, %v3112
        %v3114 = vpop.f32.mrb[0].mxu0
        %v3115 = vpop.f32.mrb[0].mxu0
        %v3116 = vadd.f32 0.0, %v3115
        %v3117 = vpop.f32.mrb[0].mxu0
        %3118 = vmatprep.mubr.bf16.mxu0 %v1952
        %3119 = vmatmul.mubr.bf16.gmra.mrb[0].mxu0 %v1951
        %v3120 = vpop.f32.mrb[0].mxu0
        %v3121 = vadd.f32 0.0, %v3120
        %v3122 = vpop.f32.mrb[0].mxu0
        %v3123 = vpop.f32.mrb[0].mxu0
        %v3124 = vadd.f32 0.0, %v3123
        %v3125 = vpop.f32.mrb[0].mxu0
        %3126 = vmatprep.mubr.bf16.mxu0 %v1954
        %3127 = vmatmul.mubr.bf16.gmra.mrb[0].mxu0 %v1953
        %v3128 = vpop.f32.mrb[0].mxu0
        %v3129 = vadd.f32 0.0, %v3128
        %v3130 = vpop.f32.mrb[0].mxu0
        %v3131 = vpop.f32.mrb[0].mxu0
        %v3132 = vadd.f32 0.0, %v3131
        %v3133 = vpop.f32.mrb[0].mxu0
        %3134 = vdwg.mxu0
        %v3135 = vadd.f32 %v2942, %v3009
        %v3136 = vadd.f32 %v2943, %v3012
        %v3137 = vadd.f32 %v2944, %v3017
        %v3138 = vadd.f32 %v2945, %v3020
        %v3139 = vadd.f32 %v2946, %v3025
        %v3140 = vadd.f32 %v2947, %v3028
        %v3141 = vadd.f32 %v2948, %v3033
        %v3142 = vadd.f32 %v2949, %v3036
        %v3143 = vadd.f32 %v2950, %v3041
        %v3144 = vadd.f32 %v2951, %v3044
        %v3145 = vadd.f32 %v2952, %v3049
        %v3146 = vadd.f32 %v2953, %v3052
        %v3147 = vadd.f32 %v2954, %v3057
        %v3148 = vadd.f32 %v2955, %v3060
        %v3149 = vadd.f32 %v2956, %v3065
        %v3150 = vadd.f32 %v2957, %v3068
        %v3151 = vadd.f32 %v2958, %v3073
        %v3152 = vadd.f32 %v2959, %v3076
        %v3153 = vadd.f32 %v2960, %v3081
        %v3154 = vadd.f32 %v2961, %v3084
        %v3155 = vadd.f32 %v2962, %v3089
        %v3156 = vadd.f32 %v2963, %v3092
        %v3157 = vadd.f32 %v2964, %v3097
        %v3158 = vadd.f32 %v2965, %v3100
        %v3159 = vadd.f32 %v2966, %v3105
        %v3160 = vadd.f32 %v2967, %v3108
        %v3161 = vadd.f32 %v2968, %v3113
        %v3162 = vadd.f32 %v2969, %v3116
        %v3163 = vadd.f32 %v2970, %v3121
        %v3164 = vadd.f32 %v2971, %v3124
        %v3165 = vadd.f32 %v2972, %v3129
        %v3166 = vadd.f32 %v2973, %v3132
        %3167 = vst [vmem:[%s503] sm:$0xff] %v3135
        %3168 = vst [vmem:[%s503 + $0x8] sm:$0xff] %v3136
        %3169 = vst [vmem:[%s503 + $0x10] sm:$0xff] %v3137
        %3170 = vst [vmem:[%s503 + $0x18] sm:$0xff] %v3138
        %3171 = vst [vmem:[%s503 + $0x20] sm:$0xff] %v3139
        %3172 = vst [vmem:[%s503 + $0x28] sm:$0xff] %v3140
        %3173 = vst [vmem:[%s503 + $0x30] sm:$0xff] %v3141
        %3174 = vst [vmem:[%s503 + $0x38] sm:$0xff] %v3142
        %3175 = vst [vmem:[%s503 + $0x40] sm:$0xff] %v3143
        %3176 = vst [vmem:[%s503 + $0x48] sm:$0xff] %v3144
        %3177 = vst [vmem:[%s503 + $0x50] sm:$0xff] %v3145
        %3178 = vst [vmem:[%s503 + $0x58] sm:$0xff] %v3146
        %3179 = vst [vmem:[%s503 + $0x60] sm:$0xff] %v3147
        %3180 = vst [vmem:[%s503 + $0x68] sm:$0xff] %v3148
        %3181 = vst [vmem:[%s503 + $0x70] sm:$0xff] %v3149
        %3182 = vst [vmem:[%s503 + $0x78] sm:$0xff] %v3150
        %3183 = vst [vmem:[%s503 + $0x80] sm:$0xff] %v3151
        %3184 = vst [vmem:[%s503 + $0x88] sm:$0xff] %v3152
        %3185 = vst [vmem:[%s503 + $0x90] sm:$0xff] %v3153
        %3186 = vst [vmem:[%s503 + $0x98] sm:$0xff] %v3154
        %3187 = vst [vmem:[%s503 + $0xa0] sm:$0xff] %v3155
        %3188 = vst [vmem:[%s503 + $0xa8] sm:$0xff] %v3156
        %3189 = vst [vmem:[%s503 + $0xb0] sm:$0xff] %v3157
        %3190 = vst [vmem:[%s503 + $0xb8] sm:$0xff] %v3158
        %3191 = vst [vmem:[%s503 + $0xc0] sm:$0xff] %v3159
        %3192 = vst [vmem:[%s503 + $0xc8] sm:$0xff] %v3160
        %3193 = vst [vmem:[%s503 + $0xd0] sm:$0xff] %v3161
        %3194 = vst [vmem:[%s503 + $0xd8] sm:$0xff] %v3162
        %3195 = vst [vmem:[%s503 + $0xe0] sm:$0xff] %v3163
        %3196 = vst [vmem:[%s503 + $0xe8] sm:$0xff] %v3164
        %3197 = vst [vmem:[%s503 + $0xf0] sm:$0xff] %v3165
        %3198 = vst [vmem:[%s503 + $0xf8] sm:$0xff] %v3166
        %v3199 = vld [vmem:[%s446] sm:$0xff]
        %v3200 = vld [vmem:[%s446 + $0x8] sm:$0xff]
        %v3201 = vld [vmem:[%s446 + $0x10] sm:$0xff]
        %v3202 = vld [vmem:[%s446 + $0x18] sm:$0xff]
        %v3203 = vld [vmem:[%s446 + $0x20] sm:$0xff]
        %v3204 = vld [vmem:[%s446 + $0x28] sm:$0xff]
        %v3205 = vld [vmem:[%s446 + $0x30] sm:$0xff]
        %v3206 = vld [vmem:[%s446 + $0x38] sm:$0xff]
        %v3207 = vld [vmem:[%s446 + $0x40] sm:$0xff]
        %v3208 = vld [vmem:[%s446 + $0x48] sm:$0xff]
        %v3209 = vld [vmem:[%s446 + $0x50] sm:$0xff]
        %v3210 = vld [vmem:[%s446 + $0x58] sm:$0xff]
        %v3211 = vld [vmem:[%s446 + $0x60] sm:$0xff]
        %v3212 = vld [vmem:[%s446 + $0x68] sm:$0xff]
        %v3213 = vld [vmem:[%s446 + $0x70] sm:$0xff]
        %v3214 = vld [vmem:[%s446 + $0x78] sm:$0xff]
        %v3215 = vld [vmem:[%s446 + $0x80] sm:$0xff]
        %v3216 = vld [vmem:[%s446 + $0x88] sm:$0xff]
        %v3217 = vld [vmem:[%s446 + $0x90] sm:$0xff]
        %v3218 = vld [vmem:[%s446 + $0x98] sm:$0xff]
        %v3219 = vld [vmem:[%s446 + $0xa0] sm:$0xff]
        %v3220 = vld [vmem:[%s446 + $0xa8] sm:$0xff]
        %v3221 = vld [vmem:[%s446 + $0xb0] sm:$0xff]
        %v3222 = vld [vmem:[%s446 + $0xb8] sm:$0xff]
        %v3223 = vld [vmem:[%s446 + $0xc0] sm:$0xff]
        %v3224 = vld [vmem:[%s446 + $0xc8] sm:$0xff]
        %v3225 = vld [vmem:[%s446 + $0xd0] sm:$0xff]
        %v3226 = vld [vmem:[%s446 + $0xd8] sm:$0xff]
        %v3227 = vld [vmem:[%s446 + $0xe0] sm:$0xff]
        %v3228 = vld [vmem:[%s446 + $0xe8] sm:$0xff]
        %v3229 = vld [vmem:[%s446 + $0xf0] sm:$0xff]
        %v3230 = vld [vmem:[%s446 + $0xf8] sm:$0xff]
        %v3231 = vmax.f32 %v2670, 0.0
        %v3232 = vmax.f32 %v2671, 0.0
        %v3233 = vmax.f32 %v2672, 0.0
        %v3234 = vmax.f32 %v2673, 0.0
        %v3235 = vmax.f32 %v2674, 0.0
        %v3236 = vmax.f32 %v2675, 0.0
        %v3237 = vmax.f32 %v2676, 0.0
        %v3238 = vmax.f32 %v2677, 0.0
        %v3239 = vmax.f32 %v2678, 0.0
        %v3240 = vmax.f32 %v2679, 0.0
        %v3241 = vmax.f32 %v2680, 0.0
        %v3242 = vmax.f32 %v2681, 0.0
        %v3243 = vmax.f32 %v2682, 0.0
        %v3244 = vmax.f32 %v2683, 0.0
        %v3245 = vmax.f32 %v2684, 0.0
        %v3246 = vmax.f32 %v2685, 0.0
        %v3247 = vmax.f32 %v2686, 0.0
        %v3248 = vmax.f32 %v2687, 0.0
        %v3249 = vmax.f32 %v2688, 0.0
        %v3250 = vmax.f32 %v2689, 0.0
        %v3251 = vmax.f32 %v2690, 0.0
        %v3252 = vmax.f32 %v2691, 0.0
        %v3253 = vmax.f32 %v2692, 0.0
        %v3254 = vmax.f32 %v2693, 0.0
        %v3255 = vmax.f32 %v2694, 0.0
        %v3256 = vmax.f32 %v2695, 0.0
        %v3257 = vmax.f32 %v2696, 0.0
        %v3258 = vmax.f32 %v2697, 0.0
        %v3259 = vmax.f32 %v2698, 0.0
        %v3260 = vmax.f32 %v2699, 0.0
        %v3261 = vmax.f32 %v2700, 0.0
        %v3262 = vmax.f32 %v2701, 0.0
        %v3263 = vadd.f32 %v3199, %v3231
        %v3264 = vadd.f32 %v3200, %v3232
        %v3265 = vadd.f32 %v3201, %v3233
        %v3266 = vadd.f32 %v3202, %v3234
        %v3267 = vadd.f32 %v3203, %v3235
        %v3268 = vadd.f32 %v3204, %v3236
        %v3269 = vadd.f32 %v3205, %v3237
        %v3270 = vadd.f32 %v3206, %v3238
        %v3271 = vadd.f32 %v3207, %v3239
        %v3272 = vadd.f32 %v3208, %v3240
        %v3273 = vadd.f32 %v3209, %v3241
        %v3274 = vadd.f32 %v3210, %v3242
        %v3275 = vadd.f32 %v3211, %v3243
        %v3276 = vadd.f32 %v3212, %v3244
        %v3277 = vadd.f32 %v3213, %v3245
        %v3278 = vadd.f32 %v3214, %v3246
        %v3279 = vadd.f32 %v3215, %v3247
        %v3280 = vadd.f32 %v3216, %v3248
        %v3281 = vadd.f32 %v3217, %v3249
        %v3282 = vadd.f32 %v3218, %v3250
        %v3283 = vadd.f32 %v3219, %v3251
        %v3284 = vadd.f32 %v3220, %v3252
        %v3285 = vadd.f32 %v3221, %v3253
        %v3286 = vadd.f32 %v3222, %v3254
        %v3287 = vadd.f32 %v3223, %v3255
        %v3288 = vadd.f32 %v3224, %v3256
        %v3289 = vadd.f32 %v3225, %v3257
        %v3290 = vadd.f32 %v3226, %v3258
        %v3291 = vadd.f32 %v3227, %v3259
        %v3292 = vadd.f32 %v3228, %v3260
        %v3293 = vadd.f32 %v3229, %v3261
        %v3294 = vadd.f32 %v3230, %v3262
        %3295 = vst [vmem:[%s496] sm:$0xff] %v3263
        %3296 = vst [vmem:[%s496 + $0x8] sm:$0xff] %v3264
        %3297 = vst [vmem:[%s496 + $0x10] sm:$0xff] %v3265
        %3298 = vst [vmem:[%s496 + $0x18] sm:$0xff] %v3266
        %3299 = vst [vmem:[%s496 + $0x20] sm:$0xff] %v3267
        %3300 = vst [vmem:[%s496 + $0x28] sm:$0xff] %v3268
        %3301 = vst [vmem:[%s496 + $0x30] sm:$0xff] %v3269
        %3302 = vst [vmem:[%s496 + $0x38] sm:$0xff] %v3270
        %3303 = vst [vmem:[%s496 + $0x40] sm:$0xff] %v3271
        %3304 = vst [vmem:[%s496 + $0x48] sm:$0xff] %v3272
        %3305 = vst [vmem:[%s496 + $0x50] sm:$0xff] %v3273
        %3306 = vst [vmem:[%s496 + $0x58] sm:$0xff] %v3274
        %3307 = vst [vmem:[%s496 + $0x60] sm:$0xff] %v3275
        %3308 = vst [vmem:[%s496 + $0x68] sm:$0xff] %v3276
        %3309 = vst [vmem:[%s496 + $0x70] sm:$0xff] %v3277
        %3310 = vst [vmem:[%s496 + $0x78] sm:$0xff] %v3278
        %3311 = vst [vmem:[%s496 + $0x80] sm:$0xff] %v3279
        %3312 = vst [vmem:[%s496 + $0x88] sm:$0xff] %v3280
        %3313 = vst [vmem:[%s496 + $0x90] sm:$0xff] %v3281
        %3314 = vst [vmem:[%s496 + $0x98] sm:$0xff] %v3282
        %3315 = vst [vmem:[%s496 + $0xa0] sm:$0xff] %v3283
        %3316 = vst [vmem:[%s496 + $0xa8] sm:$0xff] %v3284
        %3317 = vst [vmem:[%s496 + $0xb0] sm:$0xff] %v3285
        %3318 = vst [vmem:[%s496 + $0xb8] sm:$0xff] %v3286
        %3319 = vst [vmem:[%s496 + $0xc0] sm:$0xff] %v3287
        %3320 = vst [vmem:[%s496 + $0xc8] sm:$0xff] %v3288
        %3321 = vst [vmem:[%s496 + $0xd0] sm:$0xff] %v3289
        %3322 = vst [vmem:[%s496 + $0xd8] sm:$0xff] %v3290
        %3323 = vst [vmem:[%s496 + $0xe0] sm:$0xff] %v3291
        %3324 = vst [vmem:[%s496 + $0xe8] sm:$0xff] %v3292
        %3325 = vst [vmem:[%s496 + $0xf0] sm:$0xff] %v3293
        %3326 = vst [vmem:[%s496 + $0xf8] sm:$0xff] %v3294
        %s3327 = sand.u32 %s248, 1
        %s3328 = scalar_lea.sflag [#allocation5], %s3327
        %s3329 = sand.u32 %s248, 1
        %s3330 = smul.addr %s3329, 256
        %s3331 = scalar_lea.vmem [#allocation14], %s3330
        %s3332 = sand.u32 %s274, 1
        %s3333 = scalar_lea.sflag [#allocation16], %s3332
        %s3334 = sand.u32 %s274, 1
        %s3335 = smul.addr %s3334, 256
        %s3336 = scalar_lea.vmem [#allocation15], %s3335
        // Predicated region
        $region81: #{tpu_custom_call.1} parent=51 // pred_check
          %p3337 = pneg %p258
        $region82: #{tpu_custom_call.1} parent=51 // pred_check_branch
          %3339 = sbr.rel (%p3337) target = $region84
        $region83: #{tpu_custom_call.1} parent=51 // pred_region
          %s3340 = sadd.s32 %s41, %s42
          %s3341 = smul.u32 32, %s3340
          %s3343 = ssub.s32 4096, 4096
          %3344 = vsyncadd %s3328, %s3343
          %s3345 = smul.addr %s3341, 128
          %s3346 = scalar_lea.hbm %s8, %s3345
          %s3347 = sshll.u32 %s3331, 4
          %s3348 = int_to_ptr.vmem [resolvable:$true] %s3347
          %3353 = dma.vmem_to_hbm [thread:$0]  %s3348, 4096, %s3346, %s3328, 128, 128, 8
        $region84: #{tpu_custom_call.1} parent=51 // pred_fallthru
          _
        // Predicated region
        $region85: #{tpu_custom_call.1} parent=51 // pred_check
          %p3354 = pneg %p284
        $region86: #{tpu_custom_call.1} parent=51 // pred_check_branch
          %3356 = sbr.rel (%p3354) target = $region88
        $region87: #{tpu_custom_call.1} parent=51 // pred_region
          %s3358 = ssub.s32 4096, 4096
          %3359 = vsyncadd %s3333, %s3358
          %s3360 = smul.addr %s41, 32
          %s3361 = smul.addr %s3360, 128
          %s3362 = scalar_lea.hbm %s9, %s3361
          %s3363 = sshll.u32 %s3336, 4
          %s3364 = int_to_ptr.vmem [resolvable:$true] %s3363
          %3369 = dma.vmem_to_hbm [thread:$0]  %s3364, 4096, %s3362, %s3333, 128, 128, 8
        $region88: #{tpu_custom_call.1} parent=51 // pred_fallthru
          _
      $region52: #{tpu_custom_call.1} parent=5 // pred_fallthru
        _
      %p3370 = scmp.le.s32.totalorder 2, %s32
      // Predicated region
      $region89: #{tpu_custom_call.1} parent=5 // pred_check
        %p3371 = pneg %p3370
      $region90: #{tpu_custom_call.1} parent=5 // pred_check_branch
        %3373 = sbr.rel (%p3371) target = $region92
      $region91: #{tpu_custom_call.1} parent=5 // pred_region
        %s3374 = ssub.s32 %s32, 2
        // Predicated region
        $region93: #{tpu_custom_call.1} parent=91 // pred_check
          %p3375 = pneg %p264
        $region94: #{tpu_custom_call.1} parent=91 // pred_check_branch
          %3377 = sbr.rel (%p3375) target = $region96
        $region95: #{tpu_custom_call.1} parent=91 // pred_region
          %s3378 = sand.u32 %s249, 1
          %s3379 = scalar_lea.sflag [#allocation5], %s3378
          %s3380 = sand.u32 %s249, 1
          %s3381 = smul.addr %s3380, 256
          %s3382 = scalar_lea.vmem [#allocation14], %s3381
          %3383 = dma.done %s3379, 4096
        $region96: #{tpu_custom_call.1} parent=91 // pred_fallthru
          _
        // Predicated region
        $region97: #{tpu_custom_call.1} parent=91 // pred_check
          %p3384 = pneg %p290
        $region98: #{tpu_custom_call.1} parent=91 // pred_check_branch
          %3386 = sbr.rel (%p3384) target = $region100
        $region99: #{tpu_custom_call.1} parent=91 // pred_region
          %s3387 = sand.u32 %s275, 1
          %s3388 = scalar_lea.sflag [#allocation16], %s3387
          %s3389 = sand.u32 %s275, 1
          %s3390 = smul.addr %s3389, 256
          %s3391 = scalar_lea.vmem [#allocation15], %s3390
          %3392 = dma.done %s3388, 4096
        $region100: #{tpu_custom_call.1} parent=91 // pred_fallthru
          _
      $region92: #{tpu_custom_call.1} parent=5 // pred_fallthru
        _
    $region6: #{tpu_custom_call.1} parent=1 // loop_footer
      %s36 = sadd.s32 1, %s32
    $region7: #{tpu_custom_call.1} parent=1 // loop_footer_branch
      %31 = sbr.rel target = $region3
    $region8: #{tpu_custom_call.1} parent=1 // loop_exit
      _
    %3393 = vsyncpa [#allocation4], 1
    %s3394 = scalar_lea.sflag [#allocation4], 1
    %3395 = vsyncpa %s3394, 1
    %3396 = vsyncpa [#allocation7], 1
    %s3397 = scalar_lea.sflag [#allocation7], 1
    %3398 = vsyncpa %s3397, 1
    %3399 = vsyncpa [#allocation10], 1
    %s3400 = scalar_lea.sflag [#allocation10], 1
    %3401 = vsyncpa %s3400, 1
    %3402 = vsyncpa [#allocation13], 1
    %3403 = vsyncpa [#allocation5], 1
    %s3404 = scalar_lea.sflag [#allocation5], 1
    %3405 = vsyncpa %s3404, 1
    %3406 = vsyncpa [#allocation16], 1
    %s3407 = scalar_lea.sflag [#allocation16], 1
    %3408 = vsyncpa %s3407, 1

</llo_original>
